<compile_context>
chip_gen: v6e
topology: v6e:2x2x1
jax: 0.10.0
libtpu: 0.0.40
codegen_flags: <defaults>
</compile_context>

<pallas_src>
import jax
import jax.numpy as jnp
from jax.experimental import pallas as pl
from jax.experimental.pallas import tpu as pltpu


EMBED_SIZE = 32
HIDDEN = 1200
OUTPUT_SIZE = 41
PADDED_OUT = 128          # lane-dense logits slab inside the kernel
BN_EPS = 1e-5
NEG_BIG = -1.0e30         # pad-class bias; exp() underflows to 0 in the LSE


def _silu(x):
    return x * jax.lax.logistic(x)


def _device_kind():
    try:
        return jax.devices()[0].device_kind.lower()
    except Exception:
        return ""


def _pick_tile_rows(M, kind):
    """Row tile per generation, capped so the grid has >= 2 steps."""
    base = 1024 if ("v6" in kind or "v7" in kind) else 512
    # Cap at ceil(M/2) rounded up to 16 (bf16 x sublane packing) so the
    # "parallel" axis can shard across v7x's two TensorCores.
    half = -(-M // 2)
    half = max(16, ((half + 15) // 16) * 16)
    return min(base, half)


def _resident_spec(shape, index_map):
    """Constant-index block: request single buffering (fallback if unsupported)."""
    if hasattr(pl, "Buffered"):
        try:
            return pl.BlockSpec(shape, index_map, pipeline_mode=pl.Buffered(1))
        except TypeError:
            pass
    return pl.BlockSpec(shape, index_map)


def decoder_kernel(x_ref,
                   w1_ref, b1_ref,
                   w2_ref, b2_ref,
                   w3_ref, b3_ref,
                   out_ref):
    # x_ref: (TM, E) bf16 (cast in wrapper).  Both BatchNorms folded into w1/b1.
    x = x_ref[...]

    # Linear(E, 1200) with folded BN1/BN2 affines.  Keep on the MXU: hoisting
    # it would make the kernel input (M, 1200) f32 and flip it HBM-bound.
    h = jnp.dot(x, w1_ref[...], preferred_element_type=jnp.float32) + b1_ref[...]
    h = _silu(h)

    # Linear(1200, 1200) + SiLU  (dominant MXU work; bf16 operands, f32 acc).
    h = jnp.dot(h.astype(jnp.bfloat16), w2_ref[...],
                preferred_element_type=jnp.float32) + b2_ref[...]
    h = _silu(h)

    # Dropout(p=0.4): identity in eval mode.

    # Linear(1200, 128-padded-41). Pad columns have zero weights and a -1e30
    # bias, so they never influence the max / log-sum-exp below.
    logits = jnp.dot(h.astype(jnp.bfloat16), w3_ref[...],
                     preferred_element_type=jnp.float32) + b3_ref[...]

    # LogSoftmax over the class dim (f32, EUP exp/log); store 41 real classes.
    m = jnp.max(logits, axis=-1, keepdims=True)
    z = logits - m
    lse = jnp.log(jnp.sum(jnp.exp(z), axis=-1, keepdims=True))
    out_ref[...] = (z[:, :OUTPUT_SIZE] - lse).astype(out_ref.dtype)


def decoder_forward(encoder_out, params, tile_rows=None):
    """encoder_out: (B, T, E) float32. Returns (B, T, OUTPUT_SIZE) log-probs."""
    B, T, E = encoder_out.shape
    M = B * T
    kind = _device_kind()
    tm = tile_rows if tile_rows is not None else _pick_tile_rows(M, kind)

    # ---- fold eval-mode BatchNorms into Linear(E, 1200) (plain JAX glue) ----
    s1 = params["bn1_gamma"] / jnp.sqrt(params["bn1_var"] + BN_EPS)
    t1 = params["bn1_beta"] - params["bn1_mean"] * s1
    s2 = params["bn2_gamma"] / jnp.sqrt(params["bn2_var"] + BN_EPS)
    t2 = params["bn2_beta"] - params["bn2_mean"] * s2

    w1f = (s1[:, None] * params["w1"]) * s2[None, :]            # (E, H)
    b1f = (t1 @ params["w1"] + params["b1"]) * s2 + t2          # (H,)

    # ---- pad output projection to 128 lanes (MXU-friendly) ----
    w3p = jnp.zeros((HIDDEN, PADDED_OUT), jnp.float32).at[:, :OUTPUT_SIZE].set(params["w3"])
    b3p = jnp.full((PADDED_OUT,), NEG_BIG, jnp.float32).at[:OUTPUT_SIZE].set(params["b3"])

    # bf16 weights for the MXU; biases stay f32 (added post-accumulation).
    w1b = w1f.astype(jnp.bfloat16)
    w2b = params["w2"].astype(jnp.bfloat16)
    w3b = w3p.astype(jnp.bfloat16)

    # ---- pad rows to a multiple of the tile size (even #steps on v7x) ----
    grid_n = max(1, pl.cdiv(M, tm))
    if "v7" in kind and grid_n > 1 and grid_n % 2:
        grid_n += 1
    M_pad = grid_n * tm

    # Cast x to bf16 once here (halves the x DMA; kernel needs bf16 anyway).
    x2d = encoder_out.reshape(M, E).astype(jnp.bfloat16)
    if M_pad != M:
        x2d = jnp.pad(x2d, ((0, M_pad - M), (0, 0)))

    const = lambda i: (0, 0)   # weights/biases resident across grid steps

    compiler_kwargs = {"dimension_semantics": ("parallel",)}
    if "v5" in kind or "v6" in kind or "v7" in kind:
        compiler_kwargs["vmem_limit_bytes"] = 64 * 1024 * 1024

    out = pl.pallas_call(
        decoder_kernel,
        out_shape=jax.ShapeDtypeStruct((M_pad, OUTPUT_SIZE), jnp.float32),
        grid=(grid_n,),
        in_specs=[
            pl.BlockSpec((tm, E), lambda i: (i, 0)),             # x tile (bf16)
            _resident_spec((E, HIDDEN), const),                  # w1 (folded, bf16)
            _resident_spec((1, HIDDEN), const),                  # b1 (folded, f32)
            _resident_spec((HIDDEN, HIDDEN), const),             # w2 (bf16)
            _resident_spec((1, HIDDEN), const),                  # b2 (f32)
            _resident_spec((HIDDEN, PADDED_OUT), const),         # w3 (padded, bf16)
            _resident_spec((1, PADDED_OUT), const),              # b3 (padded, f32)
        ],
        out_specs=pl.BlockSpec((tm, OUTPUT_SIZE), lambda i: (i, 0)),
        compiler_params=pltpu.CompilerParams(**compiler_kwargs),
    )(
        x2d,
        w1b, b1f.reshape(1, HIDDEN),
        w2b, params["b2"].reshape(1, HIDDEN),
        w3b, b3p.reshape(1, PADDED_OUT),
    )

    if M_pad != M:
        out = out[:M]
    return out.reshape(B, T, OUTPUT_SIZE)


def init_params(key, embed_size=EMBED_SIZE, hidden=HIDDEN, output_size=OUTPUT_SIZE):
    ks = jax.random.split(key, 14)

    def u(k, shape, fan_in):
        bound = 1.0 / jnp.sqrt(fan_in)
        return jax.random.uniform(k, shape, jnp.float32, -bound, bound)

    return {
        # BatchNorm1d(embed_size) — deterministic, non-trivial running stats.
        "bn1_gamma": 1.0 + 0.1 * jax.random.normal(ks[0], (embed_size,), jnp.float32),
        "bn1_beta":  0.1 * jax.random.normal(ks[1], (embed_size,), jnp.float32),
        "bn1_mean":  0.1 * jax.random.normal(ks[2], (embed_size,), jnp.float32),
        "bn1_var":   jnp.abs(1.0 + 0.1 * jax.random.normal(ks[3], (embed_size,), jnp.float32)),
        # Linear(embed_size, 1200) — stored as (in, out) so kernel does h @ W.
        "w1": u(ks[4], (embed_size, hidden), embed_size),
        "b1": u(ks[5], (hidden,), embed_size),
        # BatchNorm1d(1200)
        "bn2_gamma": 1.0 + 0.1 * jax.random.normal(ks[6], (hidden,), jnp.float32),
        "bn2_beta":  0.1 * jax.random.normal(ks[7], (hidden,), jnp.float32),
        "bn2_mean":  0.1 * jax.random.normal(ks[8], (hidden,), jnp.float32),
        "bn2_var":   jnp.abs(1.0 + 0.1 * jax.random.normal(ks[9], (hidden,), jnp.float32)),
        # Linear(1200, 1200)
        "w2": u(ks[10], (hidden, hidden), hidden),
        "b2": u(ks[11], (hidden,), hidden),
        # Linear(1200, 41)
        "w3": u(ks[12], (hidden, output_size), hidden),
        "b3": u(ks[13], (output_size,), hidden),
    }


def decoder_reference(encoder_out, params):
    """Pure-JAX f32 reference for correctness checking."""
    x = encoder_out
    s1 = params["bn1_gamma"] / jnp.sqrt(params["bn1_var"] + BN_EPS)
    h = (x - params["bn1_mean"]) * s1 + params["bn1_beta"]
    h = h @ params["w1"] + params["b1"]
    s2 = params["bn2_gamma"] / jnp.sqrt(params["bn2_var"] + BN_EPS)
    h = (h - params["bn2_mean"]) * s2 + params["bn2_beta"]
    h = h * jax.nn.sigmoid(h)
    h = h @ params["w2"] + params["b2"]
    h = h * jax.nn.sigmoid(h)
    logits = h @ params["w3"] + params["b3"]
    return jax.nn.log_softmax(logits, axis=2)


if __name__ == "__main__":
    key = jax.random.PRNGKey(0)
    k_x, k_p = jax.random.split(key)

    B, T = 4, 8
    encoder_out = jax.random.normal(k_x, (B, T, EMBED_SIZE), jnp.float32)
    params = init_params(k_p)

    out = decoder_forward(encoder_out, params)
    out = jax.block_until_ready(out)

    ref = jax.block_until_ready(decoder_reference(encoder_out, params))
    assert out.shape == (B, T, OUTPUT_SIZE)
    # bf16 MXU operands (f32 accumulation) vs an all-f32 reference: relaxed tol.
    assert jnp.allclose(out, ref, atol=2e-2, rtol=2e-2), "mismatch vs reference"

    print("KERNEL_OK")
</pallas_src>

<mosaic_0001>
module attributes {stable_mosaic.version = 11 : i64} {
  func.func @decoder_kernel(%arg0: i32, %arg1: memref<16x32xbf16, #tpu.memory_space<vmem>>, %arg2: memref<32x1200xbf16, #tpu.memory_space<vmem>>, %arg3: memref<1x1200xf32, #tpu.memory_space<vmem>>, %arg4: memref<1200x1200xbf16, #tpu.memory_space<vmem>>, %arg5: memref<1x1200xf32, #tpu.memory_space<vmem>>, %arg6: memref<1200x128xbf16, #tpu.memory_space<vmem>>, %arg7: memref<1x128xf32, #tpu.memory_space<vmem>>, %arg8: memref<16x41xf32, #tpu.memory_space<vmem>>) attributes {dimension_semantics = [#tpu.dimension_semantics<parallel>], iteration_bounds = array<i64: 2>, scalar_prefetch = 0 : i64, scratch_operands = 0 : i64, tpu.core_type = #tpu.core_type<tc>, window_params = [{transform_indices = @transform_0, window_bounds = array<i64: 16, 32>}, {pipeline_mode = #tpu.pipeline_mode<synchronous>, transform_indices = @transform_1, window_bounds = array<i64: 32, 1200>}, {pipeline_mode = #tpu.pipeline_mode<synchronous>, transform_indices = @transform_2, window_bounds = array<i64: 1, 1200>}, {pipeline_mode = #tpu.pipeline_mode<synchronous>, transform_indices = @transform_3, window_bounds = array<i64: 1200, 1200>}, {pipeline_mode = #tpu.pipeline_mode<synchronous>, transform_indices = @transform_4, window_bounds = array<i64: 1, 1200>}, {pipeline_mode = #tpu.pipeline_mode<synchronous>, transform_indices = @transform_5, window_bounds = array<i64: 1200, 128>}, {pipeline_mode = #tpu.pipeline_mode<synchronous>, transform_indices = @transform_6, window_bounds = array<i64: 1, 128>}, {transform_indices = @transform_7, window_bounds = array<i64: 16, 41>}]} {
    %c0 = arith.constant 0 : index
    %c0_0 = arith.constant 0 : index
    %0 = vector.load %arg1[%c0, %c0_0] : memref<16x32xbf16, #tpu.memory_space<vmem>>, vector<16x32xbf16>
    %c0_1 = arith.constant 0 : index
    %c0_2 = arith.constant 0 : index
    %1 = vector.load %arg2[%c0_1, %c0_2] : memref<32x1200xbf16, #tpu.memory_space<vmem>>, vector<32x1200xbf16>
    %cst = arith.constant dense<0.000000e+00> : vector<16x1200xf32>
    %2 = tpu.matmul %0, %1, %cst {dimension_numbers = #tpu.dot_dimension_numbers<[1], [0], [0], [1], [0, 0, 1, 1], [], []>} : vector<16x32xbf16>, vector<32x1200xbf16>, vector<16x1200xf32> -> vector<16x1200xf32>
    %c0_3 = arith.constant 0 : index
    %c0_4 = arith.constant 0 : index
    %3 = vector.load %arg3[%c0_3, %c0_4] : memref<1x1200xf32, #tpu.memory_space<vmem>>, vector<1x1200xf32>
    %4 = vector.broadcast %3 : vector<1x1200xf32> to vector<16x1200xf32>
    %5 = arith.addf %2, %4 : vector<16x1200xf32>
    %6 = arith.negf %5 : vector<16x1200xf32>
    %7 = math.exp %6 : vector<16x1200xf32>
    %cst_5 = arith.constant 1.000000e+00 : f32
    %8 = vector.broadcast %cst_5 : f32 to vector<16x1200xf32>
    %9 = arith.addf %8, %7 : vector<16x1200xf32>
    %10 = arith.divf %8, %9 : vector<16x1200xf32>
    %11 = arith.mulf %5, %10 : vector<16x1200xf32>
    %12 = arith.truncf %11 : vector<16x1200xf32> to vector<16x1200xbf16>
    %c0_6 = arith.constant 0 : index
    %c0_7 = arith.constant 0 : index
    %13 = vector.load %arg4[%c0_6, %c0_7] : memref<1200x1200xbf16, #tpu.memory_space<vmem>>, vector<1200x1200xbf16>
    %cst_8 = arith.constant dense<0.000000e+00> : vector<16x1200xf32>
    %14 = tpu.matmul %12, %13, %cst_8 {dimension_numbers = #tpu.dot_dimension_numbers<[1], [0], [0], [1], [0, 0, 1, 1], [], []>} : vector<16x1200xbf16>, vector<1200x1200xbf16>, vector<16x1200xf32> -> vector<16x1200xf32>
    %c0_9 = arith.constant 0 : index
    %c0_10 = arith.constant 0 : index
    %15 = vector.load %arg5[%c0_9, %c0_10] : memref<1x1200xf32, #tpu.memory_space<vmem>>, vector<1x1200xf32>
    %16 = vector.broadcast %15 : vector<1x1200xf32> to vector<16x1200xf32>
    %17 = arith.addf %14, %16 : vector<16x1200xf32>
    %18 = arith.negf %17 : vector<16x1200xf32>
    %19 = math.exp %18 : vector<16x1200xf32>
    %cst_11 = arith.constant 1.000000e+00 : f32
    %20 = vector.broadcast %cst_11 : f32 to vector<16x1200xf32>
    %21 = arith.addf %20, %19 : vector<16x1200xf32>
    %22 = arith.divf %20, %21 : vector<16x1200xf32>
    %23 = arith.mulf %17, %22 : vector<16x1200xf32>
    %24 = arith.truncf %23 : vector<16x1200xf32> to vector<16x1200xbf16>
    %c0_12 = arith.constant 0 : index
    %c0_13 = arith.constant 0 : index
    %25 = vector.load %arg6[%c0_12, %c0_13] : memref<1200x128xbf16, #tpu.memory_space<vmem>>, vector<1200x128xbf16>
    %cst_14 = arith.constant dense<0.000000e+00> : vector<16x128xf32>
    %26 = tpu.matmul %24, %25, %cst_14 {dimension_numbers = #tpu.dot_dimension_numbers<[1], [0], [0], [1], [0, 0, 1, 1], [], []>} : vector<16x1200xbf16>, vector<1200x128xbf16>, vector<16x128xf32> -> vector<16x128xf32>
    %c0_15 = arith.constant 0 : index
    %c0_16 = arith.constant 0 : index
    %27 = vector.load %arg7[%c0_15, %c0_16] : memref<1x128xf32, #tpu.memory_space<vmem>>, vector<1x128xf32>
    %28 = vector.broadcast %27 : vector<1x128xf32> to vector<16x128xf32>
    %29 = arith.addf %26, %28 : vector<16x128xf32>
    %cst_17 = arith.constant dense<0xFF800000> : vector<16xf32>
    %30 = vector.multi_reduction <maximumf>, %29, %cst_17 [1] : vector<16x128xf32> to vector<16xf32>
    %31 = vector.shape_cast %30 : vector<16xf32> to vector<16x1xf32>
    %32 = vector.broadcast %31 : vector<16x1xf32> to vector<16x128xf32>
    %33 = arith.subf %29, %32 : vector<16x128xf32>
    %34 = math.exp %33 : vector<16x128xf32>
    %cst_18 = arith.constant dense<0.000000e+00> : vector<16xf32>
    %35 = vector.multi_reduction <add>, %34, %cst_18 [1] : vector<16x128xf32> to vector<16xf32>
    %36 = vector.shape_cast %35 : vector<16xf32> to vector<16x1xf32>
    %37 = math.log %36 : vector<16x1xf32>
    %38 = vector.extract_strided_slice %33 {offsets = [0, 0], sizes = [16, 41], strides = [1, 1]} : vector<16x128xf32> to vector<16x41xf32>
    %39 = vector.broadcast %37 : vector<16x1xf32> to vector<16x41xf32>
    %40 = arith.subf %38, %39 : vector<16x41xf32>
    %c0_19 = arith.constant 0 : index
    %c0_20 = arith.constant 0 : index
    %41 = vector.load %arg8[%c0_19, %c0_20] : memref<16x41xf32, #tpu.memory_space<vmem>>, vector<16x41xf32>
    tpu.vector_store %arg8[%c0_19, %c0_20], %40 {strides = array<i32>} : memref<16x41xf32, #tpu.memory_space<vmem>>, vector<16x41xf32>,
    return
  }
  func.func @transform_0(%arg0: i32) -> (i32, i32) {
    %c0_i32 = arith.constant 0 : i32
    %c0_i32_0 = arith.constant 0 : i32
    return %arg0, %c0_i32 : i32, i32
  }
  func.func @transform_1(%arg0: i32) -> (i32, i32) {
    %c0_i32 = arith.constant 0 : i32
    %c0_i32_0 = arith.constant 0 : i32
    %c0_i32_1 = arith.constant 0 : i32
    return %c0_i32, %c0_i32_0 : i32, i32
  }
  func.func @transform_2(%arg0: i32) -> (i32, i32) {
    %c0_i32 = arith.constant 0 : i32
    %c0_i32_0 = arith.constant 0 : i32
    %c0_i32_1 = arith.constant 0 : i32
    return %c0_i32, %c0_i32_0 : i32, i32
  }
  func.func @transform_3(%arg0: i32) -> (i32, i32) {
    %c0_i32 = arith.constant 0 : i32
    %c0_i32_0 = arith.constant 0 : i32
    %c0_i32_1 = arith.constant 0 : i32
    return %c0_i32, %c0_i32_0 : i32, i32
  }
  func.func @transform_4(%arg0: i32) -> (i32, i32) {
    %c0_i32 = arith.constant 0 : i32
    %c0_i32_0 = arith.constant 0 : i32
    %c0_i32_1 = arith.constant 0 : i32
    return %c0_i32, %c0_i32_0 : i32, i32
  }
  func.func @transform_5(%arg0: i32) -> (i32, i32) {
    %c0_i32 = arith.constant 0 : i32
    %c0_i32_0 = arith.constant 0 : i32
    %c0_i32_1 = arith.constant 0 : i32
    return %c0_i32, %c0_i32_0 : i32, i32
  }
  func.func @transform_6(%arg0: i32) -> (i32, i32) {
    %c0_i32 = arith.constant 0 : i32
    %c0_i32_0 = arith.constant 0 : i32
    %c0_i32_1 = arith.constant 0 : i32
    return %c0_i32, %c0_i32_0 : i32, i32
  }
  func.func @transform_7(%arg0: i32) -> (i32, i32) {
    %c0_i32 = arith.constant 0 : i32
    %c0_i32_0 = arith.constant 0 : i32
    return %arg0, %c0_i32 : i32, i32
  }
}

</mosaic_0001>

<llo_original>
// kernel: tpu_custom_call.1
$region0: #{tpu_custom_call.1}
  #allocation0 [shape = 'u32[]', space=smem, size = 0x4, offset = 0x4, fixed_abs, tag = 'smem constant byte address 0x4 - core index']
  #allocation1 [shape = 'u32[144,128]{1,0:T(1,128)}', space=vmem, size = 0x12000, scoped, tag = 'internal scratch']
  %s0 = inlined_call_operand.hbm [shape: bf16[32,32], index: 0, kind: input, shape index: {}]
  %s1 = inlined_call_operand.hbm [shape: bf16[32,1200], index: 1, kind: input, shape index: {}]
  %s2 = inlined_call_operand.hbm [shape: f32[1,1200], index: 2, kind: input, shape index: {}]
  %s3 = inlined_call_operand.hbm [shape: bf16[1200,1200], index: 3, kind: input, shape index: {}]
  %s4 = inlined_call_operand.hbm [shape: f32[1,1200], index: 4, kind: input, shape index: {}]
  %s5 = inlined_call_operand.hbm [shape: bf16[1200,128], index: 5, kind: input, shape index: {}]
  %s6 = inlined_call_operand.hbm [shape: f32[1,128], index: 6, kind: input, shape index: {}]
  %s7 = inlined_call_operand.hbm [shape: f32[32,41], index: 7, kind: output, shape index: {}]
  %s8 = sld [smem:[#allocation0]]
  $region89: #{tpu_custom_call.1} parent=0
    _
  %s10 = ssub.s32 1, %s8
  %s11 = scalar_select 0, %s10, %s8
  $region1: #{tpu_custom_call.1} parent=0
    #allocation2 [shape = 'u8[8192]{0}', space=vmem, size = 0x2000, scoped, tag = 'input window, operand 0']
    #allocation3 [shape = 's32[2]{0}', space=sflag, size = 0x8, scoped, tag = 'scoped memory for tpu_custom_call.1']
    #allocation4 [shape = 's32[2]{0}', space=sflag, size = 0x8, scoped, tag = 'scoped memory for tpu_custom_call.1']
    #allocation5 [shape = 'u8[81920]{0}', space=vmem, size = 0x14000, scoped, tag = 'input window, operand 1, single buffered']
    #allocation6 [shape = 's32[1]{0}', space=sflag, size = 0x4, scoped, tag = 'scoped memory for tpu_custom_call.1']
    #allocation7 [shape = 'u8[5120]{0}', space=vmem, size = 0x1400, scoped, tag = 'input window, operand 2, single buffered']
    #allocation8 [shape = 'u8[3072000]{0}', space=vmem, size = 0x2ee000, scoped, tag = 'input window, operand 3, single buffered']
    #allocation9 [shape = 's32[1]{0}', space=sflag, size = 0x4, scoped, tag = 'scoped memory for tpu_custom_call.1']
    #allocation10 [shape = 'u8[5120]{0}', space=vmem, size = 0x1400, scoped, tag = 'input window, operand 4, single buffered']
    #allocation11 [shape = 'u8[307200]{0}', space=vmem, size = 0x4b000, scoped, tag = 'input window, operand 5, single buffered']
    #allocation12 [shape = 's32[1]{0}', space=sflag, size = 0x4, scoped, tag = 'scoped memory for tpu_custom_call.1']
    #allocation13 [shape = 'u8[512]{0}', space=vmem, size = 0x400, scoped, tag = 'input window, operand 6, single buffered']
    #allocation14 [shape = 'u8[16384]{0}', space=vmem, size = 0x4000, scoped, tag = 'output window, operand 0']
    %12 = vsyncpa [#allocation3], 0
    %s13 = scalar_lea.sflag [#allocation3], 1
    %14 = vsyncpa %s13, 0
    %15 = vsyncpa [#allocation6], 0
    %16 = vsyncpa [#allocation9], 0
    %17 = vsyncpa [#allocation12], 0
    %18 = vsyncpa [#allocation4], 0
    %s19 = scalar_lea.sflag [#allocation4], 1
    %20 = vsyncpa %s19, 0
    loop: start=0, step=1, limit=4
    $region2: #{tpu_custom_call.1} parent=1 // loop_pre_header
      _
    $region3: #{tpu_custom_call.1} parent=1 // loop_header
      %s22 = sphi 0, %s26
      %p23 = scmp.ge.s32.totalorder %s22, 4
      %s32 = sphi 0, %s34
      %s35 = sphi 0, %s32
      %s36 = sphi 0, %s35
      %s52 = sphi 0, %s36
      %s56 = sphi 0, %s56
      %s58 = sphi 0, %s56
      %s59 = sphi 0, %s58
      %s73 = sphi 0, %s59
      %s77 = sphi 0, %s77
      %s79 = sphi 0, %s77
      %s80 = sphi 0, %s79
      %s94 = sphi 0, %s80
      %s98 = sphi 0, %s98
      %s100 = sphi 0, %s98
      %s101 = sphi 0, %s100
      %s115 = sphi 0, %s101
      %s119 = sphi 0, %s119
      %s121 = sphi 0, %s119
      %s122 = sphi 0, %s121
      %s136 = sphi 0, %s122
      %s140 = sphi 0, %s140
      %s142 = sphi 0, %s140
      %s143 = sphi 0, %s142
      %s157 = sphi 0, %s143
      %s161 = sphi 0, %s161
      %s163 = sphi 0, %s161
      %s164 = sphi 0, %s163
      %s178 = sphi 0, %s164
      %s184 = sphi 0, %s186
      %s187 = sphi 0, %s184
      %s188 = sphi 0, %s187
      %s204 = sphi 0, %s188
    $region4: #{tpu_custom_call.1} parent=1 // loop_header_branch
      %25 = sbr.rel (%p23) target = $region8
    $region5: #{tpu_custom_call.1} parent=1 // loop_body
      %s27 = ssub.s32 %s22, 1
      %s28 = ssub.s32 %s22, 2
      %s29 = sadd.s32 %s22, 1
      %s30 = ssub.s32 %s22, %s29
      %p31 = scmp.eq.s32.totalorder %s30, 0
      %s33 = sadd.s32 %s32, 1
      %s34 = scalar_select %p31, %s32, %s33
      %p37 = pneg %p31
      %p38 = scmp.eq.s32.totalorder %s22, 1
      %p39 = por %p37, %p38
      %p40 = scmp.ne.s32.totalorder %s32, %s35
      %p41 = scmp.eq.s32.totalorder %s22, 0
      %p42 = por %p40, %p41
      %p43 = scmp.ne.s32.totalorder %s32, %s35
      %p44 = scmp.eq.s32.totalorder %s27, 1
      %p45 = por %p43, %p44
      %p46 = scmp.ne.s32.totalorder %s35, %s36
      %p47 = scmp.eq.s32.totalorder %s27, 0
      %p48 = por %p46, %p47
      %p49 = scmp.ne.s32.totalorder %s35, %s36
      %p50 = scmp.eq.s32.totalorder %s28, 1
      %p51 = por %p49, %p50
      %p53 = scmp.ne.s32.totalorder %s36, %s52
      %p54 = scmp.eq.s32.totalorder %s28, 0
      %p55 = por %p53, %p54
      %s57 = sadd.s32 %s56, 1
      %p60 = scmp.eq.s32.totalorder %s22, 1
      %p61 = scmp.ne.s32.totalorder %s56, %s58
      %p62 = scmp.eq.s32.totalorder %s22, 0
      %p63 = por %p61, %p62
      %p64 = scmp.ne.s32.totalorder %s56, %s58
      %p65 = scmp.eq.s32.totalorder %s27, 1
      %p66 = por %p64, %p65
      %p67 = scmp.ne.s32.totalorder %s58, %s59
      %p68 = scmp.eq.s32.totalorder %s27, 0
      %p69 = por %p67, %p68
      %p70 = scmp.ne.s32.totalorder %s58, %s59
      %p71 = scmp.eq.s32.totalorder %s28, 1
      %p72 = por %p70, %p71
      %p74 = scmp.ne.s32.totalorder %s59, %s73
      %p75 = scmp.eq.s32.totalorder %s28, 0
      %p76 = por %p74, %p75
      %s78 = sadd.s32 %s77, 1
      %p81 = scmp.eq.s32.totalorder %s22, 1
      %p82 = scmp.ne.s32.totalorder %s77, %s79
      %p83 = scmp.eq.s32.totalorder %s22, 0
      %p84 = por %p82, %p83
      %p85 = scmp.ne.s32.totalorder %s77, %s79
      %p86 = scmp.eq.s32.totalorder %s27, 1
      %p87 = por %p85, %p86
      %p88 = scmp.ne.s32.totalorder %s79, %s80
      %p89 = scmp.eq.s32.totalorder %s27, 0
      %p90 = por %p88, %p89
      %p91 = scmp.ne.s32.totalorder %s79, %s80
      %p92 = scmp.eq.s32.totalorder %s28, 1
      %p93 = por %p91, %p92
      %p95 = scmp.ne.s32.totalorder %s80, %s94
      %p96 = scmp.eq.s32.totalorder %s28, 0
      %p97 = por %p95, %p96
      %s99 = sadd.s32 %s98, 1
      %p102 = scmp.eq.s32.totalorder %s22, 1
      %p103 = scmp.ne.s32.totalorder %s98, %s100
      %p104 = scmp.eq.s32.totalorder %s22, 0
      %p105 = por %p103, %p104
      %p106 = scmp.ne.s32.totalorder %s98, %s100
      %p107 = scmp.eq.s32.totalorder %s27, 1
      %p108 = por %p106, %p107
      %p109 = scmp.ne.s32.totalorder %s100, %s101
      %p110 = scmp.eq.s32.totalorder %s27, 0
      %p111 = por %p109, %p110
      %p112 = scmp.ne.s32.totalorder %s100, %s101
      %p113 = scmp.eq.s32.totalorder %s28, 1
      %p114 = por %p112, %p113
      %p116 = scmp.ne.s32.totalorder %s101, %s115
      %p117 = scmp.eq.s32.totalorder %s28, 0
      %p118 = por %p116, %p117
      %s120 = sadd.s32 %s119, 1
      %p123 = scmp.eq.s32.totalorder %s22, 1
      %p124 = scmp.ne.s32.totalorder %s119, %s121
      %p125 = scmp.eq.s32.totalorder %s22, 0
      %p126 = por %p124, %p125
      %p127 = scmp.ne.s32.totalorder %s119, %s121
      %p128 = scmp.eq.s32.totalorder %s27, 1
      %p129 = por %p127, %p128
      %p130 = scmp.ne.s32.totalorder %s121, %s122
      %p131 = scmp.eq.s32.totalorder %s27, 0
      %p132 = por %p130, %p131
      %p133 = scmp.ne.s32.totalorder %s121, %s122
      %p134 = scmp.eq.s32.totalorder %s28, 1
      %p135 = por %p133, %p134
      %p137 = scmp.ne.s32.totalorder %s122, %s136
      %p138 = scmp.eq.s32.totalorder %s28, 0
      %p139 = por %p137, %p138
      %s141 = sadd.s32 %s140, 1
      %p144 = scmp.eq.s32.totalorder %s22, 1
      %p145 = scmp.ne.s32.totalorder %s140, %s142
      %p146 = scmp.eq.s32.totalorder %s22, 0
      %p147 = por %p145, %p146
      %p148 = scmp.ne.s32.totalorder %s140, %s142
      %p149 = scmp.eq.s32.totalorder %s27, 1
      %p150 = por %p148, %p149
      %p151 = scmp.ne.s32.totalorder %s142, %s143
      %p152 = scmp.eq.s32.totalorder %s27, 0
      %p153 = por %p151, %p152
      %p154 = scmp.ne.s32.totalorder %s142, %s143
      %p155 = scmp.eq.s32.totalorder %s28, 1
      %p156 = por %p154, %p155
      %p158 = scmp.ne.s32.totalorder %s143, %s157
      %p159 = scmp.eq.s32.totalorder %s28, 0
      %p160 = por %p158, %p159
      %s162 = sadd.s32 %s161, 1
      %p165 = scmp.eq.s32.totalorder %s22, 1
      %p166 = scmp.ne.s32.totalorder %s161, %s163
      %p167 = scmp.eq.s32.totalorder %s22, 0
      %p168 = por %p166, %p167
      %p169 = scmp.ne.s32.totalorder %s161, %s163
      %p170 = scmp.eq.s32.totalorder %s27, 1
      %p171 = por %p169, %p170
      %p172 = scmp.ne.s32.totalorder %s163, %s164
      %p173 = scmp.eq.s32.totalorder %s27, 0
      %p174 = por %p172, %p173
      %p175 = scmp.ne.s32.totalorder %s163, %s164
      %p176 = scmp.eq.s32.totalorder %s28, 1
      %p177 = por %p175, %p176
      %p179 = scmp.ne.s32.totalorder %s164, %s178
      %p180 = scmp.eq.s32.totalorder %s28, 0
      %p181 = por %p179, %p180
      %s182 = ssub.s32 %s22, %s29
      %p183 = scmp.eq.s32.totalorder %s182, 0
      %s185 = sadd.s32 %s184, 1
      %s186 = scalar_select %p183, %s184, %s185
      %p189 = pneg %p183
      %p190 = scmp.eq.s32.totalorder %s22, 1
      %p191 = por %p189, %p190
      %p192 = scmp.ne.s32.totalorder %s184, %s187
      %p193 = scmp.eq.s32.totalorder %s22, 0
      %p194 = por %p192, %p193
      %p195 = scmp.ne.s32.totalorder %s184, %s187
      %p196 = scmp.eq.s32.totalorder %s27, 1
      %p197 = por %p195, %p196
      %p198 = scmp.ne.s32.totalorder %s187, %s188
      %p199 = scmp.eq.s32.totalorder %s27, 0
      %p200 = por %p198, %p199
      %p201 = scmp.ne.s32.totalorder %s187, %s188
      %p202 = scmp.eq.s32.totalorder %s28, 1
      %p203 = por %p201, %p202
      %p205 = scmp.ne.s32.totalorder %s188, %s204
      %p206 = scmp.eq.s32.totalorder %s28, 0
      %p207 = por %p205, %p206
      %p208 = scmp.le.s32.totalorder 1, %s22
      %p209 = scmp.lt.s32.totalorder %s22, 3
      %p210 = pnand %p208, %p209
      %p211 = pneg %p210
      // Predicated region
      $region9: #{tpu_custom_call.1} parent=5 // pred_check
        _
      $region10: #{tpu_custom_call.1} parent=5 // pred_check_branch
        %213 = sbr.rel (%p210) target = $region12
      $region11: #{tpu_custom_call.1} parent=5 // pred_region
        %s214 = ssub.s32 %s22, 1
        // Predicated region
        $region13: #{tpu_custom_call.1} parent=11 // pred_check
          %p215 = pneg %p69
        $region14: #{tpu_custom_call.1} parent=11 // pred_check_branch
          %217 = sbr.rel (%p215) target = $region16
        $region15: #{tpu_custom_call.1} parent=11 // pred_region
          %s219 = ssub.s32 2560, 2560
          %220 = vsyncadd [#allocation6], %s219
          %s221 = sshll.u32 [#allocation5], 4
          %s222 = int_to_ptr.vmem [resolvable:$true] %s221
          %227 = dma.hbm_to_vmem [thread:$0]  %s1, 2560, %s222, [#allocation6], 640, 640, 40
        $region16: #{tpu_custom_call.1} parent=11 // pred_fallthru
          _
        // Predicated region
        $region17: #{tpu_custom_call.1} parent=11 // pred_check
          %p228 = pneg %p90
        $region18: #{tpu_custom_call.1} parent=11 // pred_check_branch
          %230 = sbr.rel (%p228) target = $region20
        $region19: #{tpu_custom_call.1} parent=11 // pred_region
          %s232 = ssub.s32 160, 160
          %233 = vsyncadd [#allocation6], %s232
          %s235 = sshll.u32 [#allocation7], 4
          %s236 = int_to_ptr.vmem [resolvable:$true] %s235
          %238 = dma.hbm_to_vmem [thread:$0]  %s2, 160, %s236, [#allocation6]
        $region20: #{tpu_custom_call.1} parent=11 // pred_fallthru
          _
        // Predicated region
        $region21: #{tpu_custom_call.1} parent=11 // pred_check
          %p239 = pneg %p111
        $region22: #{tpu_custom_call.1} parent=11 // pred_check_branch
          %241 = sbr.rel (%p239) target = $region24
        $region23: #{tpu_custom_call.1} parent=11 // pred_region
          %s243 = ssub.s32 96000, 96000
          %244 = vsyncadd [#allocation9], %s243
          %s245 = sshll.u32 [#allocation8], 4
          %s246 = int_to_ptr.vmem [resolvable:$true] %s245
          %251 = dma.hbm_to_vmem [thread:$0]  %s3, 96000, %s246, [#allocation9], 640, 640, 40
        $region24: #{tpu_custom_call.1} parent=11 // pred_fallthru
          _
        // Predicated region
        $region25: #{tpu_custom_call.1} parent=11 // pred_check
          %p252 = pneg %p132
        $region26: #{tpu_custom_call.1} parent=11 // pred_check_branch
          %254 = sbr.rel (%p252) target = $region28
        $region27: #{tpu_custom_call.1} parent=11 // pred_region
          %s256 = ssub.s32 160, 160
          %257 = vsyncadd [#allocation9], %s256
          %s259 = sshll.u32 [#allocation10], 4
          %s260 = int_to_ptr.vmem [resolvable:$true] %s259
          %262 = dma.hbm_to_vmem [thread:$0]  %s4, 160, %s260, [#allocation9]
        $region28: #{tpu_custom_call.1} parent=11 // pred_fallthru
          _
        // Predicated region
        $region29: #{tpu_custom_call.1} parent=11 // pred_check
          %p263 = pneg %p153
        $region30: #{tpu_custom_call.1} parent=11 // pred_check_branch
          %265 = sbr.rel (%p263) target = $region32
        $region31: #{tpu_custom_call.1} parent=11 // pred_region
          %s267 = ssub.s32 9600, 9600
          %268 = vsyncadd [#allocation12], %s267
          %s269 = sshll.u32 [#allocation11], 4
          %s270 = int_to_ptr.vmem [resolvable:$true] %s269
          %275 = dma.hbm_to_vmem [thread:$0]  %s5, 9600, %s270, [#allocation12], 64, 64, 4
        $region32: #{tpu_custom_call.1} parent=11 // pred_fallthru
          _
        // Predicated region
        $region33: #{tpu_custom_call.1} parent=11 // pred_check
          %p276 = pneg %p174
        $region34: #{tpu_custom_call.1} parent=11 // pred_check_branch
          %278 = sbr.rel (%p276) target = $region36
        $region35: #{tpu_custom_call.1} parent=11 // pred_region
          %s280 = ssub.s32 16, 16
          %281 = vsyncadd [#allocation12], %s280
          %s283 = sshll.u32 [#allocation13], 4
          %s284 = int_to_ptr.vmem [resolvable:$true] %s283
          %286 = dma.hbm_to_vmem [thread:$0]  %s6, 16, %s284, [#allocation12]
        $region36: #{tpu_custom_call.1} parent=11 // pred_fallthru
          _
      $region12: #{tpu_custom_call.1} parent=5 // pred_fallthru
        _
      %p287 = scmp.lt.s32.totalorder %s22, 2
      // Predicated region
      $region37: #{tpu_custom_call.1} parent=5 // pred_check
        %p288 = pneg %p287
      $region38: #{tpu_custom_call.1} parent=5 // pred_check_branch
        %290 = sbr.rel (%p288) target = $region40
      $region39: #{tpu_custom_call.1} parent=5 // pred_region
        // Predicated region
        $region41: #{tpu_custom_call.1} parent=39 // pred_check
          %p291 = pneg %p42
        $region42: #{tpu_custom_call.1} parent=39 // pred_check_branch
          %293 = sbr.rel (%p291) target = $region44
        $region43: #{tpu_custom_call.1} parent=39 // pred_region
          %s294 = sand.u32 %s32, 1
          %s295 = scalar_lea.sflag [#allocation3], %s294
          %s296 = sand.u32 %s32, 1
          %s297 = smul.addr %s296, 8
          %s298 = scalar_lea.vmem [#allocation2], %s297
          %s299 = smul.u32 2, %s22
          %s301 = ssub.s32 128, 128
          %302 = vsyncadd %s295, %s301
          %s303 = smul.addr %s299, 64
          %s304 = scalar_lea.hbm %s0, %s303
          %s305 = sshll.u32 %s298, 4
          %s306 = int_to_ptr.vmem [resolvable:$true] %s305
          %311 = dma.hbm_to_vmem [thread:$0]  %s304, 128, %s306, %s295, 64, 64, 4
        $region44: #{tpu_custom_call.1} parent=39 // pred_fallthru
          _
      $region40: #{tpu_custom_call.1} parent=5 // pred_fallthru
        _
      %p312 = scmp.le.s32.totalorder 1, %s22
      %p313 = scmp.lt.s32.totalorder %s22, 3
      %p314 = pnand %p312, %p313
      %p315 = pneg %p314
      // Predicated region
      $region45: #{tpu_custom_call.1} parent=5 // pred_check
        _
      $region46: #{tpu_custom_call.1} parent=5 // pred_check_branch
        %317 = sbr.rel (%p314) target = $region48
      $region47: #{tpu_custom_call.1} parent=5 // pred_region
        %s318 = ssub.s32 %s22, 1
        %s319 = sand.u32 %s35, 1
        %s320 = scalar_lea.sflag [#allocation3], %s319
        %s321 = sand.u32 %s35, 1
        %s322 = smul.addr %s321, 8
        %s323 = scalar_lea.vmem [#allocation2], %s322
        // Predicated region
        $region49: #{tpu_custom_call.1} parent=47 // pred_check
          %p324 = pneg %p48
        $region50: #{tpu_custom_call.1} parent=47 // pred_check_branch
          %326 = sbr.rel (%p324) target = $region52
        $region51: #{tpu_custom_call.1} parent=47 // pred_region
          %327 = dma.done %s320, 128
        $region52: #{tpu_custom_call.1} parent=47 // pred_fallthru
          _
        // Predicated region
        $region53: #{tpu_custom_call.1} parent=47 // pred_check
          %p328 = pneg %p69
        $region54: #{tpu_custom_call.1} parent=47 // pred_check_branch
          %330 = sbr.rel (%p328) target = $region56
        $region55: #{tpu_custom_call.1} parent=47 // pred_region
          %331 = dma.done [#allocation6], 2560
        $region56: #{tpu_custom_call.1} parent=47 // pred_fallthru
          _
        // Predicated region
        $region57: #{tpu_custom_call.1} parent=47 // pred_check
          %p332 = pneg %p90
        $region58: #{tpu_custom_call.1} parent=47 // pred_check_branch
          %334 = sbr.rel (%p332) target = $region60
        $region59: #{tpu_custom_call.1} parent=47 // pred_region
          %335 = dma.done [#allocation6], 160
        $region60: #{tpu_custom_call.1} parent=47 // pred_fallthru
          _
        // Predicated region
        $region61: #{tpu_custom_call.1} parent=47 // pred_check
          %p336 = pneg %p111
        $region62: #{tpu_custom_call.1} parent=47 // pred_check_branch
          %338 = sbr.rel (%p336) target = $region64
        $region63: #{tpu_custom_call.1} parent=47 // pred_region
          %339 = dma.done [#allocation9], 96000
        $region64: #{tpu_custom_call.1} parent=47 // pred_fallthru
          _
        // Predicated region
        $region65: #{tpu_custom_call.1} parent=47 // pred_check
          %p340 = pneg %p132
        $region66: #{tpu_custom_call.1} parent=47 // pred_check_branch
          %342 = sbr.rel (%p340) target = $region68
        $region67: #{tpu_custom_call.1} parent=47 // pred_region
          %343 = dma.done [#allocation9], 160
        $region68: #{tpu_custom_call.1} parent=47 // pred_fallthru
          _
        // Predicated region
        $region69: #{tpu_custom_call.1} parent=47 // pred_check
          %p344 = pneg %p153
        $region70: #{tpu_custom_call.1} parent=47 // pred_check_branch
          %346 = sbr.rel (%p344) target = $region72
        $region71: #{tpu_custom_call.1} parent=47 // pred_region
          %347 = dma.done [#allocation12], 9600
        $region72: #{tpu_custom_call.1} parent=47 // pred_fallthru
          _
        // Predicated region
        $region73: #{tpu_custom_call.1} parent=47 // pred_check
          %p348 = pneg %p174
        $region74: #{tpu_custom_call.1} parent=47 // pred_check_branch
          %350 = sbr.rel (%p348) target = $region76
        $region75: #{tpu_custom_call.1} parent=47 // pred_region
          %351 = dma.done [#allocation12], 16
        $region76: #{tpu_custom_call.1} parent=47 // pred_fallthru
          _
        %s352 = sand.u32 %s35, 1
        %s353 = scalar_lea.sflag [#allocation3], %s352
        %s354 = sand.u32 %s35, 1
        %s355 = smul.addr %s354, 8
        %s356 = scalar_lea.vmem [#allocation2], %s355
        %p357 = pneg %p48
        %p358 = pneg %p45
        %p359 = pneg %p69
        %p360 = pneg %p66
        %p361 = pneg %p90
        %p362 = pneg %p87
        %p363 = pneg %p111
        %p364 = pneg %p108
        %p365 = pneg %p132
        %p366 = pneg %p129
        %p367 = pneg %p153
        %p368 = pneg %p150
        %p369 = pneg %p174
        %p370 = pneg %p171
        %p371 = pneg %p200
        %p372 = pneg %p197
        %s373 = sand.u32 %s187, 1
        %s374 = scalar_lea.sflag [#allocation4], %s373
        %s375 = sand.u32 %s187, 1
        %s376 = smul.addr %s375, 16
        %s377 = scalar_lea.vmem [#allocation14], %s376
        %s378 = smul.u32 2, %s27
        %s379 = smul.u32 2, %s27
        %v381 = vld [vmem:[%s323] sm:$0xf]
        %v382 = vld [vmem:[%s323 + $0x4] sm:$0xf]
        %v383 = vld [vmem:[#allocation5] sm:$0xff]
        %v384 = vld [vmem:[#allocation5 + $0x8] sm:$0xff]
        %v385 = vld [vmem:[#allocation5 + $0x10] sm:$0xff]
        %v386 = vld [vmem:[#allocation5 + $0x18] sm:$0xff]
        %v387 = vld [vmem:[#allocation5 + $0x20] sm:$0xff]
        %v388 = vld [vmem:[#allocation5 + $0x28] sm:$0xff]
        %v389 = vld [vmem:[#allocation5 + $0x30] sm:$0xff]
        %v390 = vld [vmem:[#allocation5 + $0x38] sm:$0xff]
        %v391 = vld [vmem:[#allocation5 + $0x40] sm:$0xff]
        %v392 = vld [vmem:[#allocation5 + $0x48] sm:$0xff]
        %v393 = vld [vmem:[#allocation5 + $0x50] sm:$0xff]
        %v394 = vld [vmem:[#allocation5 + $0x58] sm:$0xff]
        %v395 = vld [vmem:[#allocation5 + $0x60] sm:$0xff]
        %v396 = vld [vmem:[#allocation5 + $0x68] sm:$0xff]
        %v397 = vld [vmem:[#allocation5 + $0x70] sm:$0xff]
        %v398 = vld [vmem:[#allocation5 + $0x78] sm:$0xff]
        %v399 = vld [vmem:[#allocation5 + $0x80] sm:$0xff]
        %v400 = vld [vmem:[#allocation5 + $0x88] sm:$0xff]
        %v401 = vld [vmem:[#allocation5 + $0x90] sm:$0xff]
        %v402 = vld [vmem:[#allocation5 + $0x98] sm:$0xff]
        %v403 = vld [vmem:[#allocation7] sm:$0xff]
        %v404 = vld [vmem:[#allocation7 + $0x8] sm:$0x3]
        %v407 = vlaneseq
        %v408 = vshrl.u32 %v407, 7
        %v409 = vsub.s32 0, %v408
        %v410 = vrot.slane %v403, %v409
        %v411 = vlaneseq
        %v412 = vshrl.u32 %v411, 7
        %v413 = vsub.s32 1, %v412
        %v414 = vrot.slane %v403, %v413
        %v415 = vlaneseq
        %v416 = vshrl.u32 %v415, 7
        %v417 = vsub.s32 2, %v416
        %v418 = vrot.slane %v403, %v417
        %v419 = vlaneseq
        %v420 = vshrl.u32 %v419, 7
        %v421 = vsub.s32 3, %v420
        %v422 = vrot.slane %v403, %v421
        %v423 = vlaneseq
        %v424 = vshrl.u32 %v423, 7
        %v425 = vsub.s32 4, %v424
        %v426 = vrot.slane %v403, %v425
        %v427 = vlaneseq
        %v428 = vshrl.u32 %v427, 7
        %v429 = vsub.s32 5, %v428
        %v430 = vrot.slane %v403, %v429
        %v431 = vlaneseq
        %v432 = vshrl.u32 %v431, 7
        %v433 = vsub.s32 6, %v432
        %v434 = vrot.slane %v403, %v433
        %v435 = vlaneseq
        %v436 = vshrl.u32 %v435, 7
        %v437 = vsub.s32 7, %v436
        %v438 = vrot.slane %v403, %v437
        %v439 = vlaneseq
        %v440 = vshrl.u32 %v439, 7
        %v441 = vsub.s32 0, %v440
        %v442 = vrot.slane %v404, %v441
        %v443 = vlaneseq
        %v444 = vshrl.u32 %v443, 7
        %v445 = vsub.s32 1, %v444
        %v446 = vrot.slane %v404, %v445
        %v459 = vunpack.c.l.b16 %v381
        %v460 = vunpack.c.l.b16 %v382
        %v461 = vpack.c.b16 %v460, %v459
        %v482 = vunpack.c.l.b16 %v383
        %v483 = vunpack.c.h.b16 %v383
        %v484 = vunpack.c.l.b16 %v384
        %v485 = vunpack.c.h.b16 %v384
        %v486 = vunpack.c.l.b16 %v385
        %v487 = vunpack.c.h.b16 %v385
        %v488 = vunpack.c.l.b16 %v386
        %v489 = vunpack.c.h.b16 %v386
        %v490 = vunpack.c.l.b16 %v387
        %v491 = vunpack.c.h.b16 %v387
        %v492 = vunpack.c.l.b16 %v388
        %v493 = vunpack.c.h.b16 %v388
        %v494 = vunpack.c.l.b16 %v389
        %v495 = vunpack.c.h.b16 %v389
        %v496 = vunpack.c.l.b16 %v390
        %v497 = vunpack.c.h.b16 %v390
        %v498 = vunpack.c.l.b16 %v391
        %v499 = vunpack.c.h.b16 %v391
        %v500 = vunpack.c.l.b16 %v392
        %v501 = vunpack.c.h.b16 %v392
        %v502 = vunpack.c.l.b16 %v393
        %v503 = vunpack.c.h.b16 %v393
        %v504 = vunpack.c.l.b16 %v394
        %v505 = vunpack.c.h.b16 %v394
        %v506 = vunpack.c.l.b16 %v395
        %v507 = vunpack.c.h.b16 %v395
        %v508 = vunpack.c.l.b16 %v396
        %v509 = vunpack.c.h.b16 %v396
        %v510 = vunpack.c.l.b16 %v397
        %v511 = vunpack.c.h.b16 %v397
        %v512 = vunpack.c.l.b16 %v398
        %v513 = vunpack.c.h.b16 %v398
        %v514 = vunpack.c.l.b16 %v399
        %v515 = vunpack.c.h.b16 %v399
        %v516 = vunpack.c.l.b16 %v400
        %v517 = vunpack.c.h.b16 %v400
        %v518 = vunpack.c.l.b16 %v401
        %v519 = vunpack.c.h.b16 %v401
        %v520 = vunpack.c.l.b16 %v402
        %v521 = vunpack.c.h.b16 %v402
        %v522 = vpack.c.b16 %v492, %v482
        %v523 = vpack.c.b16 %v493, %v483
        %v524 = vpack.c.b16 %v494, %v484
        %v525 = vpack.c.b16 %v495, %v485
        %v526 = vpack.c.b16 %v496, %v486
        %v527 = vpack.c.b16 %v497, %v487
        %v528 = vpack.c.b16 %v498, %v488
        %v529 = vpack.c.b16 %v499, %v489
        %v530 = vpack.c.b16 %v500, %v490
        %v531 = vpack.c.b16 %v501, %v491
        %v532 = vpack.c.b16 %v512, %v502
        %v533 = vpack.c.b16 %v513, %v503
        %v534 = vpack.c.b16 %v514, %v504
        %v535 = vpack.c.b16 %v515, %v505
        %v536 = vpack.c.b16 %v516, %v506
        %v537 = vpack.c.b16 %v517, %v507
        %v538 = vpack.c.b16 %v518, %v508
        %v539 = vpack.c.b16 %v519, %v509
        %v540 = vpack.c.b16 %v520, %v510
        %v541 = vpack.c.b16 %v521, %v511
        %vm562 = vcmask 261120
        %v564 = vsel %vm562, %v461, 0
        %566 = vmatprep.subr.bf16.mxu0 0
        %567 = vmatpush1.bf16.msra.mxu0 0
        %568 = vmatprep.subr.bf16.mxu0 0
        %569 = vmatpush1.bf16.msra.mxu0 0
        %570 = vmatprep.subr.bf16.mxu0 0
        %571 = vmatpush1.bf16.msra.mxu0 0
        %572 = vmatprep.subr.bf16.mxu0 0
        %573 = vmatpush1.bf16.msra.mxu0 0
        %574 = vmatprep.subr.bf16.mxu0 0
        %575 = vmatpush1.bf16.msra.mxu0 0
        %576 = vmatprep.subr.bf16.mxu0 0
        %577 = vmatpush1.bf16.msra.mxu0 0
        %578 = vmatprep.subr.bf16.mxu0 %v533
        %579 = vmatpush1.bf16.msra.mxu0 %v532
        %580 = vmatprep.subr.bf16.mxu0 %v523
        %581 = vmatpush1.bf16.msra.mxu0 %v522
        %582 = vmatprep.subr.bf16.mxu0 0
        %583 = vmatpush2.bf16.msra.mxu0 0
        %584 = vmatprep.subr.bf16.mxu0 0
        %585 = vmatpush2.bf16.msra.mxu0 0
        %586 = vmatprep.subr.bf16.mxu0 0
        %587 = vmatpush2.bf16.msra.mxu0 0
        %588 = vmatprep.subr.bf16.mxu0 0
        %589 = vmatpush2.bf16.msra.mxu0 0
        %590 = vmatprep.subr.bf16.mxu0 0
        %591 = vmatpush2.bf16.msra.mxu0 0
        %592 = vmatprep.subr.bf16.mxu0 0
        %593 = vmatpush2.bf16.msra.mxu0 0
        %594 = vmatprep.subr.bf16.mxu0 0
        %595 = vmatpush2.bf16.msra.mxu0 0
        %596 = vmatprep.subr.bf16.mxu0 0
        %597 = vmatpush2.bf16.msra.mxu0 0
        %598 = vmatprep.mubr.bf16.mxu0 0
        %599 = vmatmul.mubr.bf16.gmra.mxu0 %v564
        %v600 = vpop.f32.mrf.mxu0
        %v601 = vadd.f32 %v410, %v600
        %v602 = vpop.f32.mrf.mxu0
        %v603 = vadd.f32 %v414, %v602
        %v604 = vpop.f32.mrf.mxu0
        %v605 = vadd.f32 %v410, %v604
        %v606 = vpop.f32.mrf.mxu0
        %v607 = vadd.f32 %v414, %v606
        %608 = vdwg.mxu0
        %609 = vmatprep.subr.bf16.mxu0 0
        %610 = vmatpush1.bf16.msra.mxu0 0
        %611 = vmatprep.subr.bf16.mxu0 0
        %612 = vmatpush1.bf16.msra.mxu0 0
        %613 = vmatprep.subr.bf16.mxu0 0
        %614 = vmatpush1.bf16.msra.mxu0 0
        %615 = vmatprep.subr.bf16.mxu0 0
        %616 = vmatpush1.bf16.msra.mxu0 0
        %617 = vmatprep.subr.bf16.mxu0 0
        %618 = vmatpush1.bf16.msra.mxu0 0
        %619 = vmatprep.subr.bf16.mxu0 0
        %620 = vmatpush1.bf16.msra.mxu0 0
        %621 = vmatprep.subr.bf16.mxu0 %v535
        %622 = vmatpush1.bf16.msra.mxu0 %v534
        %623 = vmatprep.subr.bf16.mxu0 %v525
        %624 = vmatpush1.bf16.msra.mxu0 %v524
        %625 = vmatprep.subr.bf16.mxu0 0
        %626 = vmatpush2.bf16.msra.mxu0 0
        %627 = vmatprep.subr.bf16.mxu0 0
        %628 = vmatpush2.bf16.msra.mxu0 0
        %629 = vmatprep.subr.bf16.mxu0 0
        %630 = vmatpush2.bf16.msra.mxu0 0
        %631 = vmatprep.subr.bf16.mxu0 0
        %632 = vmatpush2.bf16.msra.mxu0 0
        %633 = vmatprep.subr.bf16.mxu0 0
        %634 = vmatpush2.bf16.msra.mxu0 0
        %635 = vmatprep.subr.bf16.mxu0 0
        %636 = vmatpush2.bf16.msra.mxu0 0
        %637 = vmatprep.subr.bf16.mxu0 0
        %638 = vmatpush2.bf16.msra.mxu0 0
        %639 = vmatprep.subr.bf16.mxu0 0
        %640 = vmatpush2.bf16.msra.mxu0 0
        %641 = vmatprep.mubr.bf16.mxu0 0
        %642 = vmatmul.mubr.bf16.gmra.mxu0 %v564
        %v643 = vpop.f32.mrf.mxu0
        %v644 = vadd.f32 %v418, %v643
        %v645 = vpop.f32.mrf.mxu0
        %v646 = vadd.f32 %v422, %v645
        %v647 = vpop.f32.mrf.mxu0
        %v648 = vadd.f32 %v418, %v647
        %v649 = vpop.f32.mrf.mxu0
        %v650 = vadd.f32 %v422, %v649
        %651 = vdwg.mxu0
        %652 = vmatprep.subr.bf16.mxu0 0
        %653 = vmatpush1.bf16.msra.mxu0 0
        %654 = vmatprep.subr.bf16.mxu0 0
        %655 = vmatpush1.bf16.msra.mxu0 0
        %656 = vmatprep.subr.bf16.mxu0 0
        %657 = vmatpush1.bf16.msra.mxu0 0
        %658 = vmatprep.subr.bf16.mxu0 0
        %659 = vmatpush1.bf16.msra.mxu0 0
        %660 = vmatprep.subr.bf16.mxu0 0
        %661 = vmatpush1.bf16.msra.mxu0 0
        %662 = vmatprep.subr.bf16.mxu0 0
        %663 = vmatpush1.bf16.msra.mxu0 0
        %664 = vmatprep.subr.bf16.mxu0 %v537
        %665 = vmatpush1.bf16.msra.mxu0 %v536
        %666 = vmatprep.subr.bf16.mxu0 %v527
        %667 = vmatpush1.bf16.msra.mxu0 %v526
        %668 = vmatprep.subr.bf16.mxu0 0
        %669 = vmatpush2.bf16.msra.mxu0 0
        %670 = vmatprep.subr.bf16.mxu0 0
        %671 = vmatpush2.bf16.msra.mxu0 0
        %672 = vmatprep.subr.bf16.mxu0 0
        %673 = vmatpush2.bf16.msra.mxu0 0
        %674 = vmatprep.subr.bf16.mxu0 0
        %675 = vmatpush2.bf16.msra.mxu0 0
        %676 = vmatprep.subr.bf16.mxu0 0
        %677 = vmatpush2.bf16.msra.mxu0 0
        %678 = vmatprep.subr.bf16.mxu0 0
        %679 = vmatpush2.bf16.msra.mxu0 0
        %680 = vmatprep.subr.bf16.mxu0 0
        %681 = vmatpush2.bf16.msra.mxu0 0
        %682 = vmatprep.subr.bf16.mxu0 0
        %683 = vmatpush2.bf16.msra.mxu0 0
        %684 = vmatprep.mubr.bf16.mxu0 0
        %685 = vmatmul.mubr.bf16.gmra.mxu0 %v564
        %v686 = vpop.f32.mrf.mxu0
        %v687 = vadd.f32 %v426, %v686
        %v688 = vpop.f32.mrf.mxu0
        %v689 = vadd.f32 %v430, %v688
        %v690 = vpop.f32.mrf.mxu0
        %v691 = vadd.f32 %v426, %v690
        %v692 = vpop.f32.mrf.mxu0
        %v693 = vadd.f32 %v430, %v692
        %694 = vdwg.mxu0
        %695 = vmatprep.subr.bf16.mxu0 0
        %696 = vmatpush1.bf16.msra.mxu0 0
        %697 = vmatprep.subr.bf16.mxu0 0
        %698 = vmatpush1.bf16.msra.mxu0 0
        %699 = vmatprep.subr.bf16.mxu0 0
        %700 = vmatpush1.bf16.msra.mxu0 0
        %701 = vmatprep.subr.bf16.mxu0 0
        %702 = vmatpush1.bf16.msra.mxu0 0
        %703 = vmatprep.subr.bf16.mxu0 0
        %704 = vmatpush1.bf16.msra.mxu0 0
        %705 = vmatprep.subr.bf16.mxu0 0
        %706 = vmatpush1.bf16.msra.mxu0 0
        %707 = vmatprep.subr.bf16.mxu0 %v539
        %708 = vmatpush1.bf16.msra.mxu0 %v538
        %709 = vmatprep.subr.bf16.mxu0 %v529
        %710 = vmatpush1.bf16.msra.mxu0 %v528
        %711 = vmatprep.subr.bf16.mxu0 0
        %712 = vmatpush2.bf16.msra.mxu0 0
        %713 = vmatprep.subr.bf16.mxu0 0
        %714 = vmatpush2.bf16.msra.mxu0 0
        %715 = vmatprep.subr.bf16.mxu0 0
        %716 = vmatpush2.bf16.msra.mxu0 0
        %717 = vmatprep.subr.bf16.mxu0 0
        %718 = vmatpush2.bf16.msra.mxu0 0
        %719 = vmatprep.subr.bf16.mxu0 0
        %720 = vmatpush2.bf16.msra.mxu0 0
        %721 = vmatprep.subr.bf16.mxu0 0
        %722 = vmatpush2.bf16.msra.mxu0 0
        %723 = vmatprep.subr.bf16.mxu0 0
        %724 = vmatpush2.bf16.msra.mxu0 0
        %725 = vmatprep.subr.bf16.mxu0 0
        %726 = vmatpush2.bf16.msra.mxu0 0
        %727 = vmatprep.mubr.bf16.mxu0 0
        %728 = vmatmul.mubr.bf16.gmra.mxu0 %v564
        %v729 = vpop.f32.mrf.mxu0
        %v730 = vadd.f32 %v434, %v729
        %v731 = vpop.f32.mrf.mxu0
        %v732 = vadd.f32 %v438, %v731
        %v733 = vpop.f32.mrf.mxu0
        %v734 = vadd.f32 %v434, %v733
        %v735 = vpop.f32.mrf.mxu0
        %v736 = vadd.f32 %v438, %v735
        %737 = vdwg.mxu0
        %738 = vmatprep.subr.bf16.mxu0 0
        %739 = vmatpush1.bf16.msra.mxu0 0
        %740 = vmatprep.subr.bf16.mxu0 0
        %741 = vmatpush1.bf16.msra.mxu0 0
        %742 = vmatprep.subr.bf16.mxu0 0
        %743 = vmatpush1.bf16.msra.mxu0 0
        %744 = vmatprep.subr.bf16.mxu0 0
        %745 = vmatpush1.bf16.msra.mxu0 0
        %746 = vmatprep.subr.bf16.mxu0 0
        %747 = vmatpush1.bf16.msra.mxu0 0
        %748 = vmatprep.subr.bf16.mxu0 0
        %749 = vmatpush1.bf16.msra.mxu0 0
        %750 = vmatprep.subr.bf16.mxu0 %v541
        %751 = vmatpush1.bf16.msra.mxu0 %v540
        %752 = vmatprep.subr.bf16.mxu0 %v531
        %753 = vmatpush1.bf16.msra.mxu0 %v530
        %754 = vmatprep.subr.bf16.mxu0 0
        %755 = vmatpush2.bf16.msra.mxu0 0
        %756 = vmatprep.subr.bf16.mxu0 0
        %757 = vmatpush2.bf16.msra.mxu0 0
        %758 = vmatprep.subr.bf16.mxu0 0
        %759 = vmatpush2.bf16.msra.mxu0 0
        %760 = vmatprep.subr.bf16.mxu0 0
        %761 = vmatpush2.bf16.msra.mxu0 0
        %762 = vmatprep.subr.bf16.mxu0 0
        %763 = vmatpush2.bf16.msra.mxu0 0
        %764 = vmatprep.subr.bf16.mxu0 0
        %765 = vmatpush2.bf16.msra.mxu0 0
        %766 = vmatprep.subr.bf16.mxu0 0
        %767 = vmatpush2.bf16.msra.mxu0 0
        %768 = vmatprep.subr.bf16.mxu0 0
        %769 = vmatpush2.bf16.msra.mxu0 0
        %770 = vmatprep.mubr.bf16.mxu0 0
        %771 = vmatmul.mubr.bf16.gmra.mxu0 %v564
        %v772 = vpop.f32.mrf.mxu0
        %v773 = vadd.f32 %v442, %v772
        %v774 = vpop.f32.mrf.mxu0
        %v775 = vadd.f32 %v446, %v774
        %v776 = vpop.f32.mrf.mxu0
        %v777 = vadd.f32 %v442, %v776
        %v778 = vpop.f32.mrf.mxu0
        %v779 = vadd.f32 %v446, %v778
        %780 = vdwg.mxu0
        %v781 = vxor.u32 %v601, 2147483648
        %v782 = vxor.u32 %v603, 2147483648
        %v783 = vxor.u32 %v644, 2147483648
        %v784 = vxor.u32 %v646, 2147483648
        %v785 = vxor.u32 %v687, 2147483648
        %v786 = vxor.u32 %v689, 2147483648
        %v787 = vxor.u32 %v730, 2147483648
        %v788 = vxor.u32 %v732, 2147483648
        %v789 = vxor.u32 %v773, 2147483648
        %v790 = vxor.u32 %v775, 2147483648
        %v791 = vxor.u32 %v605, 2147483648
        %v792 = vxor.u32 %v607, 2147483648
        %v793 = vxor.u32 %v648, 2147483648
        %v794 = vxor.u32 %v650, 2147483648
        %v795 = vxor.u32 %v691, 2147483648
        %v796 = vxor.u32 %v693, 2147483648
        %v797 = vxor.u32 %v734, 2147483648
        %v798 = vxor.u32 %v736, 2147483648
        %v799 = vxor.u32 %v777, 2147483648
        %v800 = vxor.u32 %v779, 2147483648
        %v801 = vmul.f32 %v781, 1.442695
        %v802 = vpow.pop %v801
        %v803 = vmul.f32 %v782, 1.442695
        %v804 = vpow.pop %v803
        %v805 = vmul.f32 %v783, 1.442695
        %v806 = vpow.pop %v805
        %v807 = vmul.f32 %v784, 1.442695
        %v808 = vpow.pop %v807
        %v809 = vmul.f32 %v785, 1.442695
        %v810 = vpow.pop %v809
        %v811 = vmul.f32 %v786, 1.442695
        %v812 = vpow.pop %v811
        %v813 = vmul.f32 %v787, 1.442695
        %v814 = vpow.pop %v813
        %v815 = vmul.f32 %v788, 1.442695
        %v816 = vpow.pop %v815
        %v817 = vmul.f32 %v789, 1.442695
        %v818 = vpow.pop %v817
        %v819 = vmul.f32 %v790, 1.442695
        %v820 = vpow.pop %v819
        %v821 = vmul.f32 %v791, 1.442695
        %v822 = vpow.pop %v821
        %v823 = vmul.f32 %v792, 1.442695
        %v824 = vpow.pop %v823
        %v825 = vmul.f32 %v793, 1.442695
        %v826 = vpow.pop %v825
        %v827 = vmul.f32 %v794, 1.442695
        %v828 = vpow.pop %v827
        %v829 = vmul.f32 %v795, 1.442695
        %v830 = vpow.pop %v829
        %v831 = vmul.f32 %v796, 1.442695
        %v832 = vpow.pop %v831
        %v833 = vmul.f32 %v797, 1.442695
        %v834 = vpow.pop %v833
        %v835 = vmul.f32 %v798, 1.442695
        %v836 = vpow.pop %v835
        %v837 = vmul.f32 %v799, 1.442695
        %v838 = vpow.pop %v837
        %v839 = vmul.f32 %v800, 1.442695
        %v840 = vpow.pop %v839
        %v841 = vadd.f32 %v802, 1.0
        %v842 = vadd.f32 %v804, 1.0
        %v843 = vadd.f32 %v806, 1.0
        %v844 = vadd.f32 %v808, 1.0
        %v845 = vadd.f32 %v810, 1.0
        %v846 = vadd.f32 %v812, 1.0
        %v847 = vadd.f32 %v814, 1.0
        %v848 = vadd.f32 %v816, 1.0
        %v849 = vadd.f32 %v818, 1.0
        %v850 = vadd.f32 %v820, 1.0
        %v851 = vadd.f32 %v822, 1.0
        %v852 = vadd.f32 %v824, 1.0
        %v853 = vadd.f32 %v826, 1.0
        %v854 = vadd.f32 %v828, 1.0
        %v855 = vadd.f32 %v830, 1.0
        %v856 = vadd.f32 %v832, 1.0
        %v857 = vadd.f32 %v834, 1.0
        %v858 = vadd.f32 %v836, 1.0
        %v859 = vadd.f32 %v838, 1.0
        %v860 = vadd.f32 %v840, 1.0
        %v861 = vrcp.pop %v841
        %v862 = vmul.f32 1.0, %v861
        %v863 = vrcp.pop %v842
        %v864 = vmul.f32 1.0, %v863
        %v865 = vrcp.pop %v843
        %v866 = vmul.f32 1.0, %v865
        %v867 = vrcp.pop %v844
        %v868 = vmul.f32 1.0, %v867
        %v869 = vrcp.pop %v845
        %v870 = vmul.f32 1.0, %v869
        %v871 = vrcp.pop %v846
        %v872 = vmul.f32 1.0, %v871
        %v873 = vrcp.pop %v847
        %v874 = vmul.f32 1.0, %v873
        %v875 = vrcp.pop %v848
        %v876 = vmul.f32 1.0, %v875
        %v877 = vrcp.pop %v849
        %v878 = vmul.f32 1.0, %v877
        %v879 = vrcp.pop %v850
        %v880 = vmul.f32 1.0, %v879
        %v881 = vrcp.pop %v851
        %v882 = vmul.f32 1.0, %v881
        %v883 = vrcp.pop %v852
        %v884 = vmul.f32 1.0, %v883
        %v885 = vrcp.pop %v853
        %v886 = vmul.f32 1.0, %v885
        %v887 = vrcp.pop %v854
        %v888 = vmul.f32 1.0, %v887
        %v889 = vrcp.pop %v855
        %v890 = vmul.f32 1.0, %v889
        %v891 = vrcp.pop %v856
        %v892 = vmul.f32 1.0, %v891
        %v893 = vrcp.pop %v857
        %v894 = vmul.f32 1.0, %v893
        %v895 = vrcp.pop %v858
        %v896 = vmul.f32 1.0, %v895
        %v897 = vrcp.pop %v859
        %v898 = vmul.f32 1.0, %v897
        %v899 = vrcp.pop %v860
        %v900 = vmul.f32 1.0, %v899
        %v901 = vmul.f32 %v601, %v862
        %v902 = vmul.f32 %v603, %v864
        %v903 = vmul.f32 %v644, %v866
        %v904 = vmul.f32 %v646, %v868
        %v905 = vmul.f32 %v687, %v870
        %v906 = vmul.f32 %v689, %v872
        %v907 = vmul.f32 %v730, %v874
        %v908 = vmul.f32 %v732, %v876
        %v909 = vmul.f32 %v773, %v878
        %v910 = vmul.f32 %v775, %v880
        %v911 = vmul.f32 %v605, %v882
        %v912 = vmul.f32 %v607, %v884
        %v913 = vmul.f32 %v648, %v886
        %v914 = vmul.f32 %v650, %v888
        %v915 = vmul.f32 %v691, %v890
        %v916 = vmul.f32 %v693, %v892
        %v917 = vmul.f32 %v734, %v894
        %v918 = vmul.f32 %v736, %v896
        %v919 = vmul.f32 %v777, %v898
        %v920 = vmul.f32 %v779, %v900
        %v921 = vpack.c.bf16 %v911, %v901
        %v922 = vpack.c.bf16 %v912, %v902
        %v923 = vpack.c.bf16 %v913, %v903
        %v924 = vpack.c.bf16 %v914, %v904
        %v925 = vpack.c.bf16 %v915, %v905
        %v926 = vpack.c.bf16 %v916, %v906
        %v927 = vpack.c.bf16 %v917, %v907
        %v928 = vpack.c.bf16 %v918, %v908
        %v929 = vpack.c.bf16 %v919, %v909
        %v930 = vpack.c.bf16 %v920, %v910
        %v931 = vld [vmem:[#allocation8] sm:$0xff]
        %v932 = vld [vmem:[#allocation8 + $0x8] sm:$0xff]
        %v933 = vld [vmem:[#allocation8 + $0x10] sm:$0xff]
        %v934 = vld [vmem:[#allocation8 + $0x18] sm:$0xff]
        %v935 = vld [vmem:[#allocation8 + $0x20] sm:$0xff]
        %v936 = vld [vmem:[#allocation8 + $0x28] sm:$0xff]
        %v937 = vld [vmem:[#allocation8 + $0x30] sm:$0xff]
        %v938 = vld [vmem:[#allocation8 + $0x38] sm:$0xff]
        %v939 = vld [vmem:[#allocation8 + $0x40] sm:$0xff]
        %v940 = vld [vmem:[#allocation8 + $0x48] sm:$0xff]
        %v941 = vld [vmem:[#allocation8 + $0x50] sm:$0xff]
        %v942 = vld [vmem:[#allocation8 + $0x58] sm:$0xff]
        %v943 = vld [vmem:[#allocation8 + $0x60] sm:$0xff]
        %v944 = vld [vmem:[#allocation8 + $0x68] sm:$0xff]
        %v945 = vld [vmem:[#allocation8 + $0x70] sm:$0xff]
        %v946 = vld [vmem:[#allocation8 + $0x78] sm:$0xff]
        %v947 = vld [vmem:[#allocation8 + $0x80] sm:$0xff]
        %v948 = vld [vmem:[#allocation8 + $0x88] sm:$0xff]
        %v949 = vld [vmem:[#allocation8 + $0x90] sm:$0xff]
        %v950 = vld [vmem:[#allocation8 + $0x98] sm:$0xff]
        %v951 = vld [vmem:[#allocation8 + $0xa0] sm:$0xff]
        %v952 = vld [vmem:[#allocation8 + $0xa8] sm:$0xff]
        %v953 = vld [vmem:[#allocation8 + $0xb0] sm:$0xff]
        %v954 = vld [vmem:[#allocation8 + $0xb8] sm:$0xff]
        %v955 = vld [vmem:[#allocation8 + $0xc0] sm:$0xff]
        %v956 = vld [vmem:[#allocation8 + $0xc8] sm:$0xff]
        %v957 = vld [vmem:[#allocation8 + $0xd0] sm:$0xff]
        %v958 = vld [vmem:[#allocation8 + $0xd8] sm:$0xff]
        %v959 = vld [vmem:[#allocation8 + $0xe0] sm:$0xff]
        %v960 = vld [vmem:[#allocation8 + $0xe8] sm:$0xff]
        %v961 = vld [vmem:[#allocation8 + $0xf0] sm:$0xff]
        %v962 = vld [vmem:[#allocation8 + $0xf8] sm:$0xff]
        %v963 = vld [vmem:[#allocation8 + $0x100] sm:$0xff]
        %v964 = vld [vmem:[#allocation8 + $0x108] sm:$0xff]
        %v965 = vld [vmem:[#allocation8 + $0x110] sm:$0xff]
        %v966 = vld [vmem:[#allocation8 + $0x118] sm:$0xff]
        %v967 = vld [vmem:[#allocation8 + $0x120] sm:$0xff]
        %v968 = vld [vmem:[#allocation8 + $0x128] sm:$0xff]
        %v969 = vld [vmem:[#allocation8 + $0x130] sm:$0xff]
        %v970 = vld [vmem:[#allocation8 + $0x138] sm:$0xff]
        %v971 = vld [vmem:[#allocation8 + $0x140] sm:$0xff]
        %v972 = vld [vmem:[#allocation8 + $0x148] sm:$0xff]
        %v973 = vld [vmem:[#allocation8 + $0x150] sm:$0xff]
        %v974 = vld [vmem:[#allocation8 + $0x158] sm:$0xff]
        %v975 = vld [vmem:[#allocation8 + $0x160] sm:$0xff]
        %v976 = vld [vmem:[#allocation8 + $0x168] sm:$0xff]
        %v977 = vld [vmem:[#allocation8 + $0x170] sm:$0xff]
        %v978 = vld [vmem:[#allocation8 + $0x178] sm:$0xff]
        %v979 = vld [vmem:[#allocation8 + $0x180] sm:$0xff]
        %v980 = vld [vmem:[#allocation8 + $0x188] sm:$0xff]
        %v981 = vld [vmem:[#allocation8 + $0x190] sm:$0xff]
        %v982 = vld [vmem:[#allocation8 + $0x198] sm:$0xff]
        %v983 = vld [vmem:[#allocation8 + $0x1a0] sm:$0xff]
        %v984 = vld [vmem:[#allocation8 + $0x1a8] sm:$0xff]
        %v985 = vld [vmem:[#allocation8 + $0x1b0] sm:$0xff]
        %v986 = vld [vmem:[#allocation8 + $0x1b8] sm:$0xff]
        %v987 = vld [vmem:[#allocation8 + $0x1c0] sm:$0xff]
        %v988 = vld [vmem:[#allocation8 + $0x1c8] sm:$0xff]
        %v989 = vld [vmem:[#allocation8 + $0x1d0] sm:$0xff]
        %v990 = vld [vmem:[#allocation8 + $0x1d8] sm:$0xff]
        %v991 = vld [vmem:[#allocation8 + $0x1e0] sm:$0xff]
        %v992 = vld [vmem:[#allocation8 + $0x1e8] sm:$0xff]
        %v993 = vld [vmem:[#allocation8 + $0x1f0] sm:$0xff]
        %v994 = vld [vmem:[#allocation8 + $0x1f8] sm:$0xff]
        %v995 = vld [vmem:[#allocation8 + $0x200] sm:$0xff]
        %v996 = vld [vmem:[#allocation8 + $0x208] sm:$0xff]
        %v997 = vld [vmem:[#allocation8 + $0x210] sm:$0xff]
        %v998 = vld [vmem:[#allocation8 + $0x218] sm:$0xff]
        %v999 = vld [vmem:[#allocation8 + $0x220] sm:$0xff]
        %v1000 = vld [vmem:[#allocation8 + $0x228] sm:$0xff]
        %v1001 = vld [vmem:[#allocation8 + $0x230] sm:$0xff]
        %v1002 = vld [vmem:[#allocation8 + $0x238] sm:$0xff]
        %v1003 = vld [vmem:[#allocation8 + $0x240] sm:$0xff]
        %v1004 = vld [vmem:[#allocation8 + $0x248] sm:$0xff]
        %v1005 = vld [vmem:[#allocation8 + $0x250] sm:$0xff]
        %v1006 = vld [vmem:[#allocation8 + $0x258] sm:$0xff]
        %v1007 = vld [vmem:[#allocation8 + $0x260] sm:$0xff]
        %v1008 = vld [vmem:[#allocation8 + $0x268] sm:$0xff]
        %v1009 = vld [vmem:[#allocation8 + $0x270] sm:$0xff]
        %v1010 = vld [vmem:[#allocation8 + $0x278] sm:$0xff]
        %v1011 = vld [vmem:[#allocation8 + $0x280] sm:$0xff]
        %v1012 = vld [vmem:[#allocation8 + $0x288] sm:$0xff]
        %v1013 = vld [vmem:[#allocation8 + $0x290] sm:$0xff]
        %v1014 = vld [vmem:[#allocation8 + $0x298] sm:$0xff]
        %v1015 = vld [vmem:[#allocation8 + $0x2a0] sm:$0xff]
        %v1016 = vld [vmem:[#allocation8 + $0x2a8] sm:$0xff]
        %v1017 = vld [vmem:[#allocation8 + $0x2b0] sm:$0xff]
        %v1018 = vld [vmem:[#allocation8 + $0x2b8] sm:$0xff]
        %v1019 = vld [vmem:[#allocation8 + $0x2c0] sm:$0xff]
        %v1020 = vld [vmem:[#allocation8 + $0x2c8] sm:$0xff]
        %v1021 = vld [vmem:[#allocation8 + $0x2d0] sm:$0xff]
        %v1022 = vld [vmem:[#allocation8 + $0x2d8] sm:$0xff]
        %v1023 = vld [vmem:[#allocation8 + $0x2e0] sm:$0xff]
        %v1024 = vld [vmem:[#allocation8 + $0x2e8] sm:$0xff]
        %v1025 = vld [vmem:[#allocation8 + $0x2f0] sm:$0xff]
        %v1026 = vld [vmem:[#allocation8 + $0x2f8] sm:$0xff]
        %v1027 = vld [vmem:[#allocation8 + $0x300] sm:$0xff]
        %v1028 = vld [vmem:[#allocation8 + $0x308] sm:$0xff]
        %v1029 = vld [vmem:[#allocation8 + $0x310] sm:$0xff]
        %v1030 = vld [vmem:[#allocation8 + $0x318] sm:$0xff]
        %v1031 = vld [vmem:[#allocation8 + $0x320] sm:$0xff]
        %v1032 = vld [vmem:[#allocation8 + $0x328] sm:$0xff]
        %v1033 = vld [vmem:[#allocation8 + $0x330] sm:$0xff]
        %v1034 = vld [vmem:[#allocation8 + $0x338] sm:$0xff]
        %v1035 = vld [vmem:[#allocation8 + $0x340] sm:$0xff]
        %v1036 = vld [vmem:[#allocation8 + $0x348] sm:$0xff]
        %v1037 = vld [vmem:[#allocation8 + $0x350] sm:$0xff]
        %v1038 = vld [vmem:[#allocation8 + $0x358] sm:$0xff]
        %v1039 = vld [vmem:[#allocation8 + $0x360] sm:$0xff]
        %v1040 = vld [vmem:[#allocation8 + $0x368] sm:$0xff]
        %v1041 = vld [vmem:[#allocation8 + $0x370] sm:$0xff]
        %v1042 = vld [vmem:[#allocation8 + $0x378] sm:$0xff]
        %v1043 = vld [vmem:[#allocation8 + $0x380] sm:$0xff]
        %v1044 = vld [vmem:[#allocation8 + $0x388] sm:$0xff]
        %v1045 = vld [vmem:[#allocation8 + $0x390] sm:$0xff]
        %v1046 = vld [vmem:[#allocation8 + $0x398] sm:$0xff]
        %v1047 = vld [vmem:[#allocation8 + $0x3a0] sm:$0xff]
        %v1048 = vld [vmem:[#allocation8 + $0x3a8] sm:$0xff]
        %v1049 = vld [vmem:[#allocation8 + $0x3b0] sm:$0xff]
        %v1050 = vld [vmem:[#allocation8 + $0x3b8] sm:$0xff]
        %v1051 = vld [vmem:[#allocation8 + $0x3c0] sm:$0xff]
        %v1052 = vld [vmem:[#allocation8 + $0x3c8] sm:$0xff]
        %v1053 = vld [vmem:[#allocation8 + $0x3d0] sm:$0xff]
        %v1054 = vld [vmem:[#allocation8 + $0x3d8] sm:$0xff]
        %v1055 = vld [vmem:[#allocation8 + $0x3e0] sm:$0xff]
        %v1056 = vld [vmem:[#allocation8 + $0x3e8] sm:$0xff]
        %v1057 = vld [vmem:[#allocation8 + $0x3f0] sm:$0xff]
        %v1058 = vld [vmem:[#allocation8 + $0x3f8] sm:$0xff]
        %v1059 = vld [vmem:[#allocation8 + $0x400] sm:$0xff]
        %v1060 = vld [vmem:[#allocation8 + $0x408] sm:$0xff]
        %v1061 = vld [vmem:[#allocation8 + $0x410] sm:$0xff]
        %v1062 = vld [vmem:[#allocation8 + $0x418] sm:$0xff]
        %v1063 = vld [vmem:[#allocation8 + $0x420] sm:$0xff]
        %v1064 = vld [vmem:[#allocation8 + $0x428] sm:$0xff]
        %v1065 = vld [vmem:[#allocation8 + $0x430] sm:$0xff]
        %v1066 = vld [vmem:[#allocation8 + $0x438] sm:$0xff]
        %v1067 = vld [vmem:[#allocation8 + $0x440] sm:$0xff]
        %v1068 = vld [vmem:[#allocation8 + $0x448] sm:$0xff]
        %v1069 = vld [vmem:[#allocation8 + $0x450] sm:$0xff]
        %v1070 = vld [vmem:[#allocation8 + $0x458] sm:$0xff]
        %v1071 = vld [vmem:[#allocation8 + $0x460] sm:$0xff]
        %v1072 = vld [vmem:[#allocation8 + $0x468] sm:$0xff]
        %v1073 = vld [vmem:[#allocation8 + $0x470] sm:$0xff]
        %v1074 = vld [vmem:[#allocation8 + $0x478] sm:$0xff]
        %v1075 = vld [vmem:[#allocation8 + $0x480] sm:$0xff]
        %v1076 = vld [vmem:[#allocation8 + $0x488] sm:$0xff]
        %v1077 = vld [vmem:[#allocation8 + $0x490] sm:$0xff]
        %v1078 = vld [vmem:[#allocation8 + $0x498] sm:$0xff]
        %v1079 = vld [vmem:[#allocation8 + $0x4a0] sm:$0xff]
        %v1080 = vld [vmem:[#allocation8 + $0x4a8] sm:$0xff]
        %v1081 = vld [vmem:[#allocation8 + $0x4b0] sm:$0xff]
        %v1082 = vld [vmem:[#allocation8 + $0x4b8] sm:$0xff]
        %v1083 = vld [vmem:[#allocation8 + $0x4c0] sm:$0xff]
        %v1084 = vld [vmem:[#allocation8 + $0x4c8] sm:$0xff]
        %v1085 = vld [vmem:[#allocation8 + $0x4d0] sm:$0xff]
        %v1086 = vld [vmem:[#allocation8 + $0x4d8] sm:$0xff]
        %v1087 = vld [vmem:[#allocation8 + $0x4e0] sm:$0xff]
        %v1088 = vld [vmem:[#allocation8 + $0x4e8] sm:$0xff]
        %v1089 = vld [vmem:[#allocation8 + $0x4f0] sm:$0xff]
        %v1090 = vld [vmem:[#allocation8 + $0x4f8] sm:$0xff]
        %v1091 = vld [vmem:[#allocation8 + $0x500] sm:$0xff]
        %v1092 = vld [vmem:[#allocation8 + $0x508] sm:$0xff]
        %v1093 = vld [vmem:[#allocation8 + $0x510] sm:$0xff]
        %v1094 = vld [vmem:[#allocation8 + $0x518] sm:$0xff]
        %v1095 = vld [vmem:[#allocation8 + $0x520] sm:$0xff]
        %v1096 = vld [vmem:[#allocation8 + $0x528] sm:$0xff]
        %v1097 = vld [vmem:[#allocation8 + $0x530] sm:$0xff]
        %v1098 = vld [vmem:[#allocation8 + $0x538] sm:$0xff]
        %v1099 = vld [vmem:[#allocation8 + $0x540] sm:$0xff]
        %v1100 = vld [vmem:[#allocation8 + $0x548] sm:$0xff]
        %v1101 = vld [vmem:[#allocation8 + $0x550] sm:$0xff]
        %v1102 = vld [vmem:[#allocation8 + $0x558] sm:$0xff]
        %v1103 = vld [vmem:[#allocation8 + $0x560] sm:$0xff]
        %v1104 = vld [vmem:[#allocation8 + $0x568] sm:$0xff]
        %v1105 = vld [vmem:[#allocation8 + $0x570] sm:$0xff]
        %v1106 = vld [vmem:[#allocation8 + $0x578] sm:$0xff]
        %v1107 = vld [vmem:[#allocation8 + $0x580] sm:$0xff]
        %v1108 = vld [vmem:[#allocation8 + $0x588] sm:$0xff]
        %v1109 = vld [vmem:[#allocation8 + $0x590] sm:$0xff]
        %v1110 = vld [vmem:[#allocation8 + $0x598] sm:$0xff]
        %v1111 = vld [vmem:[#allocation8 + $0x5a0] sm:$0xff]
        %v1112 = vld [vmem:[#allocation8 + $0x5a8] sm:$0xff]
        %v1113 = vld [vmem:[#allocation8 + $0x5b0] sm:$0xff]
        %v1114 = vld [vmem:[#allocation8 + $0x5b8] sm:$0xff]
        %v1115 = vld [vmem:[#allocation8 + $0x5c0] sm:$0xff]
        %v1116 = vld [vmem:[#allocation8 + $0x5c8] sm:$0xff]
        %v1117 = vld [vmem:[#allocation8 + $0x5d0] sm:$0xff]
        %v1118 = vld [vmem:[#allocation8 + $0x5d8] sm:$0xff]
        %v1119 = vld [vmem:[#allocation8 + $0x5e0] sm:$0xff]
        %v1120 = vld [vmem:[#allocation8 + $0x5e8] sm:$0xff]
        %v1121 = vld [vmem:[#allocation8 + $0x5f0] sm:$0xff]
        %v1122 = vld [vmem:[#allocation8 + $0x5f8] sm:$0xff]
        %v1123 = vld [vmem:[#allocation8 + $0x600] sm:$0xff]
        %v1124 = vld [vmem:[#allocation8 + $0x608] sm:$0xff]
        %v1125 = vld [vmem:[#allocation8 + $0x610] sm:$0xff]
        %v1126 = vld [vmem:[#allocation8 + $0x618] sm:$0xff]
        %v1127 = vld [vmem:[#allocation8 + $0x620] sm:$0xff]
        %v1128 = vld [vmem:[#allocation8 + $0x628] sm:$0xff]
        %v1129 = vld [vmem:[#allocation8 + $0x630] sm:$0xff]
        %v1130 = vld [vmem:[#allocation8 + $0x638] sm:$0xff]
        %v1131 = vld [vmem:[#allocation8 + $0x640] sm:$0xff]
        %v1132 = vld [vmem:[#allocation8 + $0x648] sm:$0xff]
        %v1133 = vld [vmem:[#allocation8 + $0x650] sm:$0xff]
        %v1134 = vld [vmem:[#allocation8 + $0x658] sm:$0xff]
        %v1135 = vld [vmem:[#allocation8 + $0x660] sm:$0xff]
        %v1136 = vld [vmem:[#allocation8 + $0x668] sm:$0xff]
        %v1137 = vld [vmem:[#allocation8 + $0x670] sm:$0xff]
        %v1138 = vld [vmem:[#allocation8 + $0x678] sm:$0xff]
        %v1139 = vld [vmem:[#allocation8 + $0x680] sm:$0xff]
        %v1140 = vld [vmem:[#allocation8 + $0x688] sm:$0xff]
        %v1141 = vld [vmem:[#allocation8 + $0x690] sm:$0xff]
        %v1142 = vld [vmem:[#allocation8 + $0x698] sm:$0xff]
        %v1143 = vld [vmem:[#allocation8 + $0x6a0] sm:$0xff]
        %v1144 = vld [vmem:[#allocation8 + $0x6a8] sm:$0xff]
        %v1145 = vld [vmem:[#allocation8 + $0x6b0] sm:$0xff]
        %v1146 = vld [vmem:[#allocation8 + $0x6b8] sm:$0xff]
        %v1147 = vld [vmem:[#allocation8 + $0x6c0] sm:$0xff]
        %v1148 = vld [vmem:[#allocation8 + $0x6c8] sm:$0xff]
        %v1149 = vld [vmem:[#allocation8 + $0x6d0] sm:$0xff]
        %v1150 = vld [vmem:[#allocation8 + $0x6d8] sm:$0xff]
        %v1151 = vld [vmem:[#allocation8 + $0x6e0] sm:$0xff]
        %v1152 = vld [vmem:[#allocation8 + $0x6e8] sm:$0xff]
        %v1153 = vld [vmem:[#allocation8 + $0x6f0] sm:$0xff]
        %v1154 = vld [vmem:[#allocation8 + $0x6f8] sm:$0xff]
        %v1155 = vld [vmem:[#allocation8 + $0x700] sm:$0xff]
        %v1156 = vld [vmem:[#allocation8 + $0x708] sm:$0xff]
        %v1157 = vld [vmem:[#allocation8 + $0x710] sm:$0xff]
        %v1158 = vld [vmem:[#allocation8 + $0x718] sm:$0xff]
        %v1159 = vld [vmem:[#allocation8 + $0x720] sm:$0xff]
        %v1160 = vld [vmem:[#allocation8 + $0x728] sm:$0xff]
        %v1161 = vld [vmem:[#allocation8 + $0x730] sm:$0xff]
        %v1162 = vld [vmem:[#allocation8 + $0x738] sm:$0xff]
        %v1163 = vld [vmem:[#allocation8 + $0x740] sm:$0xff]
        %v1164 = vld [vmem:[#allocation8 + $0x748] sm:$0xff]
        %v1165 = vld [vmem:[#allocation8 + $0x750] sm:$0xff]
        %v1166 = vld [vmem:[#allocation8 + $0x758] sm:$0xff]
        %v1167 = vld [vmem:[#allocation8 + $0x760] sm:$0xff]
        %v1168 = vld [vmem:[#allocation8 + $0x768] sm:$0xff]
        %v1169 = vld [vmem:[#allocation8 + $0x770] sm:$0xff]
        %v1170 = vld [vmem:[#allocation8 + $0x778] sm:$0xff]
        %v1171 = vld [vmem:[#allocation8 + $0x780] sm:$0xff]
        %v1172 = vld [vmem:[#allocation8 + $0x788] sm:$0xff]
        %v1173 = vld [vmem:[#allocation8 + $0x790] sm:$0xff]
        %v1174 = vld [vmem:[#allocation8 + $0x798] sm:$0xff]
        %v1175 = vld [vmem:[#allocation8 + $0x7a0] sm:$0xff]
        %v1176 = vld [vmem:[#allocation8 + $0x7a8] sm:$0xff]
        %v1177 = vld [vmem:[#allocation8 + $0x7b0] sm:$0xff]
        %v1178 = vld [vmem:[#allocation8 + $0x7b8] sm:$0xff]
        %v1179 = vld [vmem:[#allocation8 + $0x7c0] sm:$0xff]
        %v1180 = vld [vmem:[#allocation8 + $0x7c8] sm:$0xff]
        %v1181 = vld [vmem:[#allocation8 + $0x7d0] sm:$0xff]
        %v1182 = vld [vmem:[#allocation8 + $0x7d8] sm:$0xff]
        %v1183 = vld [vmem:[#allocation8 + $0x7e0] sm:$0xff]
        %v1184 = vld [vmem:[#allocation8 + $0x7e8] sm:$0xff]
        %v1185 = vld [vmem:[#allocation8 + $0x7f0] sm:$0xff]
        %v1186 = vld [vmem:[#allocation8 + $0x7f8] sm:$0xff]
        %v1187 = vld [vmem:[#allocation8 + $0x800] sm:$0xff]
        %v1188 = vld [vmem:[#allocation8 + $0x808] sm:$0xff]
        %v1189 = vld [vmem:[#allocation8 + $0x810] sm:$0xff]
        %v1190 = vld [vmem:[#allocation8 + $0x818] sm:$0xff]
        %v1191 = vld [vmem:[#allocation8 + $0x820] sm:$0xff]
        %v1192 = vld [vmem:[#allocation8 + $0x828] sm:$0xff]
        %v1193 = vld [vmem:[#allocation8 + $0x830] sm:$0xff]
        %v1194 = vld [vmem:[#allocation8 + $0x838] sm:$0xff]
        %v1195 = vld [vmem:[#allocation8 + $0x840] sm:$0xff]
        %v1196 = vld [vmem:[#allocation8 + $0x848] sm:$0xff]
        %v1197 = vld [vmem:[#allocation8 + $0x850] sm:$0xff]
        %v1198 = vld [vmem:[#allocation8 + $0x858] sm:$0xff]
        %v1199 = vld [vmem:[#allocation8 + $0x860] sm:$0xff]
        %v1200 = vld [vmem:[#allocation8 + $0x868] sm:$0xff]
        %v1201 = vld [vmem:[#allocation8 + $0x870] sm:$0xff]
        %v1202 = vld [vmem:[#allocation8 + $0x878] sm:$0xff]
        %v1203 = vld [vmem:[#allocation8 + $0x880] sm:$0xff]
        %v1204 = vld [vmem:[#allocation8 + $0x888] sm:$0xff]
        %v1205 = vld [vmem:[#allocation8 + $0x890] sm:$0xff]
        %v1206 = vld [vmem:[#allocation8 + $0x898] sm:$0xff]
        %v1207 = vld [vmem:[#allocation8 + $0x8a0] sm:$0xff]
        %v1208 = vld [vmem:[#allocation8 + $0x8a8] sm:$0xff]
        %v1209 = vld [vmem:[#allocation8 + $0x8b0] sm:$0xff]
        %v1210 = vld [vmem:[#allocation8 + $0x8b8] sm:$0xff]
        %v1211 = vld [vmem:[#allocation8 + $0x8c0] sm:$0xff]
        %v1212 = vld [vmem:[#allocation8 + $0x8c8] sm:$0xff]
        %v1213 = vld [vmem:[#allocation8 + $0x8d0] sm:$0xff]
        %v1214 = vld [vmem:[#allocation8 + $0x8d8] sm:$0xff]
        %v1215 = vld [vmem:[#allocation8 + $0x8e0] sm:$0xff]
        %v1216 = vld [vmem:[#allocation8 + $0x8e8] sm:$0xff]
        %v1217 = vld [vmem:[#allocation8 + $0x8f0] sm:$0xff]
        %v1218 = vld [vmem:[#allocation8 + $0x8f8] sm:$0xff]
        %v1219 = vld [vmem:[#allocation8 + $0x900] sm:$0xff]
        %v1220 = vld [vmem:[#allocation8 + $0x908] sm:$0xff]
        %v1221 = vld [vmem:[#allocation8 + $0x910] sm:$0xff]
        %v1222 = vld [vmem:[#allocation8 + $0x918] sm:$0xff]
        %v1223 = vld [vmem:[#allocation8 + $0x920] sm:$0xff]
        %v1224 = vld [vmem:[#allocation8 + $0x928] sm:$0xff]
        %v1225 = vld [vmem:[#allocation8 + $0x930] sm:$0xff]
        %v1226 = vld [vmem:[#allocation8 + $0x938] sm:$0xff]
        %v1227 = vld [vmem:[#allocation8 + $0x940] sm:$0xff]
        %v1228 = vld [vmem:[#allocation8 + $0x948] sm:$0xff]
        %v1229 = vld [vmem:[#allocation8 + $0x950] sm:$0xff]
        %v1230 = vld [vmem:[#allocation8 + $0x958] sm:$0xff]
        %v1231 = vld [vmem:[#allocation8 + $0x960] sm:$0xff]
        %v1232 = vld [vmem:[#allocation8 + $0x968] sm:$0xff]
        %v1233 = vld [vmem:[#allocation8 + $0x970] sm:$0xff]
        %v1234 = vld [vmem:[#allocation8 + $0x978] sm:$0xff]
        %v1235 = vld [vmem:[#allocation8 + $0x980] sm:$0xff]
        %v1236 = vld [vmem:[#allocation8 + $0x988] sm:$0xff]
        %v1237 = vld [vmem:[#allocation8 + $0x990] sm:$0xff]
        %v1238 = vld [vmem:[#allocation8 + $0x998] sm:$0xff]
        %v1239 = vld [vmem:[#allocation8 + $0x9a0] sm:$0xff]
        %v1240 = vld [vmem:[#allocation8 + $0x9a8] sm:$0xff]
        %v1241 = vld [vmem:[#allocation8 + $0x9b0] sm:$0xff]
        %v1242 = vld [vmem:[#allocation8 + $0x9b8] sm:$0xff]
        %v1243 = vld [vmem:[#allocation8 + $0x9c0] sm:$0xff]
        %v1244 = vld [vmem:[#allocation8 + $0x9c8] sm:$0xff]
        %v1245 = vld [vmem:[#allocation8 + $0x9d0] sm:$0xff]
        %v1246 = vld [vmem:[#allocation8 + $0x9d8] sm:$0xff]
        %v1247 = vld [vmem:[#allocation8 + $0x9e0] sm:$0xff]
        %v1248 = vld [vmem:[#allocation8 + $0x9e8] sm:$0xff]
        %v1249 = vld [vmem:[#allocation8 + $0x9f0] sm:$0xff]
        %v1250 = vld [vmem:[#allocation8 + $0x9f8] sm:$0xff]
        %v1251 = vld [vmem:[#allocation8 + $0xa00] sm:$0xff]
        %v1252 = vld [vmem:[#allocation8 + $0xa08] sm:$0xff]
        %v1253 = vld [vmem:[#allocation8 + $0xa10] sm:$0xff]
        %v1254 = vld [vmem:[#allocation8 + $0xa18] sm:$0xff]
        %v1255 = vld [vmem:[#allocation8 + $0xa20] sm:$0xff]
        %v1256 = vld [vmem:[#allocation8 + $0xa28] sm:$0xff]
        %v1257 = vld [vmem:[#allocation8 + $0xa30] sm:$0xff]
        %v1258 = vld [vmem:[#allocation8 + $0xa38] sm:$0xff]
        %v1259 = vld [vmem:[#allocation8 + $0xa40] sm:$0xff]
        %v1260 = vld [vmem:[#allocation8 + $0xa48] sm:$0xff]
        %v1261 = vld [vmem:[#allocation8 + $0xa50] sm:$0xff]
        %v1262 = vld [vmem:[#allocation8 + $0xa58] sm:$0xff]
        %v1263 = vld [vmem:[#allocation8 + $0xa60] sm:$0xff]
        %v1264 = vld [vmem:[#allocation8 + $0xa68] sm:$0xff]
        %v1265 = vld [vmem:[#allocation8 + $0xa70] sm:$0xff]
        %v1266 = vld [vmem:[#allocation8 + $0xa78] sm:$0xff]
        %v1267 = vld [vmem:[#allocation8 + $0xa80] sm:$0xff]
        %v1268 = vld [vmem:[#allocation8 + $0xa88] sm:$0xff]
        %v1269 = vld [vmem:[#allocation8 + $0xa90] sm:$0xff]
        %v1270 = vld [vmem:[#allocation8 + $0xa98] sm:$0xff]
        %v1271 = vld [vmem:[#allocation8 + $0xaa0] sm:$0xff]
        %v1272 = vld [vmem:[#allocation8 + $0xaa8] sm:$0xff]
        %v1273 = vld [vmem:[#allocation8 + $0xab0] sm:$0xff]
        %v1274 = vld [vmem:[#allocation8 + $0xab8] sm:$0xff]
        %v1275 = vld [vmem:[#allocation8 + $0xac0] sm:$0xff]
        %v1276 = vld [vmem:[#allocation8 + $0xac8] sm:$0xff]
        %v1277 = vld [vmem:[#allocation8 + $0xad0] sm:$0xff]
        %v1278 = vld [vmem:[#allocation8 + $0xad8] sm:$0xff]
        %v1279 = vld [vmem:[#allocation8 + $0xae0] sm:$0xff]
        %v1280 = vld [vmem:[#allocation8 + $0xae8] sm:$0xff]
        %v1281 = vld [vmem:[#allocation8 + $0xaf0] sm:$0xff]
        %v1282 = vld [vmem:[#allocation8 + $0xaf8] sm:$0xff]
        %v1283 = vld [vmem:[#allocation8 + $0xb00] sm:$0xff]
        %v1284 = vld [vmem:[#allocation8 + $0xb08] sm:$0xff]
        %v1285 = vld [vmem:[#allocation8 + $0xb10] sm:$0xff]
        %v1286 = vld [vmem:[#allocation8 + $0xb18] sm:$0xff]
        %v1287 = vld [vmem:[#allocation8 + $0xb20] sm:$0xff]
        %v1288 = vld [vmem:[#allocation8 + $0xb28] sm:$0xff]
        %v1289 = vld [vmem:[#allocation8 + $0xb30] sm:$0xff]
        %v1290 = vld [vmem:[#allocation8 + $0xb38] sm:$0xff]
        %v1291 = vld [vmem:[#allocation8 + $0xb40] sm:$0xff]
        %v1292 = vld [vmem:[#allocation8 + $0xb48] sm:$0xff]
        %v1293 = vld [vmem:[#allocation8 + $0xb50] sm:$0xff]
        %v1294 = vld [vmem:[#allocation8 + $0xb58] sm:$0xff]
        %v1295 = vld [vmem:[#allocation8 + $0xb60] sm:$0xff]
        %v1296 = vld [vmem:[#allocation8 + $0xb68] sm:$0xff]
        %v1297 = vld [vmem:[#allocation8 + $0xb70] sm:$0xff]
        %v1298 = vld [vmem:[#allocation8 + $0xb78] sm:$0xff]
        %v1299 = vld [vmem:[#allocation8 + $0xb80] sm:$0xff]
        %v1300 = vld [vmem:[#allocation8 + $0xb88] sm:$0xff]
        %v1301 = vld [vmem:[#allocation8 + $0xb90] sm:$0xff]
        %v1302 = vld [vmem:[#allocation8 + $0xb98] sm:$0xff]
        %v1303 = vld [vmem:[#allocation8 + $0xba0] sm:$0xff]
        %v1304 = vld [vmem:[#allocation8 + $0xba8] sm:$0xff]
        %v1305 = vld [vmem:[#allocation8 + $0xbb0] sm:$0xff]
        %v1306 = vld [vmem:[#allocation8 + $0xbb8] sm:$0xff]
        %v1307 = vld [vmem:[#allocation8 + $0xbc0] sm:$0xff]
        %v1308 = vld [vmem:[#allocation8 + $0xbc8] sm:$0xff]
        %v1309 = vld [vmem:[#allocation8 + $0xbd0] sm:$0xff]
        %v1310 = vld [vmem:[#allocation8 + $0xbd8] sm:$0xff]
        %v1311 = vld [vmem:[#allocation8 + $0xbe0] sm:$0xff]
        %v1312 = vld [vmem:[#allocation8 + $0xbe8] sm:$0xff]
        %v1313 = vld [vmem:[#allocation8 + $0xbf0] sm:$0xff]
        %v1314 = vld [vmem:[#allocation8 + $0xbf8] sm:$0xff]
        %v1315 = vld [vmem:[#allocation8 + $0xc00] sm:$0xff]
        %v1316 = vld [vmem:[#allocation8 + $0xc08] sm:$0xff]
        %v1317 = vld [vmem:[#allocation8 + $0xc10] sm:$0xff]
        %v1318 = vld [vmem:[#allocation8 + $0xc18] sm:$0xff]
        %v1319 = vld [vmem:[#allocation8 + $0xc20] sm:$0xff]
        %v1320 = vld [vmem:[#allocation8 + $0xc28] sm:$0xff]
        %v1321 = vld [vmem:[#allocation8 + $0xc30] sm:$0xff]
        %v1322 = vld [vmem:[#allocation8 + $0xc38] sm:$0xff]
        %v1323 = vld [vmem:[#allocation8 + $0xc40] sm:$0xff]
        %v1324 = vld [vmem:[#allocation8 + $0xc48] sm:$0xff]
        %v1325 = vld [vmem:[#allocation8 + $0xc50] sm:$0xff]
        %v1326 = vld [vmem:[#allocation8 + $0xc58] sm:$0xff]
        %v1327 = vld [vmem:[#allocation8 + $0xc60] sm:$0xff]
        %v1328 = vld [vmem:[#allocation8 + $0xc68] sm:$0xff]
        %v1329 = vld [vmem:[#allocation8 + $0xc70] sm:$0xff]
        %v1330 = vld [vmem:[#allocation8 + $0xc78] sm:$0xff]
        %v1331 = vld [vmem:[#allocation8 + $0xc80] sm:$0xff]
        %v1332 = vld [vmem:[#allocation8 + $0xc88] sm:$0xff]
        %v1333 = vld [vmem:[#allocation8 + $0xc90] sm:$0xff]
        %v1334 = vld [vmem:[#allocation8 + $0xc98] sm:$0xff]
        %v1335 = vld [vmem:[#allocation8 + $0xca0] sm:$0xff]
        %v1336 = vld [vmem:[#allocation8 + $0xca8] sm:$0xff]
        %v1337 = vld [vmem:[#allocation8 + $0xcb0] sm:$0xff]
        %v1338 = vld [vmem:[#allocation8 + $0xcb8] sm:$0xff]
        %v1339 = vld [vmem:[#allocation8 + $0xcc0] sm:$0xff]
        %v1340 = vld [vmem:[#allocation8 + $0xcc8] sm:$0xff]
        %v1341 = vld [vmem:[#allocation8 + $0xcd0] sm:$0xff]
        %v1342 = vld [vmem:[#allocation8 + $0xcd8] sm:$0xff]
        %v1343 = vld [vmem:[#allocation8 + $0xce0] sm:$0xff]
        %v1344 = vld [vmem:[#allocation8 + $0xce8] sm:$0xff]
        %v1345 = vld [vmem:[#allocation8 + $0xcf0] sm:$0xff]
        %v1346 = vld [vmem:[#allocation8 + $0xcf8] sm:$0xff]
        %v1347 = vld [vmem:[#allocation8 + $0xd00] sm:$0xff]
        %v1348 = vld [vmem:[#allocation8 + $0xd08] sm:$0xff]
        %v1349 = vld [vmem:[#allocation8 + $0xd10] sm:$0xff]
        %v1350 = vld [vmem:[#allocation8 + $0xd18] sm:$0xff]
        %v1351 = vld [vmem:[#allocation8 + $0xd20] sm:$0xff]
        %v1352 = vld [vmem:[#allocation8 + $0xd28] sm:$0xff]
        %v1353 = vld [vmem:[#allocation8 + $0xd30] sm:$0xff]
        %v1354 = vld [vmem:[#allocation8 + $0xd38] sm:$0xff]
        %v1355 = vld [vmem:[#allocation8 + $0xd40] sm:$0xff]
        %v1356 = vld [vmem:[#allocation8 + $0xd48] sm:$0xff]
        %v1357 = vld [vmem:[#allocation8 + $0xd50] sm:$0xff]
        %v1358 = vld [vmem:[#allocation8 + $0xd58] sm:$0xff]
        %v1359 = vld [vmem:[#allocation8 + $0xd60] sm:$0xff]
        %v1360 = vld [vmem:[#allocation8 + $0xd68] sm:$0xff]
        %v1361 = vld [vmem:[#allocation8 + $0xd70] sm:$0xff]
        %v1362 = vld [vmem:[#allocation8 + $0xd78] sm:$0xff]
        %v1363 = vld [vmem:[#allocation8 + $0xd80] sm:$0xff]
        %v1364 = vld [vmem:[#allocation8 + $0xd88] sm:$0xff]
        %v1365 = vld [vmem:[#allocation8 + $0xd90] sm:$0xff]
        %v1366 = vld [vmem:[#allocation8 + $0xd98] sm:$0xff]
        %v1367 = vld [vmem:[#allocation8 + $0xda0] sm:$0xff]
        %v1368 = vld [vmem:[#allocation8 + $0xda8] sm:$0xff]
        %v1369 = vld [vmem:[#allocation8 + $0xdb0] sm:$0xff]
        %v1370 = vld [vmem:[#allocation8 + $0xdb8] sm:$0xff]
        %v1371 = vld [vmem:[#allocation8 + $0xdc0] sm:$0xff]
        %v1372 = vld [vmem:[#allocation8 + $0xdc8] sm:$0xff]
        %v1373 = vld [vmem:[#allocation8 + $0xdd0] sm:$0xff]
        %v1374 = vld [vmem:[#allocation8 + $0xdd8] sm:$0xff]
        %v1375 = vld [vmem:[#allocation8 + $0xde0] sm:$0xff]
        %v1376 = vld [vmem:[#allocation8 + $0xde8] sm:$0xff]
        %v1377 = vld [vmem:[#allocation8 + $0xdf0] sm:$0xff]
        %v1378 = vld [vmem:[#allocation8 + $0xdf8] sm:$0xff]
        %v1379 = vld [vmem:[#allocation8 + $0xe00] sm:$0xff]
        %v1380 = vld [vmem:[#allocation8 + $0xe08] sm:$0xff]
        %v1381 = vld [vmem:[#allocation8 + $0xe10] sm:$0xff]
        %v1382 = vld [vmem:[#allocation8 + $0xe18] sm:$0xff]
        %v1383 = vld [vmem:[#allocation8 + $0xe20] sm:$0xff]
        %v1384 = vld [vmem:[#allocation8 + $0xe28] sm:$0xff]
        %v1385 = vld [vmem:[#allocation8 + $0xe30] sm:$0xff]
        %v1386 = vld [vmem:[#allocation8 + $0xe38] sm:$0xff]
        %v1387 = vld [vmem:[#allocation8 + $0xe40] sm:$0xff]
        %v1388 = vld [vmem:[#allocation8 + $0xe48] sm:$0xff]
        %v1389 = vld [vmem:[#allocation8 + $0xe50] sm:$0xff]
        %v1390 = vld [vmem:[#allocation8 + $0xe58] sm:$0xff]
        %v1391 = vld [vmem:[#allocation8 + $0xe60] sm:$0xff]
        %v1392 = vld [vmem:[#allocation8 + $0xe68] sm:$0xff]
        %v1393 = vld [vmem:[#allocation8 + $0xe70] sm:$0xff]
        %v1394 = vld [vmem:[#allocation8 + $0xe78] sm:$0xff]
        %v1395 = vld [vmem:[#allocation8 + $0xe80] sm:$0xff]
        %v1396 = vld [vmem:[#allocation8 + $0xe88] sm:$0xff]
        %v1397 = vld [vmem:[#allocation8 + $0xe90] sm:$0xff]
        %v1398 = vld [vmem:[#allocation8 + $0xe98] sm:$0xff]
        %v1399 = vld [vmem:[#allocation8 + $0xea0] sm:$0xff]
        %v1400 = vld [vmem:[#allocation8 + $0xea8] sm:$0xff]
        %v1401 = vld [vmem:[#allocation8 + $0xeb0] sm:$0xff]
        %v1402 = vld [vmem:[#allocation8 + $0xeb8] sm:$0xff]
        %v1403 = vld [vmem:[#allocation8 + $0xec0] sm:$0xff]
        %v1404 = vld [vmem:[#allocation8 + $0xec8] sm:$0xff]
        %v1405 = vld [vmem:[#allocation8 + $0xed0] sm:$0xff]
        %v1406 = vld [vmem:[#allocation8 + $0xed8] sm:$0xff]
        %v1407 = vld [vmem:[#allocation8 + $0xee0] sm:$0xff]
        %v1408 = vld [vmem:[#allocation8 + $0xee8] sm:$0xff]
        %v1409 = vld [vmem:[#allocation8 + $0xef0] sm:$0xff]
        %v1410 = vld [vmem:[#allocation8 + $0xef8] sm:$0xff]
        %v1411 = vld [vmem:[#allocation8 + $0xf00] sm:$0xff]
        %v1412 = vld [vmem:[#allocation8 + $0xf08] sm:$0xff]
        %v1413 = vld [vmem:[#allocation8 + $0xf10] sm:$0xff]
        %v1414 = vld [vmem:[#allocation8 + $0xf18] sm:$0xff]
        %v1415 = vld [vmem:[#allocation8 + $0xf20] sm:$0xff]
        %v1416 = vld [vmem:[#allocation8 + $0xf28] sm:$0xff]
        %v1417 = vld [vmem:[#allocation8 + $0xf30] sm:$0xff]
        %v1418 = vld [vmem:[#allocation8 + $0xf38] sm:$0xff]
        %v1419 = vld [vmem:[#allocation8 + $0xf40] sm:$0xff]
        %v1420 = vld [vmem:[#allocation8 + $0xf48] sm:$0xff]
        %v1421 = vld [vmem:[#allocation8 + $0xf50] sm:$0xff]
        %v1422 = vld [vmem:[#allocation8 + $0xf58] sm:$0xff]
        %v1423 = vld [vmem:[#allocation8 + $0xf60] sm:$0xff]
        %v1424 = vld [vmem:[#allocation8 + $0xf68] sm:$0xff]
        %v1425 = vld [vmem:[#allocation8 + $0xf70] sm:$0xff]
        %v1426 = vld [vmem:[#allocation8 + $0xf78] sm:$0xff]
        %v1427 = vld [vmem:[#allocation8 + $0xf80] sm:$0xff]
        %v1428 = vld [vmem:[#allocation8 + $0xf88] sm:$0xff]
        %v1429 = vld [vmem:[#allocation8 + $0xf90] sm:$0xff]
        %v1430 = vld [vmem:[#allocation8 + $0xf98] sm:$0xff]
        %v1431 = vld [vmem:[#allocation8 + $0xfa0] sm:$0xff]
        %v1432 = vld [vmem:[#allocation8 + $0xfa8] sm:$0xff]
        %v1433 = vld [vmem:[#allocation8 + $0xfb0] sm:$0xff]
        %v1434 = vld [vmem:[#allocation8 + $0xfb8] sm:$0xff]
        %v1435 = vld [vmem:[#allocation8 + $0xfc0] sm:$0xff]
        %v1436 = vld [vmem:[#allocation8 + $0xfc8] sm:$0xff]
        %v1437 = vld [vmem:[#allocation8 + $0xfd0] sm:$0xff]
        %v1438 = vld [vmem:[#allocation8 + $0xfd8] sm:$0xff]
        %v1439 = vld [vmem:[#allocation8 + $0xfe0] sm:$0xff]
        %v1440 = vld [vmem:[#allocation8 + $0xfe8] sm:$0xff]
        %v1441 = vld [vmem:[#allocation8 + $0xff0] sm:$0xff]
        %v1442 = vld [vmem:[#allocation8 + $0xff8] sm:$0xff]
        %v1443 = vld [vmem:[#allocation8 + $0x1000] sm:$0xff]
        %v1444 = vld [vmem:[#allocation8 + $0x1008] sm:$0xff]
        %v1445 = vld [vmem:[#allocation8 + $0x1010] sm:$0xff]
        %v1446 = vld [vmem:[#allocation8 + $0x1018] sm:$0xff]
        %v1447 = vld [vmem:[#allocation8 + $0x1020] sm:$0xff]
        %v1448 = vld [vmem:[#allocation8 + $0x1028] sm:$0xff]
        %v1449 = vld [vmem:[#allocation8 + $0x1030] sm:$0xff]
        %v1450 = vld [vmem:[#allocation8 + $0x1038] sm:$0xff]
        %v1451 = vld [vmem:[#allocation8 + $0x1040] sm:$0xff]
        %v1452 = vld [vmem:[#allocation8 + $0x1048] sm:$0xff]
        %v1453 = vld [vmem:[#allocation8 + $0x1050] sm:$0xff]
        %v1454 = vld [vmem:[#allocation8 + $0x1058] sm:$0xff]
        %v1455 = vld [vmem:[#allocation8 + $0x1060] sm:$0xff]
        %v1456 = vld [vmem:[#allocation8 + $0x1068] sm:$0xff]
        %v1457 = vld [vmem:[#allocation8 + $0x1070] sm:$0xff]
        %v1458 = vld [vmem:[#allocation8 + $0x1078] sm:$0xff]
        %v1459 = vld [vmem:[#allocation8 + $0x1080] sm:$0xff]
        %v1460 = vld [vmem:[#allocation8 + $0x1088] sm:$0xff]
        %v1461 = vld [vmem:[#allocation8 + $0x1090] sm:$0xff]
        %v1462 = vld [vmem:[#allocation8 + $0x1098] sm:$0xff]
        %v1463 = vld [vmem:[#allocation8 + $0x10a0] sm:$0xff]
        %v1464 = vld [vmem:[#allocation8 + $0x10a8] sm:$0xff]
        %v1465 = vld [vmem:[#allocation8 + $0x10b0] sm:$0xff]
        %v1466 = vld [vmem:[#allocation8 + $0x10b8] sm:$0xff]
        %v1467 = vld [vmem:[#allocation8 + $0x10c0] sm:$0xff]
        %v1468 = vld [vmem:[#allocation8 + $0x10c8] sm:$0xff]
        %v1469 = vld [vmem:[#allocation8 + $0x10d0] sm:$0xff]
        %v1470 = vld [vmem:[#allocation8 + $0x10d8] sm:$0xff]
        %v1471 = vld [vmem:[#allocation8 + $0x10e0] sm:$0xff]
        %v1472 = vld [vmem:[#allocation8 + $0x10e8] sm:$0xff]
        %v1473 = vld [vmem:[#allocation8 + $0x10f0] sm:$0xff]
        %v1474 = vld [vmem:[#allocation8 + $0x10f8] sm:$0xff]
        %v1475 = vld [vmem:[#allocation8 + $0x1100] sm:$0xff]
        %v1476 = vld [vmem:[#allocation8 + $0x1108] sm:$0xff]
        %v1477 = vld [vmem:[#allocation8 + $0x1110] sm:$0xff]
        %v1478 = vld [vmem:[#allocation8 + $0x1118] sm:$0xff]
        %v1479 = vld [vmem:[#allocation8 + $0x1120] sm:$0xff]
        %v1480 = vld [vmem:[#allocation8 + $0x1128] sm:$0xff]
        %v1481 = vld [vmem:[#allocation8 + $0x1130] sm:$0xff]
        %v1482 = vld [vmem:[#allocation8 + $0x1138] sm:$0xff]
        %v1483 = vld [vmem:[#allocation8 + $0x1140] sm:$0xff]
        %v1484 = vld [vmem:[#allocation8 + $0x1148] sm:$0xff]
        %v1485 = vld [vmem:[#allocation8 + $0x1150] sm:$0xff]
        %v1486 = vld [vmem:[#allocation8 + $0x1158] sm:$0xff]
        %v1487 = vld [vmem:[#allocation8 + $0x1160] sm:$0xff]
        %v1488 = vld [vmem:[#allocation8 + $0x1168] sm:$0xff]
        %v1489 = vld [vmem:[#allocation8 + $0x1170] sm:$0xff]
        %v1490 = vld [vmem:[#allocation8 + $0x1178] sm:$0xff]
        %v1491 = vld [vmem:[#allocation8 + $0x1180] sm:$0xff]
        %v1492 = vld [vmem:[#allocation8 + $0x1188] sm:$0xff]
        %v1493 = vld [vmem:[#allocation8 + $0x1190] sm:$0xff]
        %v1494 = vld [vmem:[#allocation8 + $0x1198] sm:$0xff]
        %v1495 = vld [vmem:[#allocation8 + $0x11a0] sm:$0xff]
        %v1496 = vld [vmem:[#allocation8 + $0x11a8] sm:$0xff]
        %v1497 = vld [vmem:[#allocation8 + $0x11b0] sm:$0xff]
        %v1498 = vld [vmem:[#allocation8 + $0x11b8] sm:$0xff]
        %v1499 = vld [vmem:[#allocation8 + $0x11c0] sm:$0xff]
        %v1500 = vld [vmem:[#allocation8 + $0x11c8] sm:$0xff]
        %v1501 = vld [vmem:[#allocation8 + $0x11d0] sm:$0xff]
        %v1502 = vld [vmem:[#allocation8 + $0x11d8] sm:$0xff]
        %v1503 = vld [vmem:[#allocation8 + $0x11e0] sm:$0xff]
        %v1504 = vld [vmem:[#allocation8 + $0x11e8] sm:$0xff]
        %v1505 = vld [vmem:[#allocation8 + $0x11f0] sm:$0xff]
        %v1506 = vld [vmem:[#allocation8 + $0x11f8] sm:$0xff]
        %v1507 = vld [vmem:[#allocation8 + $0x1200] sm:$0xff]
        %v1508 = vld [vmem:[#allocation8 + $0x1208] sm:$0xff]
        %v1509 = vld [vmem:[#allocation8 + $0x1210] sm:$0xff]
        %v1510 = vld [vmem:[#allocation8 + $0x1218] sm:$0xff]
        %v1511 = vld [vmem:[#allocation8 + $0x1220] sm:$0xff]
        %v1512 = vld [vmem:[#allocation8 + $0x1228] sm:$0xff]
        %v1513 = vld [vmem:[#allocation8 + $0x1230] sm:$0xff]
        %v1514 = vld [vmem:[#allocation8 + $0x1238] sm:$0xff]
        %v1515 = vld [vmem:[#allocation8 + $0x1240] sm:$0xff]
        %v1516 = vld [vmem:[#allocation8 + $0x1248] sm:$0xff]
        %v1517 = vld [vmem:[#allocation8 + $0x1250] sm:$0xff]
        %v1518 = vld [vmem:[#allocation8 + $0x1258] sm:$0xff]
        %v1519 = vld [vmem:[#allocation8 + $0x1260] sm:$0xff]
        %v1520 = vld [vmem:[#allocation8 + $0x1268] sm:$0xff]
        %v1521 = vld [vmem:[#allocation8 + $0x1270] sm:$0xff]
        %v1522 = vld [vmem:[#allocation8 + $0x1278] sm:$0xff]
        %v1523 = vld [vmem:[#allocation8 + $0x1280] sm:$0xff]
        %v1524 = vld [vmem:[#allocation8 + $0x1288] sm:$0xff]
        %v1525 = vld [vmem:[#allocation8 + $0x1290] sm:$0xff]
        %v1526 = vld [vmem:[#allocation8 + $0x1298] sm:$0xff]
        %v1527 = vld [vmem:[#allocation8 + $0x12a0] sm:$0xff]
        %v1528 = vld [vmem:[#allocation8 + $0x12a8] sm:$0xff]
        %v1529 = vld [vmem:[#allocation8 + $0x12b0] sm:$0xff]
        %v1530 = vld [vmem:[#allocation8 + $0x12b8] sm:$0xff]
        %v1531 = vld [vmem:[#allocation8 + $0x12c0] sm:$0xff]
        %v1532 = vld [vmem:[#allocation8 + $0x12c8] sm:$0xff]
        %v1533 = vld [vmem:[#allocation8 + $0x12d0] sm:$0xff]
        %v1534 = vld [vmem:[#allocation8 + $0x12d8] sm:$0xff]
        %v1535 = vld [vmem:[#allocation8 + $0x12e0] sm:$0xff]
        %v1536 = vld [vmem:[#allocation8 + $0x12e8] sm:$0xff]
        %v1537 = vld [vmem:[#allocation8 + $0x12f0] sm:$0xff]
        %v1538 = vld [vmem:[#allocation8 + $0x12f8] sm:$0xff]
        %v1539 = vld [vmem:[#allocation8 + $0x1300] sm:$0xff]
        %v1540 = vld [vmem:[#allocation8 + $0x1308] sm:$0xff]
        %v1541 = vld [vmem:[#allocation8 + $0x1310] sm:$0xff]
        %v1542 = vld [vmem:[#allocation8 + $0x1318] sm:$0xff]
        %v1543 = vld [vmem:[#allocation8 + $0x1320] sm:$0xff]
        %v1544 = vld [vmem:[#allocation8 + $0x1328] sm:$0xff]
        %v1545 = vld [vmem:[#allocation8 + $0x1330] sm:$0xff]
        %v1546 = vld [vmem:[#allocation8 + $0x1338] sm:$0xff]
        %v1547 = vld [vmem:[#allocation8 + $0x1340] sm:$0xff]
        %v1548 = vld [vmem:[#allocation8 + $0x1348] sm:$0xff]
        %v1549 = vld [vmem:[#allocation8 + $0x1350] sm:$0xff]
        %v1550 = vld [vmem:[#allocation8 + $0x1358] sm:$0xff]
        %v1551 = vld [vmem:[#allocation8 + $0x1360] sm:$0xff]
        %v1552 = vld [vmem:[#allocation8 + $0x1368] sm:$0xff]
        %v1553 = vld [vmem:[#allocation8 + $0x1370] sm:$0xff]
        %v1554 = vld [vmem:[#allocation8 + $0x1378] sm:$0xff]
        %v1555 = vld [vmem:[#allocation8 + $0x1380] sm:$0xff]
        %v1556 = vld [vmem:[#allocation8 + $0x1388] sm:$0xff]
        %v1557 = vld [vmem:[#allocation8 + $0x1390] sm:$0xff]
        %v1558 = vld [vmem:[#allocation8 + $0x1398] sm:$0xff]
        %v1559 = vld [vmem:[#allocation8 + $0x13a0] sm:$0xff]
        %v1560 = vld [vmem:[#allocation8 + $0x13a8] sm:$0xff]
        %v1561 = vld [vmem:[#allocation8 + $0x13b0] sm:$0xff]
        %v1562 = vld [vmem:[#allocation8 + $0x13b8] sm:$0xff]
        %v1563 = vld [vmem:[#allocation8 + $0x13c0] sm:$0xff]
        %v1564 = vld [vmem:[#allocation8 + $0x13c8] sm:$0xff]
        %v1565 = vld [vmem:[#allocation8 + $0x13d0] sm:$0xff]
        %v1566 = vld [vmem:[#allocation8 + $0x13d8] sm:$0xff]
        %v1567 = vld [vmem:[#allocation8 + $0x13e0] sm:$0xff]
        %v1568 = vld [vmem:[#allocation8 + $0x13e8] sm:$0xff]
        %v1569 = vld [vmem:[#allocation8 + $0x13f0] sm:$0xff]
        %v1570 = vld [vmem:[#allocation8 + $0x13f8] sm:$0xff]
        %v1571 = vld [vmem:[#allocation8 + $0x1400] sm:$0xff]
        %v1572 = vld [vmem:[#allocation8 + $0x1408] sm:$0xff]
        %v1573 = vld [vmem:[#allocation8 + $0x1410] sm:$0xff]
        %v1574 = vld [vmem:[#allocation8 + $0x1418] sm:$0xff]
        %v1575 = vld [vmem:[#allocation8 + $0x1420] sm:$0xff]
        %v1576 = vld [vmem:[#allocation8 + $0x1428] sm:$0xff]
        %v1577 = vld [vmem:[#allocation8 + $0x1430] sm:$0xff]
        %v1578 = vld [vmem:[#allocation8 + $0x1438] sm:$0xff]
        %v1579 = vld [vmem:[#allocation8 + $0x1440] sm:$0xff]
        %v1580 = vld [vmem:[#allocation8 + $0x1448] sm:$0xff]
        %v1581 = vld [vmem:[#allocation8 + $0x1450] sm:$0xff]
        %v1582 = vld [vmem:[#allocation8 + $0x1458] sm:$0xff]
        %v1583 = vld [vmem:[#allocation8 + $0x1460] sm:$0xff]
        %v1584 = vld [vmem:[#allocation8 + $0x1468] sm:$0xff]
        %v1585 = vld [vmem:[#allocation8 + $0x1470] sm:$0xff]
        %v1586 = vld [vmem:[#allocation8 + $0x1478] sm:$0xff]
        %v1587 = vld [vmem:[#allocation8 + $0x1480] sm:$0xff]
        %v1588 = vld [vmem:[#allocation8 + $0x1488] sm:$0xff]
        %v1589 = vld [vmem:[#allocation8 + $0x1490] sm:$0xff]
        %v1590 = vld [vmem:[#allocation8 + $0x1498] sm:$0xff]
        %v1591 = vld [vmem:[#allocation8 + $0x14a0] sm:$0xff]
        %v1592 = vld [vmem:[#allocation8 + $0x14a8] sm:$0xff]
        %v1593 = vld [vmem:[#allocation8 + $0x14b0] sm:$0xff]
        %v1594 = vld [vmem:[#allocation8 + $0x14b8] sm:$0xff]
        %v1595 = vld [vmem:[#allocation8 + $0x14c0] sm:$0xff]
        %v1596 = vld [vmem:[#allocation8 + $0x14c8] sm:$0xff]
        %v1597 = vld [vmem:[#allocation8 + $0x14d0] sm:$0xff]
        %v1598 = vld [vmem:[#allocation8 + $0x14d8] sm:$0xff]
        %v1599 = vld [vmem:[#allocation8 + $0x14e0] sm:$0xff]
        %v1600 = vld [vmem:[#allocation8 + $0x14e8] sm:$0xff]
        %v1601 = vld [vmem:[#allocation8 + $0x14f0] sm:$0xff]
        %v1602 = vld [vmem:[#allocation8 + $0x14f8] sm:$0xff]
        %v1603 = vld [vmem:[#allocation8 + $0x1500] sm:$0xff]
        %v1604 = vld [vmem:[#allocation8 + $0x1508] sm:$0xff]
        %v1605 = vld [vmem:[#allocation8 + $0x1510] sm:$0xff]
        %v1606 = vld [vmem:[#allocation8 + $0x1518] sm:$0xff]
        %v1607 = vld [vmem:[#allocation8 + $0x1520] sm:$0xff]
        %v1608 = vld [vmem:[#allocation8 + $0x1528] sm:$0xff]
        %v1609 = vld [vmem:[#allocation8 + $0x1530] sm:$0xff]
        %v1610 = vld [vmem:[#allocation8 + $0x1538] sm:$0xff]
        %v1611 = vld [vmem:[#allocation8 + $0x1540] sm:$0xff]
        %v1612 = vld [vmem:[#allocation8 + $0x1548] sm:$0xff]
        %v1613 = vld [vmem:[#allocation8 + $0x1550] sm:$0xff]
        %v1614 = vld [vmem:[#allocation8 + $0x1558] sm:$0xff]
        %v1615 = vld [vmem:[#allocation8 + $0x1560] sm:$0xff]
        %v1616 = vld [vmem:[#allocation8 + $0x1568] sm:$0xff]
        %v1617 = vld [vmem:[#allocation8 + $0x1570] sm:$0xff]
        %v1618 = vld [vmem:[#allocation8 + $0x1578] sm:$0xff]
        %v1619 = vld [vmem:[#allocation8 + $0x1580] sm:$0xff]
        %v1620 = vld [vmem:[#allocation8 + $0x1588] sm:$0xff]
        %v1621 = vld [vmem:[#allocation8 + $0x1590] sm:$0xff]
        %v1622 = vld [vmem:[#allocation8 + $0x1598] sm:$0xff]
        %v1623 = vld [vmem:[#allocation8 + $0x15a0] sm:$0xff]
        %v1624 = vld [vmem:[#allocation8 + $0x15a8] sm:$0xff]
        %v1625 = vld [vmem:[#allocation8 + $0x15b0] sm:$0xff]
        %v1626 = vld [vmem:[#allocation8 + $0x15b8] sm:$0xff]
        %v1627 = vld [vmem:[#allocation8 + $0x15c0] sm:$0xff]
        %v1628 = vld [vmem:[#allocation8 + $0x15c8] sm:$0xff]
        %v1629 = vld [vmem:[#allocation8 + $0x15d0] sm:$0xff]
        %v1630 = vld [vmem:[#allocation8 + $0x15d8] sm:$0xff]
        %v1631 = vld [vmem:[#allocation8 + $0x15e0] sm:$0xff]
        %v1632 = vld [vmem:[#allocation8 + $0x15e8] sm:$0xff]
        %v1633 = vld [vmem:[#allocation8 + $0x15f0] sm:$0xff]
        %v1634 = vld [vmem:[#allocation8 + $0x15f8] sm:$0xff]
        %v1635 = vld [vmem:[#allocation8 + $0x1600] sm:$0xff]
        %v1636 = vld [vmem:[#allocation8 + $0x1608] sm:$0xff]
        %v1637 = vld [vmem:[#allocation8 + $0x1610] sm:$0xff]
        %v1638 = vld [vmem:[#allocation8 + $0x1618] sm:$0xff]
        %v1639 = vld [vmem:[#allocation8 + $0x1620] sm:$0xff]
        %v1640 = vld [vmem:[#allocation8 + $0x1628] sm:$0xff]
        %v1641 = vld [vmem:[#allocation8 + $0x1630] sm:$0xff]
        %v1642 = vld [vmem:[#allocation8 + $0x1638] sm:$0xff]
        %v1643 = vld [vmem:[#allocation8 + $0x1640] sm:$0xff]
        %v1644 = vld [vmem:[#allocation8 + $0x1648] sm:$0xff]
        %v1645 = vld [vmem:[#allocation8 + $0x1650] sm:$0xff]
        %v1646 = vld [vmem:[#allocation8 + $0x1658] sm:$0xff]
        %v1647 = vld [vmem:[#allocation8 + $0x1660] sm:$0xff]
        %v1648 = vld [vmem:[#allocation8 + $0x1668] sm:$0xff]
        %v1649 = vld [vmem:[#allocation8 + $0x1670] sm:$0xff]
        %v1650 = vld [vmem:[#allocation8 + $0x1678] sm:$0xff]
        %v1651 = vld [vmem:[#allocation8 + $0x1680] sm:$0xff]
        %v1652 = vld [vmem:[#allocation8 + $0x1688] sm:$0xff]
        %v1653 = vld [vmem:[#allocation8 + $0x1690] sm:$0xff]
        %v1654 = vld [vmem:[#allocation8 + $0x1698] sm:$0xff]
        %v1655 = vld [vmem:[#allocation8 + $0x16a0] sm:$0xff]
        %v1656 = vld [vmem:[#allocation8 + $0x16a8] sm:$0xff]
        %v1657 = vld [vmem:[#allocation8 + $0x16b0] sm:$0xff]
        %v1658 = vld [vmem:[#allocation8 + $0x16b8] sm:$0xff]
        %v1659 = vld [vmem:[#allocation8 + $0x16c0] sm:$0xff]
        %v1660 = vld [vmem:[#allocation8 + $0x16c8] sm:$0xff]
        %v1661 = vld [vmem:[#allocation8 + $0x16d0] sm:$0xff]
        %v1662 = vld [vmem:[#allocation8 + $0x16d8] sm:$0xff]
        %v1663 = vld [vmem:[#allocation8 + $0x16e0] sm:$0xff]
        %v1664 = vld [vmem:[#allocation8 + $0x16e8] sm:$0xff]
        %v1665 = vld [vmem:[#allocation8 + $0x16f0] sm:$0xff]
        %v1666 = vld [vmem:[#allocation8 + $0x16f8] sm:$0xff]
        %v1667 = vld [vmem:[#allocation8 + $0x1700] sm:$0xff]
        %v1668 = vld [vmem:[#allocation8 + $0x1708] sm:$0xff]
        %v1669 = vld [vmem:[#allocation8 + $0x1710] sm:$0xff]
        %v1670 = vld [vmem:[#allocation8 + $0x1718] sm:$0xff]
        %v1671 = vld [vmem:[#allocation8 + $0x1720] sm:$0xff]
        %v1672 = vld [vmem:[#allocation8 + $0x1728] sm:$0xff]
        %v1673 = vld [vmem:[#allocation8 + $0x1730] sm:$0xff]
        %v1674 = vld [vmem:[#allocation8 + $0x1738] sm:$0xff]
        %v1675 = vld [vmem:[#allocation8 + $0x1740] sm:$0xff]
        %v1676 = vld [vmem:[#allocation8 + $0x1748] sm:$0xff]
        %v1677 = vld [vmem:[#allocation8 + $0x1750] sm:$0xff]
        %v1678 = vld [vmem:[#allocation8 + $0x1758] sm:$0xff]
        %v1679 = vld [vmem:[#allocation8 + $0x1760] sm:$0xff]
        %v1680 = vld [vmem:[#allocation8 + $0x1768] sm:$0xff]
        %v1681 = vld [vmem:[#allocation10] sm:$0xff]
        %v1682 = vld [vmem:[#allocation10 + $0x8] sm:$0x3]
        %v1685 = vlaneseq
        %v1686 = vshrl.u32 %v1685, 7
        %v1687 = vsub.s32 0, %v1686
        %v1688 = vrot.slane %v1681, %v1687
        %v1689 = vlaneseq
        %v1690 = vshrl.u32 %v1689, 7
        %v1691 = vsub.s32 1, %v1690
        %v1692 = vrot.slane %v1681, %v1691
        %v1693 = vlaneseq
        %v1694 = vshrl.u32 %v1693, 7
        %v1695 = vsub.s32 2, %v1694
        %v1696 = vrot.slane %v1681, %v1695
        %v1697 = vlaneseq
        %v1698 = vshrl.u32 %v1697, 7
        %v1699 = vsub.s32 3, %v1698
        %v1700 = vrot.slane %v1681, %v1699
        %v1701 = vlaneseq
        %v1702 = vshrl.u32 %v1701, 7
        %v1703 = vsub.s32 4, %v1702
        %v1704 = vrot.slane %v1681, %v1703
        %v1705 = vlaneseq
        %v1706 = vshrl.u32 %v1705, 7
        %v1707 = vsub.s32 5, %v1706
        %v1708 = vrot.slane %v1681, %v1707
        %v1709 = vlaneseq
        %v1710 = vshrl.u32 %v1709, 7
        %v1711 = vsub.s32 6, %v1710
        %v1712 = vrot.slane %v1681, %v1711
        %v1713 = vlaneseq
        %v1714 = vshrl.u32 %v1713, 7
        %v1715 = vsub.s32 7, %v1714
        %v1716 = vrot.slane %v1681, %v1715
        %v1717 = vlaneseq
        %v1718 = vshrl.u32 %v1717, 7
        %v1719 = vsub.s32 0, %v1718
        %v1720 = vrot.slane %v1682, %v1719
        %v1721 = vlaneseq
        %v1722 = vshrl.u32 %v1721, 7
        %v1723 = vsub.s32 1, %v1722
        %v1724 = vrot.slane %v1682, %v1723
        %v2485 = vunpack.c.l.b16 %v931
        %v2486 = vunpack.c.h.b16 %v931
        %v2487 = vunpack.c.l.b16 %v932
        %v2488 = vunpack.c.h.b16 %v932
        %v2489 = vunpack.c.l.b16 %v933
        %v2490 = vunpack.c.h.b16 %v933
        %v2491 = vunpack.c.l.b16 %v934
        %v2492 = vunpack.c.h.b16 %v934
        %v2493 = vunpack.c.l.b16 %v935
        %v2494 = vunpack.c.h.b16 %v935
        %v2495 = vunpack.c.l.b16 %v936
        %v2496 = vunpack.c.h.b16 %v936
        %v2497 = vunpack.c.l.b16 %v937
        %v2498 = vunpack.c.h.b16 %v937
        %v2499 = vunpack.c.l.b16 %v938
        %v2500 = vunpack.c.h.b16 %v938
        %v2501 = vunpack.c.l.b16 %v939
        %v2502 = vunpack.c.h.b16 %v939
        %v2503 = vunpack.c.l.b16 %v940
        %v2504 = vunpack.c.h.b16 %v940
        %v2505 = vunpack.c.l.b16 %v941
        %v2506 = vunpack.c.h.b16 %v941
        %v2507 = vunpack.c.l.b16 %v942
        %v2508 = vunpack.c.h.b16 %v942
        %v2509 = vunpack.c.l.b16 %v943
        %v2510 = vunpack.c.h.b16 %v943
        %v2511 = vunpack.c.l.b16 %v944
        %v2512 = vunpack.c.h.b16 %v944
        %v2513 = vunpack.c.l.b16 %v945
        %v2514 = vunpack.c.h.b16 %v945
        %v2515 = vunpack.c.l.b16 %v946
        %v2516 = vunpack.c.h.b16 %v946
        %v2517 = vunpack.c.l.b16 %v947
        %v2518 = vunpack.c.h.b16 %v947
        %v2519 = vunpack.c.l.b16 %v948
        %v2520 = vunpack.c.h.b16 %v948
        %v2521 = vunpack.c.l.b16 %v949
        %v2522 = vunpack.c.h.b16 %v949
        %v2523 = vunpack.c.l.b16 %v950
        %v2524 = vunpack.c.h.b16 %v950
        %v2525 = vunpack.c.l.b16 %v951
        %v2526 = vunpack.c.h.b16 %v951
        %v2527 = vunpack.c.l.b16 %v952
        %v2528 = vunpack.c.h.b16 %v952
        %v2529 = vunpack.c.l.b16 %v953
        %v2530 = vunpack.c.h.b16 %v953
        %v2531 = vunpack.c.l.b16 %v954
        %v2532 = vunpack.c.h.b16 %v954
        %v2533 = vunpack.c.l.b16 %v955
        %v2534 = vunpack.c.h.b16 %v955
        %v2535 = vunpack.c.l.b16 %v956
        %v2536 = vunpack.c.h.b16 %v956
        %v2537 = vunpack.c.l.b16 %v957
        %v2538 = vunpack.c.h.b16 %v957
        %v2539 = vunpack.c.l.b16 %v958
        %v2540 = vunpack.c.h.b16 %v958
        %v2541 = vunpack.c.l.b16 %v959
        %v2542 = vunpack.c.h.b16 %v959
        %v2543 = vunpack.c.l.b16 %v960
        %v2544 = vunpack.c.h.b16 %v960
        %v2545 = vunpack.c.l.b16 %v961
        %v2546 = vunpack.c.h.b16 %v961
        %v2547 = vunpack.c.l.b16 %v962
        %v2548 = vunpack.c.h.b16 %v962
        %v2549 = vunpack.c.l.b16 %v963
        %v2550 = vunpack.c.h.b16 %v963
        %v2551 = vunpack.c.l.b16 %v964
        %v2552 = vunpack.c.h.b16 %v964
        %v2553 = vunpack.c.l.b16 %v965
        %v2554 = vunpack.c.h.b16 %v965
        %v2555 = vunpack.c.l.b16 %v966
        %v2556 = vunpack.c.h.b16 %v966
        %v2557 = vunpack.c.l.b16 %v967
        %v2558 = vunpack.c.h.b16 %v967
        %v2559 = vunpack.c.l.b16 %v968
        %v2560 = vunpack.c.h.b16 %v968
        %v2561 = vunpack.c.l.b16 %v969
        %v2562 = vunpack.c.h.b16 %v969
        %v2563 = vunpack.c.l.b16 %v970
        %v2564 = vunpack.c.h.b16 %v970
        %v2565 = vunpack.c.l.b16 %v971
        %v2566 = vunpack.c.h.b16 %v971
        %v2567 = vunpack.c.l.b16 %v972
        %v2568 = vunpack.c.h.b16 %v972
        %v2569 = vunpack.c.l.b16 %v973
        %v2570 = vunpack.c.h.b16 %v973
        %v2571 = vunpack.c.l.b16 %v974
        %v2572 = vunpack.c.h.b16 %v974
        %v2573 = vunpack.c.l.b16 %v975
        %v2574 = vunpack.c.h.b16 %v975
        %v2575 = vunpack.c.l.b16 %v976
        %v2576 = vunpack.c.h.b16 %v976
        %v2577 = vunpack.c.l.b16 %v977
        %v2578 = vunpack.c.h.b16 %v977
        %v2579 = vunpack.c.l.b16 %v978
        %v2580 = vunpack.c.h.b16 %v978
        %v2581 = vunpack.c.l.b16 %v979
        %v2582 = vunpack.c.h.b16 %v979
        %v2583 = vunpack.c.l.b16 %v980
        %v2584 = vunpack.c.h.b16 %v980
        %v2585 = vunpack.c.l.b16 %v981
        %v2586 = vunpack.c.h.b16 %v981
        %v2587 = vunpack.c.l.b16 %v982
        %v2588 = vunpack.c.h.b16 %v982
        %v2589 = vunpack.c.l.b16 %v983
        %v2590 = vunpack.c.h.b16 %v983
        %v2591 = vunpack.c.l.b16 %v984
        %v2592 = vunpack.c.h.b16 %v984
        %v2593 = vunpack.c.l.b16 %v985
        %v2594 = vunpack.c.h.b16 %v985
        %v2595 = vunpack.c.l.b16 %v986
        %v2596 = vunpack.c.h.b16 %v986
        %v2597 = vunpack.c.l.b16 %v987
        %v2598 = vunpack.c.h.b16 %v987
        %v2599 = vunpack.c.l.b16 %v988
        %v2600 = vunpack.c.h.b16 %v988
        %v2601 = vunpack.c.l.b16 %v989
        %v2602 = vunpack.c.h.b16 %v989
        %v2603 = vunpack.c.l.b16 %v990
        %v2604 = vunpack.c.h.b16 %v990
        %v2605 = vunpack.c.l.b16 %v991
        %v2606 = vunpack.c.h.b16 %v991
        %v2607 = vunpack.c.l.b16 %v992
        %v2608 = vunpack.c.h.b16 %v992
        %v2609 = vunpack.c.l.b16 %v993
        %v2610 = vunpack.c.h.b16 %v993
        %v2611 = vunpack.c.l.b16 %v994
        %v2612 = vunpack.c.h.b16 %v994
        %v2613 = vunpack.c.l.b16 %v995
        %v2614 = vunpack.c.h.b16 %v995
        %v2615 = vunpack.c.l.b16 %v996
        %v2616 = vunpack.c.h.b16 %v996
        %v2617 = vunpack.c.l.b16 %v997
        %v2618 = vunpack.c.h.b16 %v997
        %v2619 = vunpack.c.l.b16 %v998
        %v2620 = vunpack.c.h.b16 %v998
        %v2621 = vunpack.c.l.b16 %v999
        %v2622 = vunpack.c.h.b16 %v999
        %v2623 = vunpack.c.l.b16 %v1000
        %v2624 = vunpack.c.h.b16 %v1000
        %v2625 = vunpack.c.l.b16 %v1001
        %v2626 = vunpack.c.h.b16 %v1001
        %v2627 = vunpack.c.l.b16 %v1002
        %v2628 = vunpack.c.h.b16 %v1002
        %v2629 = vunpack.c.l.b16 %v1003
        %v2630 = vunpack.c.h.b16 %v1003
        %v2631 = vunpack.c.l.b16 %v1004
        %v2632 = vunpack.c.h.b16 %v1004
        %v2633 = vunpack.c.l.b16 %v1005
        %v2634 = vunpack.c.h.b16 %v1005
        %v2635 = vunpack.c.l.b16 %v1006
        %v2636 = vunpack.c.h.b16 %v1006
        %v2637 = vunpack.c.l.b16 %v1007
        %v2638 = vunpack.c.h.b16 %v1007
        %v2639 = vunpack.c.l.b16 %v1008
        %v2640 = vunpack.c.h.b16 %v1008
        %v2641 = vunpack.c.l.b16 %v1009
        %v2642 = vunpack.c.h.b16 %v1009
        %v2643 = vunpack.c.l.b16 %v1010
        %v2644 = vunpack.c.h.b16 %v1010
        %v2645 = vunpack.c.l.b16 %v1011
        %v2646 = vunpack.c.h.b16 %v1011
        %v2647 = vunpack.c.l.b16 %v1012
        %v2648 = vunpack.c.h.b16 %v1012
        %v2649 = vunpack.c.l.b16 %v1013
        %v2650 = vunpack.c.h.b16 %v1013
        %v2651 = vunpack.c.l.b16 %v1014
        %v2652 = vunpack.c.h.b16 %v1014
        %v2653 = vunpack.c.l.b16 %v1015
        %v2654 = vunpack.c.h.b16 %v1015
        %v2655 = vunpack.c.l.b16 %v1016
        %v2656 = vunpack.c.h.b16 %v1016
        %v2657 = vunpack.c.l.b16 %v1017
        %v2658 = vunpack.c.h.b16 %v1017
        %v2659 = vunpack.c.l.b16 %v1018
        %v2660 = vunpack.c.h.b16 %v1018
        %v2661 = vunpack.c.l.b16 %v1019
        %v2662 = vunpack.c.h.b16 %v1019
        %v2663 = vunpack.c.l.b16 %v1020
        %v2664 = vunpack.c.h.b16 %v1020
        %v2665 = vunpack.c.l.b16 %v1021
        %v2666 = vunpack.c.h.b16 %v1021
        %v2667 = vunpack.c.l.b16 %v1022
        %v2668 = vunpack.c.h.b16 %v1022
        %v2669 = vunpack.c.l.b16 %v1023
        %v2670 = vunpack.c.h.b16 %v1023
        %v2671 = vunpack.c.l.b16 %v1024
        %v2672 = vunpack.c.h.b16 %v1024
        %v2673 = vunpack.c.l.b16 %v1025
        %v2674 = vunpack.c.h.b16 %v1025
        %v2675 = vunpack.c.l.b16 %v1026
        %v2676 = vunpack.c.h.b16 %v1026
        %v2677 = vunpack.c.l.b16 %v1027
        %v2678 = vunpack.c.h.b16 %v1027
        %v2679 = vunpack.c.l.b16 %v1028
        %v2680 = vunpack.c.h.b16 %v1028
        %v2681 = vunpack.c.l.b16 %v1029
        %v2682 = vunpack.c.h.b16 %v1029
        %v2683 = vunpack.c.l.b16 %v1030
        %v2684 = vunpack.c.h.b16 %v1030
        %v2685 = vunpack.c.l.b16 %v1031
        %v2686 = vunpack.c.h.b16 %v1031
        %v2687 = vunpack.c.l.b16 %v1032
        %v2688 = vunpack.c.h.b16 %v1032
        %v2689 = vunpack.c.l.b16 %v1033
        %v2690 = vunpack.c.h.b16 %v1033
        %v2691 = vunpack.c.l.b16 %v1034
        %v2692 = vunpack.c.h.b16 %v1034
        %v2693 = vunpack.c.l.b16 %v1035
        %v2694 = vunpack.c.h.b16 %v1035
        %v2695 = vunpack.c.l.b16 %v1036
        %v2696 = vunpack.c.h.b16 %v1036
        %v2697 = vunpack.c.l.b16 %v1037
        %v2698 = vunpack.c.h.b16 %v1037
        %v2699 = vunpack.c.l.b16 %v1038
        %v2700 = vunpack.c.h.b16 %v1038
        %v2701 = vunpack.c.l.b16 %v1039
        %v2702 = vunpack.c.h.b16 %v1039
        %v2703 = vunpack.c.l.b16 %v1040
        %v2704 = vunpack.c.h.b16 %v1040
        %v2705 = vunpack.c.l.b16 %v1041
        %v2706 = vunpack.c.h.b16 %v1041
        %v2707 = vunpack.c.l.b16 %v1042
        %v2708 = vunpack.c.h.b16 %v1042
        %v2709 = vunpack.c.l.b16 %v1043
        %v2710 = vunpack.c.h.b16 %v1043
        %v2711 = vunpack.c.l.b16 %v1044
        %v2712 = vunpack.c.h.b16 %v1044
        %v2713 = vunpack.c.l.b16 %v1045
        %v2714 = vunpack.c.h.b16 %v1045
        %v2715 = vunpack.c.l.b16 %v1046
        %v2716 = vunpack.c.h.b16 %v1046
        %v2717 = vunpack.c.l.b16 %v1047
        %v2718 = vunpack.c.h.b16 %v1047
        %v2719 = vunpack.c.l.b16 %v1048
        %v2720 = vunpack.c.h.b16 %v1048
        %v2721 = vunpack.c.l.b16 %v1049
        %v2722 = vunpack.c.h.b16 %v1049
        %v2723 = vunpack.c.l.b16 %v1050
        %v2724 = vunpack.c.h.b16 %v1050
        %v2725 = vunpack.c.l.b16 %v1051
        %v2726 = vunpack.c.h.b16 %v1051
        %v2727 = vunpack.c.l.b16 %v1052
        %v2728 = vunpack.c.h.b16 %v1052
        %v2729 = vunpack.c.l.b16 %v1053
        %v2730 = vunpack.c.h.b16 %v1053
        %v2731 = vunpack.c.l.b16 %v1054
        %v2732 = vunpack.c.h.b16 %v1054
        %v2733 = vunpack.c.l.b16 %v1055
        %v2734 = vunpack.c.h.b16 %v1055
        %v2735 = vunpack.c.l.b16 %v1056
        %v2736 = vunpack.c.h.b16 %v1056
        %v2737 = vunpack.c.l.b16 %v1057
        %v2738 = vunpack.c.h.b16 %v1057
        %v2739 = vunpack.c.l.b16 %v1058
        %v2740 = vunpack.c.h.b16 %v1058
        %v2741 = vunpack.c.l.b16 %v1059
        %v2742 = vunpack.c.h.b16 %v1059
        %v2743 = vunpack.c.l.b16 %v1060
        %v2744 = vunpack.c.h.b16 %v1060
        %v2745 = vunpack.c.l.b16 %v1061
        %v2746 = vunpack.c.h.b16 %v1061
        %v2747 = vunpack.c.l.b16 %v1062
        %v2748 = vunpack.c.h.b16 %v1062
        %v2749 = vunpack.c.l.b16 %v1063
        %v2750 = vunpack.c.h.b16 %v1063
        %v2751 = vunpack.c.l.b16 %v1064
        %v2752 = vunpack.c.h.b16 %v1064
        %v2753 = vunpack.c.l.b16 %v1065
        %v2754 = vunpack.c.h.b16 %v1065
        %v2755 = vunpack.c.l.b16 %v1066
        %v2756 = vunpack.c.h.b16 %v1066
        %v2757 = vunpack.c.l.b16 %v1067
        %v2758 = vunpack.c.h.b16 %v1067
        %v2759 = vunpack.c.l.b16 %v1068
        %v2760 = vunpack.c.h.b16 %v1068
        %v2761 = vunpack.c.l.b16 %v1069
        %v2762 = vunpack.c.h.b16 %v1069
        %v2763 = vunpack.c.l.b16 %v1070
        %v2764 = vunpack.c.h.b16 %v1070
        %v2765 = vunpack.c.l.b16 %v1071
        %v2766 = vunpack.c.h.b16 %v1071
        %v2767 = vunpack.c.l.b16 %v1072
        %v2768 = vunpack.c.h.b16 %v1072
        %v2769 = vunpack.c.l.b16 %v1073
        %v2770 = vunpack.c.h.b16 %v1073
        %v2771 = vunpack.c.l.b16 %v1074
        %v2772 = vunpack.c.h.b16 %v1074
        %v2773 = vunpack.c.l.b16 %v1075
        %v2774 = vunpack.c.h.b16 %v1075
        %v2775 = vunpack.c.l.b16 %v1076
        %v2776 = vunpack.c.h.b16 %v1076
        %v2777 = vunpack.c.l.b16 %v1077
        %v2778 = vunpack.c.h.b16 %v1077
        %v2779 = vunpack.c.l.b16 %v1078
        %v2780 = vunpack.c.h.b16 %v1078
        %v2781 = vunpack.c.l.b16 %v1079
        %v2782 = vunpack.c.h.b16 %v1079
        %v2783 = vunpack.c.l.b16 %v1080
        %v2784 = vunpack.c.h.b16 %v1080
        %v2785 = vunpack.c.l.b16 %v1081
        %v2786 = vunpack.c.h.b16 %v1081
        %v2787 = vunpack.c.l.b16 %v1082
        %v2788 = vunpack.c.h.b16 %v1082
        %v2789 = vunpack.c.l.b16 %v1083
        %v2790 = vunpack.c.h.b16 %v1083
        %v2791 = vunpack.c.l.b16 %v1084
        %v2792 = vunpack.c.h.b16 %v1084
        %v2793 = vunpack.c.l.b16 %v1085
        %v2794 = vunpack.c.h.b16 %v1085
        %v2795 = vunpack.c.l.b16 %v1086
        %v2796 = vunpack.c.h.b16 %v1086
        %v2797 = vunpack.c.l.b16 %v1087
        %v2798 = vunpack.c.h.b16 %v1087
        %v2799 = vunpack.c.l.b16 %v1088
        %v2800 = vunpack.c.h.b16 %v1088
        %v2801 = vunpack.c.l.b16 %v1089
        %v2802 = vunpack.c.h.b16 %v1089
        %v2803 = vunpack.c.l.b16 %v1090
        %v2804 = vunpack.c.h.b16 %v1090
        %v2805 = vunpack.c.l.b16 %v1091
        %v2806 = vunpack.c.h.b16 %v1091
        %v2807 = vunpack.c.l.b16 %v1092
        %v2808 = vunpack.c.h.b16 %v1092
        %v2809 = vunpack.c.l.b16 %v1093
        %v2810 = vunpack.c.h.b16 %v1093
        %v2811 = vunpack.c.l.b16 %v1094
        %v2812 = vunpack.c.h.b16 %v1094
        %v2813 = vunpack.c.l.b16 %v1095
        %v2814 = vunpack.c.h.b16 %v1095
        %v2815 = vunpack.c.l.b16 %v1096
        %v2816 = vunpack.c.h.b16 %v1096
        %v2817 = vunpack.c.l.b16 %v1097
        %v2818 = vunpack.c.h.b16 %v1097
        %v2819 = vunpack.c.l.b16 %v1098
        %v2820 = vunpack.c.h.b16 %v1098
        %v2821 = vunpack.c.l.b16 %v1099
        %v2822 = vunpack.c.h.b16 %v1099
        %v2823 = vunpack.c.l.b16 %v1100
        %v2824 = vunpack.c.h.b16 %v1100
        %v2825 = vunpack.c.l.b16 %v1101
        %v2826 = vunpack.c.h.b16 %v1101
        %v2827 = vunpack.c.l.b16 %v1102
        %v2828 = vunpack.c.h.b16 %v1102
        %v2829 = vunpack.c.l.b16 %v1103
        %v2830 = vunpack.c.h.b16 %v1103
        %v2831 = vunpack.c.l.b16 %v1104
        %v2832 = vunpack.c.h.b16 %v1104
        %v2833 = vunpack.c.l.b16 %v1105
        %v2834 = vunpack.c.h.b16 %v1105
        %v2835 = vunpack.c.l.b16 %v1106
        %v2836 = vunpack.c.h.b16 %v1106
        %v2837 = vunpack.c.l.b16 %v1107
        %v2838 = vunpack.c.h.b16 %v1107
        %v2839 = vunpack.c.l.b16 %v1108
        %v2840 = vunpack.c.h.b16 %v1108
        %v2841 = vunpack.c.l.b16 %v1109
        %v2842 = vunpack.c.h.b16 %v1109
        %v2843 = vunpack.c.l.b16 %v1110
        %v2844 = vunpack.c.h.b16 %v1110
        %v2845 = vunpack.c.l.b16 %v1111
        %v2846 = vunpack.c.h.b16 %v1111
        %v2847 = vunpack.c.l.b16 %v1112
        %v2848 = vunpack.c.h.b16 %v1112
        %v2849 = vunpack.c.l.b16 %v1113
        %v2850 = vunpack.c.h.b16 %v1113
        %v2851 = vunpack.c.l.b16 %v1114
        %v2852 = vunpack.c.h.b16 %v1114
        %v2853 = vunpack.c.l.b16 %v1115
        %v2854 = vunpack.c.h.b16 %v1115
        %v2855 = vunpack.c.l.b16 %v1116
        %v2856 = vunpack.c.h.b16 %v1116
        %v2857 = vunpack.c.l.b16 %v1117
        %v2858 = vunpack.c.h.b16 %v1117
        %v2859 = vunpack.c.l.b16 %v1118
        %v2860 = vunpack.c.h.b16 %v1118
        %v2861 = vunpack.c.l.b16 %v1119
        %v2862 = vunpack.c.h.b16 %v1119
        %v2863 = vunpack.c.l.b16 %v1120
        %v2864 = vunpack.c.h.b16 %v1120
        %v2865 = vunpack.c.l.b16 %v1121
        %v2866 = vunpack.c.h.b16 %v1121
        %v2867 = vunpack.c.l.b16 %v1122
        %v2868 = vunpack.c.h.b16 %v1122
        %v2869 = vunpack.c.l.b16 %v1123
        %v2870 = vunpack.c.h.b16 %v1123
        %v2871 = vunpack.c.l.b16 %v1124
        %v2872 = vunpack.c.h.b16 %v1124
        %v2873 = vunpack.c.l.b16 %v1125
        %v2874 = vunpack.c.h.b16 %v1125
        %v2875 = vunpack.c.l.b16 %v1126
        %v2876 = vunpack.c.h.b16 %v1126
        %v2877 = vunpack.c.l.b16 %v1127
        %v2878 = vunpack.c.h.b16 %v1127
        %v2879 = vunpack.c.l.b16 %v1128
        %v2880 = vunpack.c.h.b16 %v1128
        %v2881 = vunpack.c.l.b16 %v1129
        %v2882 = vunpack.c.h.b16 %v1129
        %v2883 = vunpack.c.l.b16 %v1130
        %v2884 = vunpack.c.h.b16 %v1130
        %v2885 = vunpack.c.l.b16 %v1131
        %v2886 = vunpack.c.h.b16 %v1131
        %v2887 = vunpack.c.l.b16 %v1132
        %v2888 = vunpack.c.h.b16 %v1132
        %v2889 = vunpack.c.l.b16 %v1133
        %v2890 = vunpack.c.h.b16 %v1133
        %v2891 = vunpack.c.l.b16 %v1134
        %v2892 = vunpack.c.h.b16 %v1134
        %v2893 = vunpack.c.l.b16 %v1135
        %v2894 = vunpack.c.h.b16 %v1135
        %v2895 = vunpack.c.l.b16 %v1136
        %v2896 = vunpack.c.h.b16 %v1136
        %v2897 = vunpack.c.l.b16 %v1137
        %v2898 = vunpack.c.h.b16 %v1137
        %v2899 = vunpack.c.l.b16 %v1138
        %v2900 = vunpack.c.h.b16 %v1138
        %v2901 = vunpack.c.l.b16 %v1139
        %v2902 = vunpack.c.h.b16 %v1139
        %v2903 = vunpack.c.l.b16 %v1140
        %v2904 = vunpack.c.h.b16 %v1140
        %v2905 = vunpack.c.l.b16 %v1141
        %v2906 = vunpack.c.h.b16 %v1141
        %v2907 = vunpack.c.l.b16 %v1142
        %v2908 = vunpack.c.h.b16 %v1142
        %v2909 = vunpack.c.l.b16 %v1143
        %v2910 = vunpack.c.h.b16 %v1143
        %v2911 = vunpack.c.l.b16 %v1144
        %v2912 = vunpack.c.h.b16 %v1144
        %v2913 = vunpack.c.l.b16 %v1145
        %v2914 = vunpack.c.h.b16 %v1145
        %v2915 = vunpack.c.l.b16 %v1146
        %v2916 = vunpack.c.h.b16 %v1146
        %v2917 = vunpack.c.l.b16 %v1147
        %v2918 = vunpack.c.h.b16 %v1147
        %v2919 = vunpack.c.l.b16 %v1148
        %v2920 = vunpack.c.h.b16 %v1148
        %v2921 = vunpack.c.l.b16 %v1149
        %v2922 = vunpack.c.h.b16 %v1149
        %v2923 = vunpack.c.l.b16 %v1150
        %v2924 = vunpack.c.h.b16 %v1150
        %v2925 = vunpack.c.l.b16 %v1151
        %v2926 = vunpack.c.h.b16 %v1151
        %v2927 = vunpack.c.l.b16 %v1152
        %v2928 = vunpack.c.h.b16 %v1152
        %v2929 = vunpack.c.l.b16 %v1153
        %v2930 = vunpack.c.h.b16 %v1153
        %v2931 = vunpack.c.l.b16 %v1154
        %v2932 = vunpack.c.h.b16 %v1154
        %v2933 = vunpack.c.l.b16 %v1155
        %v2934 = vunpack.c.h.b16 %v1155
        %v2935 = vunpack.c.l.b16 %v1156
        %v2936 = vunpack.c.h.b16 %v1156
        %v2937 = vunpack.c.l.b16 %v1157
        %v2938 = vunpack.c.h.b16 %v1157
        %v2939 = vunpack.c.l.b16 %v1158
        %v2940 = vunpack.c.h.b16 %v1158
        %v2941 = vunpack.c.l.b16 %v1159
        %v2942 = vunpack.c.h.b16 %v1159
        %v2943 = vunpack.c.l.b16 %v1160
        %v2944 = vunpack.c.h.b16 %v1160
        %v2945 = vunpack.c.l.b16 %v1161
        %v2946 = vunpack.c.h.b16 %v1161
        %v2947 = vunpack.c.l.b16 %v1162
        %v2948 = vunpack.c.h.b16 %v1162
        %v2949 = vunpack.c.l.b16 %v1163
        %v2950 = vunpack.c.h.b16 %v1163
        %v2951 = vunpack.c.l.b16 %v1164
        %v2952 = vunpack.c.h.b16 %v1164
        %v2953 = vunpack.c.l.b16 %v1165
        %v2954 = vunpack.c.h.b16 %v1165
        %v2955 = vunpack.c.l.b16 %v1166
        %v2956 = vunpack.c.h.b16 %v1166
        %v2957 = vunpack.c.l.b16 %v1167
        %v2958 = vunpack.c.h.b16 %v1167
        %v2959 = vunpack.c.l.b16 %v1168
        %v2960 = vunpack.c.h.b16 %v1168
        %v2961 = vunpack.c.l.b16 %v1169
        %v2962 = vunpack.c.h.b16 %v1169
        %v2963 = vunpack.c.l.b16 %v1170
        %v2964 = vunpack.c.h.b16 %v1170
        %v2965 = vunpack.c.l.b16 %v1171
        %v2966 = vunpack.c.h.b16 %v1171
        %v2967 = vunpack.c.l.b16 %v1172
        %v2968 = vunpack.c.h.b16 %v1172
        %v2969 = vunpack.c.l.b16 %v1173
        %v2970 = vunpack.c.h.b16 %v1173
        %v2971 = vunpack.c.l.b16 %v1174
        %v2972 = vunpack.c.h.b16 %v1174
        %v2973 = vunpack.c.l.b16 %v1175
        %v2974 = vunpack.c.h.b16 %v1175
        %v2975 = vunpack.c.l.b16 %v1176
        %v2976 = vunpack.c.h.b16 %v1176
        %v2977 = vunpack.c.l.b16 %v1177
        %v2978 = vunpack.c.h.b16 %v1177
        %v2979 = vunpack.c.l.b16 %v1178
        %v2980 = vunpack.c.h.b16 %v1178
        %v2981 = vunpack.c.l.b16 %v1179
        %v2982 = vunpack.c.h.b16 %v1179
        %v2983 = vunpack.c.l.b16 %v1180
        %v2984 = vunpack.c.h.b16 %v1180
        %v2985 = vunpack.c.l.b16 %v1181
        %v2986 = vunpack.c.h.b16 %v1181
        %v2987 = vunpack.c.l.b16 %v1182
        %v2988 = vunpack.c.h.b16 %v1182
        %v2989 = vunpack.c.l.b16 %v1183
        %v2990 = vunpack.c.h.b16 %v1183
        %v2991 = vunpack.c.l.b16 %v1184
        %v2992 = vunpack.c.h.b16 %v1184
        %v2993 = vunpack.c.l.b16 %v1185
        %v2994 = vunpack.c.h.b16 %v1185
        %v2995 = vunpack.c.l.b16 %v1186
        %v2996 = vunpack.c.h.b16 %v1186
        %v2997 = vunpack.c.l.b16 %v1187
        %v2998 = vunpack.c.h.b16 %v1187
        %v2999 = vunpack.c.l.b16 %v1188
        %v3000 = vunpack.c.h.b16 %v1188
        %v3001 = vunpack.c.l.b16 %v1189
        %v3002 = vunpack.c.h.b16 %v1189
        %v3003 = vunpack.c.l.b16 %v1190
        %v3004 = vunpack.c.h.b16 %v1190
        %v3005 = vunpack.c.l.b16 %v1191
        %v3006 = vunpack.c.h.b16 %v1191
        %v3007 = vunpack.c.l.b16 %v1192
        %v3008 = vunpack.c.h.b16 %v1192
        %v3009 = vunpack.c.l.b16 %v1193
        %v3010 = vunpack.c.h.b16 %v1193
        %v3011 = vunpack.c.l.b16 %v1194
        %v3012 = vunpack.c.h.b16 %v1194
        %v3013 = vunpack.c.l.b16 %v1195
        %v3014 = vunpack.c.h.b16 %v1195
        %v3015 = vunpack.c.l.b16 %v1196
        %v3016 = vunpack.c.h.b16 %v1196
        %v3017 = vunpack.c.l.b16 %v1197
        %v3018 = vunpack.c.h.b16 %v1197
        %v3019 = vunpack.c.l.b16 %v1198
        %v3020 = vunpack.c.h.b16 %v1198
        %v3021 = vunpack.c.l.b16 %v1199
        %v3022 = vunpack.c.h.b16 %v1199
        %v3023 = vunpack.c.l.b16 %v1200
        %v3024 = vunpack.c.h.b16 %v1200
        %v3025 = vunpack.c.l.b16 %v1201
        %v3026 = vunpack.c.h.b16 %v1201
        %v3027 = vunpack.c.l.b16 %v1202
        %v3028 = vunpack.c.h.b16 %v1202
        %v3029 = vunpack.c.l.b16 %v1203
        %v3030 = vunpack.c.h.b16 %v1203
        %v3031 = vunpack.c.l.b16 %v1204
        %v3032 = vunpack.c.h.b16 %v1204
        %v3033 = vunpack.c.l.b16 %v1205
        %v3034 = vunpack.c.h.b16 %v1205
        %v3035 = vunpack.c.l.b16 %v1206
        %v3036 = vunpack.c.h.b16 %v1206
        %v3037 = vunpack.c.l.b16 %v1207
        %v3038 = vunpack.c.h.b16 %v1207
        %v3039 = vunpack.c.l.b16 %v1208
        %v3040 = vunpack.c.h.b16 %v1208
        %v3041 = vunpack.c.l.b16 %v1209
        %v3042 = vunpack.c.h.b16 %v1209
        %v3043 = vunpack.c.l.b16 %v1210
        %v3044 = vunpack.c.h.b16 %v1210
        %v3045 = vunpack.c.l.b16 %v1211
        %v3046 = vunpack.c.h.b16 %v1211
        %v3047 = vunpack.c.l.b16 %v1212
        %v3048 = vunpack.c.h.b16 %v1212
        %v3049 = vunpack.c.l.b16 %v1213
        %v3050 = vunpack.c.h.b16 %v1213
        %v3051 = vunpack.c.l.b16 %v1214
        %v3052 = vunpack.c.h.b16 %v1214
        %v3053 = vunpack.c.l.b16 %v1215
        %v3054 = vunpack.c.h.b16 %v1215
        %v3055 = vunpack.c.l.b16 %v1216
        %v3056 = vunpack.c.h.b16 %v1216
        %v3057 = vunpack.c.l.b16 %v1217
        %v3058 = vunpack.c.h.b16 %v1217
        %v3059 = vunpack.c.l.b16 %v1218
        %v3060 = vunpack.c.h.b16 %v1218
        %v3061 = vunpack.c.l.b16 %v1219
        %v3062 = vunpack.c.h.b16 %v1219
        %v3063 = vunpack.c.l.b16 %v1220
        %v3064 = vunpack.c.h.b16 %v1220
        %v3065 = vunpack.c.l.b16 %v1221
        %v3066 = vunpack.c.h.b16 %v1221
        %v3067 = vunpack.c.l.b16 %v1222
        %v3068 = vunpack.c.h.b16 %v1222
        %v3069 = vunpack.c.l.b16 %v1223
        %v3070 = vunpack.c.h.b16 %v1223
        %v3071 = vunpack.c.l.b16 %v1224
        %v3072 = vunpack.c.h.b16 %v1224
        %v3073 = vunpack.c.l.b16 %v1225
        %v3074 = vunpack.c.h.b16 %v1225
        %v3075 = vunpack.c.l.b16 %v1226
        %v3076 = vunpack.c.h.b16 %v1226
        %v3077 = vunpack.c.l.b16 %v1227
        %v3078 = vunpack.c.h.b16 %v1227
        %v3079 = vunpack.c.l.b16 %v1228
        %v3080 = vunpack.c.h.b16 %v1228
        %v3081 = vunpack.c.l.b16 %v1229
        %v3082 = vunpack.c.h.b16 %v1229
        %v3083 = vunpack.c.l.b16 %v1230
        %v3084 = vunpack.c.h.b16 %v1230
        %v3085 = vunpack.c.l.b16 %v1231
        %v3086 = vunpack.c.h.b16 %v1231
        %v3087 = vunpack.c.l.b16 %v1232
        %v3088 = vunpack.c.h.b16 %v1232
        %v3089 = vunpack.c.l.b16 %v1233
        %v3090 = vunpack.c.h.b16 %v1233
        %v3091 = vunpack.c.l.b16 %v1234
        %v3092 = vunpack.c.h.b16 %v1234
        %v3093 = vunpack.c.l.b16 %v1235
        %v3094 = vunpack.c.h.b16 %v1235
        %v3095 = vunpack.c.l.b16 %v1236
        %v3096 = vunpack.c.h.b16 %v1236
        %v3097 = vunpack.c.l.b16 %v1237
        %v3098 = vunpack.c.h.b16 %v1237
        %v3099 = vunpack.c.l.b16 %v1238
        %v3100 = vunpack.c.h.b16 %v1238
        %v3101 = vunpack.c.l.b16 %v1239
        %v3102 = vunpack.c.h.b16 %v1239
        %v3103 = vunpack.c.l.b16 %v1240
        %v3104 = vunpack.c.h.b16 %v1240
        %v3105 = vunpack.c.l.b16 %v1241
        %v3106 = vunpack.c.h.b16 %v1241
        %v3107 = vunpack.c.l.b16 %v1242
        %v3108 = vunpack.c.h.b16 %v1242
        %v3109 = vunpack.c.l.b16 %v1243
        %v3110 = vunpack.c.h.b16 %v1243
        %v3111 = vunpack.c.l.b16 %v1244
        %v3112 = vunpack.c.h.b16 %v1244
        %v3113 = vunpack.c.l.b16 %v1245
        %v3114 = vunpack.c.h.b16 %v1245
        %v3115 = vunpack.c.l.b16 %v1246
        %v3116 = vunpack.c.h.b16 %v1246
        %v3117 = vunpack.c.l.b16 %v1247
        %v3118 = vunpack.c.h.b16 %v1247
        %v3119 = vunpack.c.l.b16 %v1248
        %v3120 = vunpack.c.h.b16 %v1248
        %v3121 = vunpack.c.l.b16 %v1249
        %v3122 = vunpack.c.h.b16 %v1249
        %v3123 = vunpack.c.l.b16 %v1250
        %v3124 = vunpack.c.h.b16 %v1250
        %v3125 = vunpack.c.l.b16 %v1251
        %v3126 = vunpack.c.h.b16 %v1251
        %v3127 = vunpack.c.l.b16 %v1252
        %v3128 = vunpack.c.h.b16 %v1252
        %v3129 = vunpack.c.l.b16 %v1253
        %v3130 = vunpack.c.h.b16 %v1253
        %v3131 = vunpack.c.l.b16 %v1254
        %v3132 = vunpack.c.h.b16 %v1254
        %v3133 = vunpack.c.l.b16 %v1255
        %v3134 = vunpack.c.h.b16 %v1255
        %v3135 = vunpack.c.l.b16 %v1256
        %v3136 = vunpack.c.h.b16 %v1256
        %v3137 = vunpack.c.l.b16 %v1257
        %v3138 = vunpack.c.h.b16 %v1257
        %v3139 = vunpack.c.l.b16 %v1258
        %v3140 = vunpack.c.h.b16 %v1258
        %v3141 = vunpack.c.l.b16 %v1259
        %v3142 = vunpack.c.h.b16 %v1259
        %v3143 = vunpack.c.l.b16 %v1260
        %v3144 = vunpack.c.h.b16 %v1260
        %v3145 = vunpack.c.l.b16 %v1261
        %v3146 = vunpack.c.h.b16 %v1261
        %v3147 = vunpack.c.l.b16 %v1262
        %v3148 = vunpack.c.h.b16 %v1262
        %v3149 = vunpack.c.l.b16 %v1263
        %v3150 = vunpack.c.h.b16 %v1263
        %v3151 = vunpack.c.l.b16 %v1264
        %v3152 = vunpack.c.h.b16 %v1264
        %v3153 = vunpack.c.l.b16 %v1265
        %v3154 = vunpack.c.h.b16 %v1265
        %v3155 = vunpack.c.l.b16 %v1266
        %v3156 = vunpack.c.h.b16 %v1266
        %v3157 = vunpack.c.l.b16 %v1267
        %v3158 = vunpack.c.h.b16 %v1267
        %v3159 = vunpack.c.l.b16 %v1268
        %v3160 = vunpack.c.h.b16 %v1268
        %v3161 = vunpack.c.l.b16 %v1269
        %v3162 = vunpack.c.h.b16 %v1269
        %v3163 = vunpack.c.l.b16 %v1270
        %v3164 = vunpack.c.h.b16 %v1270
        %v3165 = vunpack.c.l.b16 %v1271
        %v3166 = vunpack.c.h.b16 %v1271
        %v3167 = vunpack.c.l.b16 %v1272
        %v3168 = vunpack.c.h.b16 %v1272
        %v3169 = vunpack.c.l.b16 %v1273
        %v3170 = vunpack.c.h.b16 %v1273
        %v3171 = vunpack.c.l.b16 %v1274
        %v3172 = vunpack.c.h.b16 %v1274
        %v3173 = vunpack.c.l.b16 %v1275
        %v3174 = vunpack.c.h.b16 %v1275
        %v3175 = vunpack.c.l.b16 %v1276
        %v3176 = vunpack.c.h.b16 %v1276
        %v3177 = vunpack.c.l.b16 %v1277
        %v3178 = vunpack.c.h.b16 %v1277
        %v3179 = vunpack.c.l.b16 %v1278
        %v3180 = vunpack.c.h.b16 %v1278
        %v3181 = vunpack.c.l.b16 %v1279
        %v3182 = vunpack.c.h.b16 %v1279
        %v3183 = vunpack.c.l.b16 %v1280
        %v3184 = vunpack.c.h.b16 %v1280
        %v3185 = vunpack.c.l.b16 %v1281
        %v3186 = vunpack.c.h.b16 %v1281
        %v3187 = vunpack.c.l.b16 %v1282
        %v3188 = vunpack.c.h.b16 %v1282
        %v3189 = vunpack.c.l.b16 %v1283
        %v3190 = vunpack.c.h.b16 %v1283
        %v3191 = vunpack.c.l.b16 %v1284
        %v3192 = vunpack.c.h.b16 %v1284
        %v3193 = vunpack.c.l.b16 %v1285
        %v3194 = vunpack.c.h.b16 %v1285
        %v3195 = vunpack.c.l.b16 %v1286
        %v3196 = vunpack.c.h.b16 %v1286
        %v3197 = vunpack.c.l.b16 %v1287
        %v3198 = vunpack.c.h.b16 %v1287
        %v3199 = vunpack.c.l.b16 %v1288
        %v3200 = vunpack.c.h.b16 %v1288
        %v3201 = vunpack.c.l.b16 %v1289
        %v3202 = vunpack.c.h.b16 %v1289
        %v3203 = vunpack.c.l.b16 %v1290
        %v3204 = vunpack.c.h.b16 %v1290
        %v3205 = vunpack.c.l.b16 %v1291
        %v3206 = vunpack.c.h.b16 %v1291
        %v3207 = vunpack.c.l.b16 %v1292
        %v3208 = vunpack.c.h.b16 %v1292
        %v3209 = vunpack.c.l.b16 %v1293
        %v3210 = vunpack.c.h.b16 %v1293
        %v3211 = vunpack.c.l.b16 %v1294
        %v3212 = vunpack.c.h.b16 %v1294
        %v3213 = vunpack.c.l.b16 %v1295
        %v3214 = vunpack.c.h.b16 %v1295
        %v3215 = vunpack.c.l.b16 %v1296
        %v3216 = vunpack.c.h.b16 %v1296
        %v3217 = vunpack.c.l.b16 %v1297
        %v3218 = vunpack.c.h.b16 %v1297
        %v3219 = vunpack.c.l.b16 %v1298
        %v3220 = vunpack.c.h.b16 %v1298
        %v3221 = vunpack.c.l.b16 %v1299
        %v3222 = vunpack.c.h.b16 %v1299
        %v3223 = vunpack.c.l.b16 %v1300
        %v3224 = vunpack.c.h.b16 %v1300
        %v3225 = vunpack.c.l.b16 %v1301
        %v3226 = vunpack.c.h.b16 %v1301
        %v3227 = vunpack.c.l.b16 %v1302
        %v3228 = vunpack.c.h.b16 %v1302
        %v3229 = vunpack.c.l.b16 %v1303
        %v3230 = vunpack.c.h.b16 %v1303
        %v3231 = vunpack.c.l.b16 %v1304
        %v3232 = vunpack.c.h.b16 %v1304
        %v3233 = vunpack.c.l.b16 %v1305
        %v3234 = vunpack.c.h.b16 %v1305
        %v3235 = vunpack.c.l.b16 %v1306
        %v3236 = vunpack.c.h.b16 %v1306
        %v3237 = vunpack.c.l.b16 %v1307
        %v3238 = vunpack.c.h.b16 %v1307
        %v3239 = vunpack.c.l.b16 %v1308
        %v3240 = vunpack.c.h.b16 %v1308
        %v3241 = vunpack.c.l.b16 %v1309
        %v3242 = vunpack.c.h.b16 %v1309
        %v3243 = vunpack.c.l.b16 %v1310
        %v3244 = vunpack.c.h.b16 %v1310
        %v3245 = vunpack.c.l.b16 %v1311
        %v3246 = vunpack.c.h.b16 %v1311
        %v3247 = vunpack.c.l.b16 %v1312
        %v3248 = vunpack.c.h.b16 %v1312
        %v3249 = vunpack.c.l.b16 %v1313
        %v3250 = vunpack.c.h.b16 %v1313
        %v3251 = vunpack.c.l.b16 %v1314
        %v3252 = vunpack.c.h.b16 %v1314
        %v3253 = vunpack.c.l.b16 %v1315
        %v3254 = vunpack.c.h.b16 %v1315
        %v3255 = vunpack.c.l.b16 %v1316
        %v3256 = vunpack.c.h.b16 %v1316
        %v3257 = vunpack.c.l.b16 %v1317
        %v3258 = vunpack.c.h.b16 %v1317
        %v3259 = vunpack.c.l.b16 %v1318
        %v3260 = vunpack.c.h.b16 %v1318
        %v3261 = vunpack.c.l.b16 %v1319
        %v3262 = vunpack.c.h.b16 %v1319
        %v3263 = vunpack.c.l.b16 %v1320
        %v3264 = vunpack.c.h.b16 %v1320
        %v3265 = vunpack.c.l.b16 %v1321
        %v3266 = vunpack.c.h.b16 %v1321
        %v3267 = vunpack.c.l.b16 %v1322
        %v3268 = vunpack.c.h.b16 %v1322
        %v3269 = vunpack.c.l.b16 %v1323
        %v3270 = vunpack.c.h.b16 %v1323
        %v3271 = vunpack.c.l.b16 %v1324
        %v3272 = vunpack.c.h.b16 %v1324
        %v3273 = vunpack.c.l.b16 %v1325
        %v3274 = vunpack.c.h.b16 %v1325
        %v3275 = vunpack.c.l.b16 %v1326
        %v3276 = vunpack.c.h.b16 %v1326
        %v3277 = vunpack.c.l.b16 %v1327
        %v3278 = vunpack.c.h.b16 %v1327
        %v3279 = vunpack.c.l.b16 %v1328
        %v3280 = vunpack.c.h.b16 %v1328
        %v3281 = vunpack.c.l.b16 %v1329
        %v3282 = vunpack.c.h.b16 %v1329
        %v3283 = vunpack.c.l.b16 %v1330
        %v3284 = vunpack.c.h.b16 %v1330
        %v3285 = vunpack.c.l.b16 %v1331
        %v3286 = vunpack.c.h.b16 %v1331
        %v3287 = vunpack.c.l.b16 %v1332
        %v3288 = vunpack.c.h.b16 %v1332
        %v3289 = vunpack.c.l.b16 %v1333
        %v3290 = vunpack.c.h.b16 %v1333
        %v3291 = vunpack.c.l.b16 %v1334
        %v3292 = vunpack.c.h.b16 %v1334
        %v3293 = vunpack.c.l.b16 %v1335
        %v3294 = vunpack.c.h.b16 %v1335
        %v3295 = vunpack.c.l.b16 %v1336
        %v3296 = vunpack.c.h.b16 %v1336
        %v3297 = vunpack.c.l.b16 %v1337
        %v3298 = vunpack.c.h.b16 %v1337
        %v3299 = vunpack.c.l.b16 %v1338
        %v3300 = vunpack.c.h.b16 %v1338
        %v3301 = vunpack.c.l.b16 %v1339
        %v3302 = vunpack.c.h.b16 %v1339
        %v3303 = vunpack.c.l.b16 %v1340
        %v3304 = vunpack.c.h.b16 %v1340
        %v3305 = vunpack.c.l.b16 %v1341
        %v3306 = vunpack.c.h.b16 %v1341
        %v3307 = vunpack.c.l.b16 %v1342
        %v3308 = vunpack.c.h.b16 %v1342
        %v3309 = vunpack.c.l.b16 %v1343
        %v3310 = vunpack.c.h.b16 %v1343
        %v3311 = vunpack.c.l.b16 %v1344
        %v3312 = vunpack.c.h.b16 %v1344
        %v3313 = vunpack.c.l.b16 %v1345
        %v3314 = vunpack.c.h.b16 %v1345
        %v3315 = vunpack.c.l.b16 %v1346
        %v3316 = vunpack.c.h.b16 %v1346
        %v3317 = vunpack.c.l.b16 %v1347
        %v3318 = vunpack.c.h.b16 %v1347
        %v3319 = vunpack.c.l.b16 %v1348
        %v3320 = vunpack.c.h.b16 %v1348
        %v3321 = vunpack.c.l.b16 %v1349
        %v3322 = vunpack.c.h.b16 %v1349
        %v3323 = vunpack.c.l.b16 %v1350
        %v3324 = vunpack.c.h.b16 %v1350
        %v3325 = vunpack.c.l.b16 %v1351
        %v3326 = vunpack.c.h.b16 %v1351
        %v3327 = vunpack.c.l.b16 %v1352
        %v3328 = vunpack.c.h.b16 %v1352
        %v3329 = vunpack.c.l.b16 %v1353
        %v3330 = vunpack.c.h.b16 %v1353
        %v3331 = vunpack.c.l.b16 %v1354
        %v3332 = vunpack.c.h.b16 %v1354
        %v3333 = vunpack.c.l.b16 %v1355
        %v3334 = vunpack.c.h.b16 %v1355
        %v3335 = vunpack.c.l.b16 %v1356
        %v3336 = vunpack.c.h.b16 %v1356
        %v3337 = vunpack.c.l.b16 %v1357
        %v3338 = vunpack.c.h.b16 %v1357
        %v3339 = vunpack.c.l.b16 %v1358
        %v3340 = vunpack.c.h.b16 %v1358
        %v3341 = vunpack.c.l.b16 %v1359
        %v3342 = vunpack.c.h.b16 %v1359
        %v3343 = vunpack.c.l.b16 %v1360
        %v3344 = vunpack.c.h.b16 %v1360
        %v3345 = vunpack.c.l.b16 %v1361
        %v3346 = vunpack.c.h.b16 %v1361
        %v3347 = vunpack.c.l.b16 %v1362
        %v3348 = vunpack.c.h.b16 %v1362
        %v3349 = vunpack.c.l.b16 %v1363
        %v3350 = vunpack.c.h.b16 %v1363
        %v3351 = vunpack.c.l.b16 %v1364
        %v3352 = vunpack.c.h.b16 %v1364
        %v3353 = vunpack.c.l.b16 %v1365
        %v3354 = vunpack.c.h.b16 %v1365
        %v3355 = vunpack.c.l.b16 %v1366
        %v3356 = vunpack.c.h.b16 %v1366
        %v3357 = vunpack.c.l.b16 %v1367
        %v3358 = vunpack.c.h.b16 %v1367
        %v3359 = vunpack.c.l.b16 %v1368
        %v3360 = vunpack.c.h.b16 %v1368
        %v3361 = vunpack.c.l.b16 %v1369
        %v3362 = vunpack.c.h.b16 %v1369
        %v3363 = vunpack.c.l.b16 %v1370
        %v3364 = vunpack.c.h.b16 %v1370
        %v3365 = vunpack.c.l.b16 %v1371
        %v3366 = vunpack.c.h.b16 %v1371
        %v3367 = vunpack.c.l.b16 %v1372
        %v3368 = vunpack.c.h.b16 %v1372
        %v3369 = vunpack.c.l.b16 %v1373
        %v3370 = vunpack.c.h.b16 %v1373
        %v3371 = vunpack.c.l.b16 %v1374
        %v3372 = vunpack.c.h.b16 %v1374
        %v3373 = vunpack.c.l.b16 %v1375
        %v3374 = vunpack.c.h.b16 %v1375
        %v3375 = vunpack.c.l.b16 %v1376
        %v3376 = vunpack.c.h.b16 %v1376
        %v3377 = vunpack.c.l.b16 %v1377
        %v3378 = vunpack.c.h.b16 %v1377
        %v3379 = vunpack.c.l.b16 %v1378
        %v3380 = vunpack.c.h.b16 %v1378
        %v3381 = vunpack.c.l.b16 %v1379
        %v3382 = vunpack.c.h.b16 %v1379
        %v3383 = vunpack.c.l.b16 %v1380
        %v3384 = vunpack.c.h.b16 %v1380
        %v3385 = vunpack.c.l.b16 %v1381
        %v3386 = vunpack.c.h.b16 %v1381
        %v3387 = vunpack.c.l.b16 %v1382
        %v3388 = vunpack.c.h.b16 %v1382
        %v3389 = vunpack.c.l.b16 %v1383
        %v3390 = vunpack.c.h.b16 %v1383
        %v3391 = vunpack.c.l.b16 %v1384
        %v3392 = vunpack.c.h.b16 %v1384
        %v3393 = vunpack.c.l.b16 %v1385
        %v3394 = vunpack.c.h.b16 %v1385
        %v3395 = vunpack.c.l.b16 %v1386
        %v3396 = vunpack.c.h.b16 %v1386
        %v3397 = vunpack.c.l.b16 %v1387
        %v3398 = vunpack.c.h.b16 %v1387
        %v3399 = vunpack.c.l.b16 %v1388
        %v3400 = vunpack.c.h.b16 %v1388
        %v3401 = vunpack.c.l.b16 %v1389
        %v3402 = vunpack.c.h.b16 %v1389
        %v3403 = vunpack.c.l.b16 %v1390
        %v3404 = vunpack.c.h.b16 %v1390
        %v3405 = vunpack.c.l.b16 %v1391
        %v3406 = vunpack.c.h.b16 %v1391
        %v3407 = vunpack.c.l.b16 %v1392
        %v3408 = vunpack.c.h.b16 %v1392
        %v3409 = vunpack.c.l.b16 %v1393
        %v3410 = vunpack.c.h.b16 %v1393
        %v3411 = vunpack.c.l.b16 %v1394
        %v3412 = vunpack.c.h.b16 %v1394
        %v3413 = vunpack.c.l.b16 %v1395
        %v3414 = vunpack.c.h.b16 %v1395
        %v3415 = vunpack.c.l.b16 %v1396
        %v3416 = vunpack.c.h.b16 %v1396
        %v3417 = vunpack.c.l.b16 %v1397
        %v3418 = vunpack.c.h.b16 %v1397
        %v3419 = vunpack.c.l.b16 %v1398
        %v3420 = vunpack.c.h.b16 %v1398
        %v3421 = vunpack.c.l.b16 %v1399
        %v3422 = vunpack.c.h.b16 %v1399
        %v3423 = vunpack.c.l.b16 %v1400
        %v3424 = vunpack.c.h.b16 %v1400
        %v3425 = vunpack.c.l.b16 %v1401
        %v3426 = vunpack.c.h.b16 %v1401
        %v3427 = vunpack.c.l.b16 %v1402
        %v3428 = vunpack.c.h.b16 %v1402
        %v3429 = vunpack.c.l.b16 %v1403
        %v3430 = vunpack.c.h.b16 %v1403
        %v3431 = vunpack.c.l.b16 %v1404
        %v3432 = vunpack.c.h.b16 %v1404
        %v3433 = vunpack.c.l.b16 %v1405
        %v3434 = vunpack.c.h.b16 %v1405
        %v3435 = vunpack.c.l.b16 %v1406
        %v3436 = vunpack.c.h.b16 %v1406
        %v3437 = vunpack.c.l.b16 %v1407
        %v3438 = vunpack.c.h.b16 %v1407
        %v3439 = vunpack.c.l.b16 %v1408
        %v3440 = vunpack.c.h.b16 %v1408
        %v3441 = vunpack.c.l.b16 %v1409
        %v3442 = vunpack.c.h.b16 %v1409
        %v3443 = vunpack.c.l.b16 %v1410
        %v3444 = vunpack.c.h.b16 %v1410
        %v3445 = vunpack.c.l.b16 %v1411
        %v3446 = vunpack.c.h.b16 %v1411
        %v3447 = vunpack.c.l.b16 %v1412
        %v3448 = vunpack.c.h.b16 %v1412
        %v3449 = vunpack.c.l.b16 %v1413
        %v3450 = vunpack.c.h.b16 %v1413
        %v3451 = vunpack.c.l.b16 %v1414
        %v3452 = vunpack.c.h.b16 %v1414
        %v3453 = vunpack.c.l.b16 %v1415
        %v3454 = vunpack.c.h.b16 %v1415
        %v3455 = vunpack.c.l.b16 %v1416
        %v3456 = vunpack.c.h.b16 %v1416
        %v3457 = vunpack.c.l.b16 %v1417
        %v3458 = vunpack.c.h.b16 %v1417
        %v3459 = vunpack.c.l.b16 %v1418
        %v3460 = vunpack.c.h.b16 %v1418
        %v3461 = vunpack.c.l.b16 %v1419
        %v3462 = vunpack.c.h.b16 %v1419
        %v3463 = vunpack.c.l.b16 %v1420
        %v3464 = vunpack.c.h.b16 %v1420
        %v3465 = vunpack.c.l.b16 %v1421
        %v3466 = vunpack.c.h.b16 %v1421
        %v3467 = vunpack.c.l.b16 %v1422
        %v3468 = vunpack.c.h.b16 %v1422
        %v3469 = vunpack.c.l.b16 %v1423
        %v3470 = vunpack.c.h.b16 %v1423
        %v3471 = vunpack.c.l.b16 %v1424
        %v3472 = vunpack.c.h.b16 %v1424
        %v3473 = vunpack.c.l.b16 %v1425
        %v3474 = vunpack.c.h.b16 %v1425
        %v3475 = vunpack.c.l.b16 %v1426
        %v3476 = vunpack.c.h.b16 %v1426
        %v3477 = vunpack.c.l.b16 %v1427
        %v3478 = vunpack.c.h.b16 %v1427
        %v3479 = vunpack.c.l.b16 %v1428
        %v3480 = vunpack.c.h.b16 %v1428
        %v3481 = vunpack.c.l.b16 %v1429
        %v3482 = vunpack.c.h.b16 %v1429
        %v3483 = vunpack.c.l.b16 %v1430
        %v3484 = vunpack.c.h.b16 %v1430
        %v3485 = vunpack.c.l.b16 %v1431
        %v3486 = vunpack.c.h.b16 %v1431
        %v3487 = vunpack.c.l.b16 %v1432
        %v3488 = vunpack.c.h.b16 %v1432
        %v3489 = vunpack.c.l.b16 %v1433
        %v3490 = vunpack.c.h.b16 %v1433
        %v3491 = vunpack.c.l.b16 %v1434
        %v3492 = vunpack.c.h.b16 %v1434
        %v3493 = vunpack.c.l.b16 %v1435
        %v3494 = vunpack.c.h.b16 %v1435
        %v3495 = vunpack.c.l.b16 %v1436
        %v3496 = vunpack.c.h.b16 %v1436
        %v3497 = vunpack.c.l.b16 %v1437
        %v3498 = vunpack.c.h.b16 %v1437
        %v3499 = vunpack.c.l.b16 %v1438
        %v3500 = vunpack.c.h.b16 %v1438
        %v3501 = vunpack.c.l.b16 %v1439
        %v3502 = vunpack.c.h.b16 %v1439
        %v3503 = vunpack.c.l.b16 %v1440
        %v3504 = vunpack.c.h.b16 %v1440
        %v3505 = vunpack.c.l.b16 %v1441
        %v3506 = vunpack.c.h.b16 %v1441
        %v3507 = vunpack.c.l.b16 %v1442
        %v3508 = vunpack.c.h.b16 %v1442
        %v3509 = vunpack.c.l.b16 %v1443
        %v3510 = vunpack.c.h.b16 %v1443
        %v3511 = vunpack.c.l.b16 %v1444
        %v3512 = vunpack.c.h.b16 %v1444
        %v3513 = vunpack.c.l.b16 %v1445
        %v3514 = vunpack.c.h.b16 %v1445
        %v3515 = vunpack.c.l.b16 %v1446
        %v3516 = vunpack.c.h.b16 %v1446
        %v3517 = vunpack.c.l.b16 %v1447
        %v3518 = vunpack.c.h.b16 %v1447
        %v3519 = vunpack.c.l.b16 %v1448
        %v3520 = vunpack.c.h.b16 %v1448
        %v3521 = vunpack.c.l.b16 %v1449
        %v3522 = vunpack.c.h.b16 %v1449
        %v3523 = vunpack.c.l.b16 %v1450
        %v3524 = vunpack.c.h.b16 %v1450
        %v3525 = vunpack.c.l.b16 %v1451
        %v3526 = vunpack.c.h.b16 %v1451
        %v3527 = vunpack.c.l.b16 %v1452
        %v3528 = vunpack.c.h.b16 %v1452
        %v3529 = vunpack.c.l.b16 %v1453
        %v3530 = vunpack.c.h.b16 %v1453
        %v3531 = vunpack.c.l.b16 %v1454
        %v3532 = vunpack.c.h.b16 %v1454
        %v3533 = vunpack.c.l.b16 %v1455
        %v3534 = vunpack.c.h.b16 %v1455
        %v3535 = vunpack.c.l.b16 %v1456
        %v3536 = vunpack.c.h.b16 %v1456
        %v3537 = vunpack.c.l.b16 %v1457
        %v3538 = vunpack.c.h.b16 %v1457
        %v3539 = vunpack.c.l.b16 %v1458
        %v3540 = vunpack.c.h.b16 %v1458
        %v3541 = vunpack.c.l.b16 %v1459
        %v3542 = vunpack.c.h.b16 %v1459
        %v3543 = vunpack.c.l.b16 %v1460
        %v3544 = vunpack.c.h.b16 %v1460
        %v3545 = vunpack.c.l.b16 %v1461
        %v3546 = vunpack.c.h.b16 %v1461
        %v3547 = vunpack.c.l.b16 %v1462
        %v3548 = vunpack.c.h.b16 %v1462
        %v3549 = vunpack.c.l.b16 %v1463
        %v3550 = vunpack.c.h.b16 %v1463
        %v3551 = vunpack.c.l.b16 %v1464
        %v3552 = vunpack.c.h.b16 %v1464
        %v3553 = vunpack.c.l.b16 %v1465
        %v3554 = vunpack.c.h.b16 %v1465
        %v3555 = vunpack.c.l.b16 %v1466
        %v3556 = vunpack.c.h.b16 %v1466
        %v3557 = vunpack.c.l.b16 %v1467
        %v3558 = vunpack.c.h.b16 %v1467
        %v3559 = vunpack.c.l.b16 %v1468
        %v3560 = vunpack.c.h.b16 %v1468
        %v3561 = vunpack.c.l.b16 %v1469
        %v3562 = vunpack.c.h.b16 %v1469
        %v3563 = vunpack.c.l.b16 %v1470
        %v3564 = vunpack.c.h.b16 %v1470
        %v3565 = vunpack.c.l.b16 %v1471
        %v3566 = vunpack.c.h.b16 %v1471
        %v3567 = vunpack.c.l.b16 %v1472
        %v3568 = vunpack.c.h.b16 %v1472
        %v3569 = vunpack.c.l.b16 %v1473
        %v3570 = vunpack.c.h.b16 %v1473
        %v3571 = vunpack.c.l.b16 %v1474
        %v3572 = vunpack.c.h.b16 %v1474
        %v3573 = vunpack.c.l.b16 %v1475
        %v3574 = vunpack.c.h.b16 %v1475
        %v3575 = vunpack.c.l.b16 %v1476
        %v3576 = vunpack.c.h.b16 %v1476
        %v3577 = vunpack.c.l.b16 %v1477
        %v3578 = vunpack.c.h.b16 %v1477
        %v3579 = vunpack.c.l.b16 %v1478
        %v3580 = vunpack.c.h.b16 %v1478
        %v3581 = vunpack.c.l.b16 %v1479
        %v3582 = vunpack.c.h.b16 %v1479
        %v3583 = vunpack.c.l.b16 %v1480
        %v3584 = vunpack.c.h.b16 %v1480
        %v3585 = vunpack.c.l.b16 %v1481
        %v3586 = vunpack.c.h.b16 %v1481
        %v3587 = vunpack.c.l.b16 %v1482
        %v3588 = vunpack.c.h.b16 %v1482
        %v3589 = vunpack.c.l.b16 %v1483
        %v3590 = vunpack.c.h.b16 %v1483
        %v3591 = vunpack.c.l.b16 %v1484
        %v3592 = vunpack.c.h.b16 %v1484
        %v3593 = vunpack.c.l.b16 %v1485
        %v3594 = vunpack.c.h.b16 %v1485
        %v3595 = vunpack.c.l.b16 %v1486
        %v3596 = vunpack.c.h.b16 %v1486
        %v3597 = vunpack.c.l.b16 %v1487
        %v3598 = vunpack.c.h.b16 %v1487
        %v3599 = vunpack.c.l.b16 %v1488
        %v3600 = vunpack.c.h.b16 %v1488
        %v3601 = vunpack.c.l.b16 %v1489
        %v3602 = vunpack.c.h.b16 %v1489
        %v3603 = vunpack.c.l.b16 %v1490
        %v3604 = vunpack.c.h.b16 %v1490
        %v3605 = vunpack.c.l.b16 %v1491
        %v3606 = vunpack.c.h.b16 %v1491
        %v3607 = vunpack.c.l.b16 %v1492
        %v3608 = vunpack.c.h.b16 %v1492
        %v3609 = vunpack.c.l.b16 %v1493
        %v3610 = vunpack.c.h.b16 %v1493
        %v3611 = vunpack.c.l.b16 %v1494
        %v3612 = vunpack.c.h.b16 %v1494
        %v3613 = vunpack.c.l.b16 %v1495
        %v3614 = vunpack.c.h.b16 %v1495
        %v3615 = vunpack.c.l.b16 %v1496
        %v3616 = vunpack.c.h.b16 %v1496
        %v3617 = vunpack.c.l.b16 %v1497
        %v3618 = vunpack.c.h.b16 %v1497
        %v3619 = vunpack.c.l.b16 %v1498
        %v3620 = vunpack.c.h.b16 %v1498
        %v3621 = vunpack.c.l.b16 %v1499
        %v3622 = vunpack.c.h.b16 %v1499
        %v3623 = vunpack.c.l.b16 %v1500
        %v3624 = vunpack.c.h.b16 %v1500
        %v3625 = vunpack.c.l.b16 %v1501
        %v3626 = vunpack.c.h.b16 %v1501
        %v3627 = vunpack.c.l.b16 %v1502
        %v3628 = vunpack.c.h.b16 %v1502
        %v3629 = vunpack.c.l.b16 %v1503
        %v3630 = vunpack.c.h.b16 %v1503
        %v3631 = vunpack.c.l.b16 %v1504
        %v3632 = vunpack.c.h.b16 %v1504
        %v3633 = vunpack.c.l.b16 %v1505
        %v3634 = vunpack.c.h.b16 %v1505
        %v3635 = vunpack.c.l.b16 %v1506
        %v3636 = vunpack.c.h.b16 %v1506
        %v3637 = vunpack.c.l.b16 %v1507
        %v3638 = vunpack.c.h.b16 %v1507
        %v3639 = vunpack.c.l.b16 %v1508
        %v3640 = vunpack.c.h.b16 %v1508
        %v3641 = vunpack.c.l.b16 %v1509
        %v3642 = vunpack.c.h.b16 %v1509
        %v3643 = vunpack.c.l.b16 %v1510
        %v3644 = vunpack.c.h.b16 %v1510
        %v3645 = vunpack.c.l.b16 %v1511
        %v3646 = vunpack.c.h.b16 %v1511
        %v3647 = vunpack.c.l.b16 %v1512
        %v3648 = vunpack.c.h.b16 %v1512
        %v3649 = vunpack.c.l.b16 %v1513
        %v3650 = vunpack.c.h.b16 %v1513
        %v3651 = vunpack.c.l.b16 %v1514
        %v3652 = vunpack.c.h.b16 %v1514
        %v3653 = vunpack.c.l.b16 %v1515
        %v3654 = vunpack.c.h.b16 %v1515
        %v3655 = vunpack.c.l.b16 %v1516
        %v3656 = vunpack.c.h.b16 %v1516
        %v3657 = vunpack.c.l.b16 %v1517
        %v3658 = vunpack.c.h.b16 %v1517
        %v3659 = vunpack.c.l.b16 %v1518
        %v3660 = vunpack.c.h.b16 %v1518
        %v3661 = vunpack.c.l.b16 %v1519
        %v3662 = vunpack.c.h.b16 %v1519
        %v3663 = vunpack.c.l.b16 %v1520
        %v3664 = vunpack.c.h.b16 %v1520
        %v3665 = vunpack.c.l.b16 %v1521
        %v3666 = vunpack.c.h.b16 %v1521
        %v3667 = vunpack.c.l.b16 %v1522
        %v3668 = vunpack.c.h.b16 %v1522
        %v3669 = vunpack.c.l.b16 %v1523
        %v3670 = vunpack.c.h.b16 %v1523
        %v3671 = vunpack.c.l.b16 %v1524
        %v3672 = vunpack.c.h.b16 %v1524
        %v3673 = vunpack.c.l.b16 %v1525
        %v3674 = vunpack.c.h.b16 %v1525
        %v3675 = vunpack.c.l.b16 %v1526
        %v3676 = vunpack.c.h.b16 %v1526
        %v3677 = vunpack.c.l.b16 %v1527
        %v3678 = vunpack.c.h.b16 %v1527
        %v3679 = vunpack.c.l.b16 %v1528
        %v3680 = vunpack.c.h.b16 %v1528
        %v3681 = vunpack.c.l.b16 %v1529
        %v3682 = vunpack.c.h.b16 %v1529
        %v3683 = vunpack.c.l.b16 %v1530
        %v3684 = vunpack.c.h.b16 %v1530
        %v3685 = vunpack.c.l.b16 %v1531
        %v3686 = vunpack.c.h.b16 %v1531
        %v3687 = vunpack.c.l.b16 %v1532
        %v3688 = vunpack.c.h.b16 %v1532
        %v3689 = vunpack.c.l.b16 %v1533
        %v3690 = vunpack.c.h.b16 %v1533
        %v3691 = vunpack.c.l.b16 %v1534
        %v3692 = vunpack.c.h.b16 %v1534
        %v3693 = vunpack.c.l.b16 %v1535
        %v3694 = vunpack.c.h.b16 %v1535
        %v3695 = vunpack.c.l.b16 %v1536
        %v3696 = vunpack.c.h.b16 %v1536
        %v3697 = vunpack.c.l.b16 %v1537
        %v3698 = vunpack.c.h.b16 %v1537
        %v3699 = vunpack.c.l.b16 %v1538
        %v3700 = vunpack.c.h.b16 %v1538
        %v3701 = vunpack.c.l.b16 %v1539
        %v3702 = vunpack.c.h.b16 %v1539
        %v3703 = vunpack.c.l.b16 %v1540
        %v3704 = vunpack.c.h.b16 %v1540
        %v3705 = vunpack.c.l.b16 %v1541
        %v3706 = vunpack.c.h.b16 %v1541
        %v3707 = vunpack.c.l.b16 %v1542
        %v3708 = vunpack.c.h.b16 %v1542
        %v3709 = vunpack.c.l.b16 %v1543
        %v3710 = vunpack.c.h.b16 %v1543
        %v3711 = vunpack.c.l.b16 %v1544
        %v3712 = vunpack.c.h.b16 %v1544
        %v3713 = vunpack.c.l.b16 %v1545
        %v3714 = vunpack.c.h.b16 %v1545
        %v3715 = vunpack.c.l.b16 %v1546
        %v3716 = vunpack.c.h.b16 %v1546
        %v3717 = vunpack.c.l.b16 %v1547
        %v3718 = vunpack.c.h.b16 %v1547
        %v3719 = vunpack.c.l.b16 %v1548
        %v3720 = vunpack.c.h.b16 %v1548
        %v3721 = vunpack.c.l.b16 %v1549
        %v3722 = vunpack.c.h.b16 %v1549
        %v3723 = vunpack.c.l.b16 %v1550
        %v3724 = vunpack.c.h.b16 %v1550
        %v3725 = vunpack.c.l.b16 %v1551
        %v3726 = vunpack.c.h.b16 %v1551
        %v3727 = vunpack.c.l.b16 %v1552
        %v3728 = vunpack.c.h.b16 %v1552
        %v3729 = vunpack.c.l.b16 %v1553
        %v3730 = vunpack.c.h.b16 %v1553
        %v3731 = vunpack.c.l.b16 %v1554
        %v3732 = vunpack.c.h.b16 %v1554
        %v3733 = vunpack.c.l.b16 %v1555
        %v3734 = vunpack.c.h.b16 %v1555
        %v3735 = vunpack.c.l.b16 %v1556
        %v3736 = vunpack.c.h.b16 %v1556
        %v3737 = vunpack.c.l.b16 %v1557
        %v3738 = vunpack.c.h.b16 %v1557
        %v3739 = vunpack.c.l.b16 %v1558
        %v3740 = vunpack.c.h.b16 %v1558
        %v3741 = vunpack.c.l.b16 %v1559
        %v3742 = vunpack.c.h.b16 %v1559
        %v3743 = vunpack.c.l.b16 %v1560
        %v3744 = vunpack.c.h.b16 %v1560
        %v3745 = vunpack.c.l.b16 %v1561
        %v3746 = vunpack.c.h.b16 %v1561
        %v3747 = vunpack.c.l.b16 %v1562
        %v3748 = vunpack.c.h.b16 %v1562
        %v3749 = vunpack.c.l.b16 %v1563
        %v3750 = vunpack.c.h.b16 %v1563
        %v3751 = vunpack.c.l.b16 %v1564
        %v3752 = vunpack.c.h.b16 %v1564
        %v3753 = vunpack.c.l.b16 %v1565
        %v3754 = vunpack.c.h.b16 %v1565
        %v3755 = vunpack.c.l.b16 %v1566
        %v3756 = vunpack.c.h.b16 %v1566
        %v3757 = vunpack.c.l.b16 %v1567
        %v3758 = vunpack.c.h.b16 %v1567
        %v3759 = vunpack.c.l.b16 %v1568
        %v3760 = vunpack.c.h.b16 %v1568
        %v3761 = vunpack.c.l.b16 %v1569
        %v3762 = vunpack.c.h.b16 %v1569
        %v3763 = vunpack.c.l.b16 %v1570
        %v3764 = vunpack.c.h.b16 %v1570
        %v3765 = vunpack.c.l.b16 %v1571
        %v3766 = vunpack.c.h.b16 %v1571
        %v3767 = vunpack.c.l.b16 %v1572
        %v3768 = vunpack.c.h.b16 %v1572
        %v3769 = vunpack.c.l.b16 %v1573
        %v3770 = vunpack.c.h.b16 %v1573
        %v3771 = vunpack.c.l.b16 %v1574
        %v3772 = vunpack.c.h.b16 %v1574
        %v3773 = vunpack.c.l.b16 %v1575
        %v3774 = vunpack.c.h.b16 %v1575
        %v3775 = vunpack.c.l.b16 %v1576
        %v3776 = vunpack.c.h.b16 %v1576
        %v3777 = vunpack.c.l.b16 %v1577
        %v3778 = vunpack.c.h.b16 %v1577
        %v3779 = vunpack.c.l.b16 %v1578
        %v3780 = vunpack.c.h.b16 %v1578
        %v3781 = vunpack.c.l.b16 %v1579
        %v3782 = vunpack.c.h.b16 %v1579
        %v3783 = vunpack.c.l.b16 %v1580
        %v3784 = vunpack.c.h.b16 %v1580
        %v3785 = vunpack.c.l.b16 %v1581
        %v3786 = vunpack.c.h.b16 %v1581
        %v3787 = vunpack.c.l.b16 %v1582
        %v3788 = vunpack.c.h.b16 %v1582
        %v3789 = vunpack.c.l.b16 %v1583
        %v3790 = vunpack.c.h.b16 %v1583
        %v3791 = vunpack.c.l.b16 %v1584
        %v3792 = vunpack.c.h.b16 %v1584
        %v3793 = vunpack.c.l.b16 %v1585
        %v3794 = vunpack.c.h.b16 %v1585
        %v3795 = vunpack.c.l.b16 %v1586
        %v3796 = vunpack.c.h.b16 %v1586
        %v3797 = vunpack.c.l.b16 %v1587
        %v3798 = vunpack.c.h.b16 %v1587
        %v3799 = vunpack.c.l.b16 %v1588
        %v3800 = vunpack.c.h.b16 %v1588
        %v3801 = vunpack.c.l.b16 %v1589
        %v3802 = vunpack.c.h.b16 %v1589
        %v3803 = vunpack.c.l.b16 %v1590
        %v3804 = vunpack.c.h.b16 %v1590
        %v3805 = vunpack.c.l.b16 %v1591
        %v3806 = vunpack.c.h.b16 %v1591
        %v3807 = vunpack.c.l.b16 %v1592
        %v3808 = vunpack.c.h.b16 %v1592
        %v3809 = vunpack.c.l.b16 %v1593
        %v3810 = vunpack.c.h.b16 %v1593
        %v3811 = vunpack.c.l.b16 %v1594
        %v3812 = vunpack.c.h.b16 %v1594
        %v3813 = vunpack.c.l.b16 %v1595
        %v3814 = vunpack.c.h.b16 %v1595
        %v3815 = vunpack.c.l.b16 %v1596
        %v3816 = vunpack.c.h.b16 %v1596
        %v3817 = vunpack.c.l.b16 %v1597
        %v3818 = vunpack.c.h.b16 %v1597
        %v3819 = vunpack.c.l.b16 %v1598
        %v3820 = vunpack.c.h.b16 %v1598
        %v3821 = vunpack.c.l.b16 %v1599
        %v3822 = vunpack.c.h.b16 %v1599
        %v3823 = vunpack.c.l.b16 %v1600
        %v3824 = vunpack.c.h.b16 %v1600
        %v3825 = vunpack.c.l.b16 %v1601
        %v3826 = vunpack.c.h.b16 %v1601
        %v3827 = vunpack.c.l.b16 %v1602
        %v3828 = vunpack.c.h.b16 %v1602
        %v3829 = vunpack.c.l.b16 %v1603
        %v3830 = vunpack.c.h.b16 %v1603
        %v3831 = vunpack.c.l.b16 %v1604
        %v3832 = vunpack.c.h.b16 %v1604
        %v3833 = vunpack.c.l.b16 %v1605
        %v3834 = vunpack.c.h.b16 %v1605
        %v3835 = vunpack.c.l.b16 %v1606
        %v3836 = vunpack.c.h.b16 %v1606
        %v3837 = vunpack.c.l.b16 %v1607
        %v3838 = vunpack.c.h.b16 %v1607
        %v3839 = vunpack.c.l.b16 %v1608
        %v3840 = vunpack.c.h.b16 %v1608
        %v3841 = vunpack.c.l.b16 %v1609
        %v3842 = vunpack.c.h.b16 %v1609
        %v3843 = vunpack.c.l.b16 %v1610
        %v3844 = vunpack.c.h.b16 %v1610
        %v3845 = vunpack.c.l.b16 %v1611
        %v3846 = vunpack.c.h.b16 %v1611
        %v3847 = vunpack.c.l.b16 %v1612
        %v3848 = vunpack.c.h.b16 %v1612
        %v3849 = vunpack.c.l.b16 %v1613
        %v3850 = vunpack.c.h.b16 %v1613
        %v3851 = vunpack.c.l.b16 %v1614
        %v3852 = vunpack.c.h.b16 %v1614
        %v3853 = vunpack.c.l.b16 %v1615
        %v3854 = vunpack.c.h.b16 %v1615
        %v3855 = vunpack.c.l.b16 %v1616
        %v3856 = vunpack.c.h.b16 %v1616
        %v3857 = vunpack.c.l.b16 %v1617
        %v3858 = vunpack.c.h.b16 %v1617
        %v3859 = vunpack.c.l.b16 %v1618
        %v3860 = vunpack.c.h.b16 %v1618
        %v3861 = vunpack.c.l.b16 %v1619
        %v3862 = vunpack.c.h.b16 %v1619
        %v3863 = vunpack.c.l.b16 %v1620
        %v3864 = vunpack.c.h.b16 %v1620
        %v3865 = vunpack.c.l.b16 %v1621
        %v3866 = vunpack.c.h.b16 %v1621
        %v3867 = vunpack.c.l.b16 %v1622
        %v3868 = vunpack.c.h.b16 %v1622
        %v3869 = vunpack.c.l.b16 %v1623
        %v3870 = vunpack.c.h.b16 %v1623
        %v3871 = vunpack.c.l.b16 %v1624
        %v3872 = vunpack.c.h.b16 %v1624
        %v3873 = vunpack.c.l.b16 %v1625
        %v3874 = vunpack.c.h.b16 %v1625
        %v3875 = vunpack.c.l.b16 %v1626
        %v3876 = vunpack.c.h.b16 %v1626
        %v3877 = vunpack.c.l.b16 %v1627
        %v3878 = vunpack.c.h.b16 %v1627
        %v3879 = vunpack.c.l.b16 %v1628
        %v3880 = vunpack.c.h.b16 %v1628
        %v3881 = vunpack.c.l.b16 %v1629
        %v3882 = vunpack.c.h.b16 %v1629
        %v3883 = vunpack.c.l.b16 %v1630
        %v3884 = vunpack.c.h.b16 %v1630
        %v3885 = vunpack.c.l.b16 %v1631
        %v3886 = vunpack.c.h.b16 %v1631
        %v3887 = vunpack.c.l.b16 %v1632
        %v3888 = vunpack.c.h.b16 %v1632
        %v3889 = vunpack.c.l.b16 %v1633
        %v3890 = vunpack.c.h.b16 %v1633
        %v3891 = vunpack.c.l.b16 %v1634
        %v3892 = vunpack.c.h.b16 %v1634
        %v3893 = vunpack.c.l.b16 %v1635
        %v3894 = vunpack.c.h.b16 %v1635
        %v3895 = vunpack.c.l.b16 %v1636
        %v3896 = vunpack.c.h.b16 %v1636
        %v3897 = vunpack.c.l.b16 %v1637
        %v3898 = vunpack.c.h.b16 %v1637
        %v3899 = vunpack.c.l.b16 %v1638
        %v3900 = vunpack.c.h.b16 %v1638
        %v3901 = vunpack.c.l.b16 %v1639
        %v3902 = vunpack.c.h.b16 %v1639
        %v3903 = vunpack.c.l.b16 %v1640
        %v3904 = vunpack.c.h.b16 %v1640
        %v3905 = vunpack.c.l.b16 %v1641
        %v3906 = vunpack.c.h.b16 %v1641
        %v3907 = vunpack.c.l.b16 %v1642
        %v3908 = vunpack.c.h.b16 %v1642
        %v3909 = vunpack.c.l.b16 %v1643
        %v3910 = vunpack.c.h.b16 %v1643
        %v3911 = vunpack.c.l.b16 %v1644
        %v3912 = vunpack.c.h.b16 %v1644
        %v3913 = vunpack.c.l.b16 %v1645
        %v3914 = vunpack.c.h.b16 %v1645
        %v3915 = vunpack.c.l.b16 %v1646
        %v3916 = vunpack.c.h.b16 %v1646
        %v3917 = vunpack.c.l.b16 %v1647
        %v3918 = vunpack.c.h.b16 %v1647
        %v3919 = vunpack.c.l.b16 %v1648
        %v3920 = vunpack.c.h.b16 %v1648
        %v3921 = vunpack.c.l.b16 %v1649
        %v3922 = vunpack.c.h.b16 %v1649
        %v3923 = vunpack.c.l.b16 %v1650
        %v3924 = vunpack.c.h.b16 %v1650
        %v3925 = vunpack.c.l.b16 %v1651
        %v3926 = vunpack.c.h.b16 %v1651
        %v3927 = vunpack.c.l.b16 %v1652
        %v3928 = vunpack.c.h.b16 %v1652
        %v3929 = vunpack.c.l.b16 %v1653
        %v3930 = vunpack.c.h.b16 %v1653
        %v3931 = vunpack.c.l.b16 %v1654
        %v3932 = vunpack.c.h.b16 %v1654
        %v3933 = vunpack.c.l.b16 %v1655
        %v3934 = vunpack.c.h.b16 %v1655
        %v3935 = vunpack.c.l.b16 %v1656
        %v3936 = vunpack.c.h.b16 %v1656
        %v3937 = vunpack.c.l.b16 %v1657
        %v3938 = vunpack.c.h.b16 %v1657
        %v3939 = vunpack.c.l.b16 %v1658
        %v3940 = vunpack.c.h.b16 %v1658
        %v3941 = vunpack.c.l.b16 %v1659
        %v3942 = vunpack.c.h.b16 %v1659
        %v3943 = vunpack.c.l.b16 %v1660
        %v3944 = vunpack.c.h.b16 %v1660
        %v3945 = vunpack.c.l.b16 %v1661
        %v3946 = vunpack.c.h.b16 %v1661
        %v3947 = vunpack.c.l.b16 %v1662
        %v3948 = vunpack.c.h.b16 %v1662
        %v3949 = vunpack.c.l.b16 %v1663
        %v3950 = vunpack.c.h.b16 %v1663
        %v3951 = vunpack.c.l.b16 %v1664
        %v3952 = vunpack.c.h.b16 %v1664
        %v3953 = vunpack.c.l.b16 %v1665
        %v3954 = vunpack.c.h.b16 %v1665
        %v3955 = vunpack.c.l.b16 %v1666
        %v3956 = vunpack.c.h.b16 %v1666
        %v3957 = vunpack.c.l.b16 %v1667
        %v3958 = vunpack.c.h.b16 %v1667
        %v3959 = vunpack.c.l.b16 %v1668
        %v3960 = vunpack.c.h.b16 %v1668
        %v3961 = vunpack.c.l.b16 %v1669
        %v3962 = vunpack.c.h.b16 %v1669
        %v3963 = vunpack.c.l.b16 %v1670
        %v3964 = vunpack.c.h.b16 %v1670
        %v3965 = vunpack.c.l.b16 %v1671
        %v3966 = vunpack.c.h.b16 %v1671
        %v3967 = vunpack.c.l.b16 %v1672
        %v3968 = vunpack.c.h.b16 %v1672
        %v3969 = vunpack.c.l.b16 %v1673
        %v3970 = vunpack.c.h.b16 %v1673
        %v3971 = vunpack.c.l.b16 %v1674
        %v3972 = vunpack.c.h.b16 %v1674
        %v3973 = vunpack.c.l.b16 %v1675
        %v3974 = vunpack.c.h.b16 %v1675
        %v3975 = vunpack.c.l.b16 %v1676
        %v3976 = vunpack.c.h.b16 %v1676
        %v3977 = vunpack.c.l.b16 %v1677
        %v3978 = vunpack.c.h.b16 %v1677
        %v3979 = vunpack.c.l.b16 %v1678
        %v3980 = vunpack.c.h.b16 %v1678
        %v3981 = vunpack.c.l.b16 %v1679
        %v3982 = vunpack.c.h.b16 %v1679
        %v3983 = vunpack.c.l.b16 %v1680
        %v3984 = vunpack.c.h.b16 %v1680
        %v3985 = vpack.c.b16 %v2495, %v2485
        %v3986 = vpack.c.b16 %v2496, %v2486
        %v3987 = vpack.c.b16 %v2497, %v2487
        %v3988 = vpack.c.b16 %v2498, %v2488
        %v3989 = vpack.c.b16 %v2499, %v2489
        %v3990 = vpack.c.b16 %v2500, %v2490
        %v3991 = vpack.c.b16 %v2501, %v2491
        %v3992 = vpack.c.b16 %v2502, %v2492
        %v3993 = vpack.c.b16 %v2503, %v2493
        %v3994 = vpack.c.b16 %v2504, %v2494
        %v3995 = vpack.c.b16 %v2515, %v2505
        %v3996 = vpack.c.b16 %v2516, %v2506
        %v3997 = vpack.c.b16 %v2517, %v2507
        %v3998 = vpack.c.b16 %v2518, %v2508
        %v3999 = vpack.c.b16 %v2519, %v2509
        %v4000 = vpack.c.b16 %v2520, %v2510
        %v4001 = vpack.c.b16 %v2521, %v2511
        %v4002 = vpack.c.b16 %v2522, %v2512
        %v4003 = vpack.c.b16 %v2523, %v2513
        %v4004 = vpack.c.b16 %v2524, %v2514
        %v4005 = vpack.c.b16 %v2535, %v2525
        %v4006 = vpack.c.b16 %v2536, %v2526
        %v4007 = vpack.c.b16 %v2537, %v2527
        %v4008 = vpack.c.b16 %v2538, %v2528
        %v4009 = vpack.c.b16 %v2539, %v2529
        %v4010 = vpack.c.b16 %v2540, %v2530
        %v4011 = vpack.c.b16 %v2541, %v2531
        %v4012 = vpack.c.b16 %v2542, %v2532
        %v4013 = vpack.c.b16 %v2543, %v2533
        %v4014 = vpack.c.b16 %v2544, %v2534
        %v4015 = vpack.c.b16 %v2555, %v2545
        %v4016 = vpack.c.b16 %v2556, %v2546
        %v4017 = vpack.c.b16 %v2557, %v2547
        %v4018 = vpack.c.b16 %v2558, %v2548
        %v4019 = vpack.c.b16 %v2559, %v2549
        %v4020 = vpack.c.b16 %v2560, %v2550
        %v4021 = vpack.c.b16 %v2561, %v2551
        %v4022 = vpack.c.b16 %v2562, %v2552
        %v4023 = vpack.c.b16 %v2563, %v2553
        %v4024 = vpack.c.b16 %v2564, %v2554
        %v4025 = vpack.c.b16 %v2575, %v2565
        %v4026 = vpack.c.b16 %v2576, %v2566
        %v4027 = vpack.c.b16 %v2577, %v2567
        %v4028 = vpack.c.b16 %v2578, %v2568
        %v4029 = vpack.c.b16 %v2579, %v2569
        %v4030 = vpack.c.b16 %v2580, %v2570
        %v4031 = vpack.c.b16 %v2581, %v2571
        %v4032 = vpack.c.b16 %v2582, %v2572
        %v4033 = vpack.c.b16 %v2583, %v2573
        %v4034 = vpack.c.b16 %v2584, %v2574
        %v4035 = vpack.c.b16 %v2595, %v2585
        %v4036 = vpack.c.b16 %v2596, %v2586
        %v4037 = vpack.c.b16 %v2597, %v2587
        %v4038 = vpack.c.b16 %v2598, %v2588
        %v4039 = vpack.c.b16 %v2599, %v2589
        %v4040 = vpack.c.b16 %v2600, %v2590
        %v4041 = vpack.c.b16 %v2601, %v2591
        %v4042 = vpack.c.b16 %v2602, %v2592
        %v4043 = vpack.c.b16 %v2603, %v2593
        %v4044 = vpack.c.b16 %v2604, %v2594
        %v4045 = vpack.c.b16 %v2615, %v2605
        %v4046 = vpack.c.b16 %v2616, %v2606
        %v4047 = vpack.c.b16 %v2617, %v2607
        %v4048 = vpack.c.b16 %v2618, %v2608
        %v4049 = vpack.c.b16 %v2619, %v2609
        %v4050 = vpack.c.b16 %v2620, %v2610
        %v4051 = vpack.c.b16 %v2621, %v2611
        %v4052 = vpack.c.b16 %v2622, %v2612
        %v4053 = vpack.c.b16 %v2623, %v2613
        %v4054 = vpack.c.b16 %v2624, %v2614
        %v4055 = vpack.c.b16 %v2635, %v2625
        %v4056 = vpack.c.b16 %v2636, %v2626
        %v4057 = vpack.c.b16 %v2637, %v2627
        %v4058 = vpack.c.b16 %v2638, %v2628
        %v4059 = vpack.c.b16 %v2639, %v2629
        %v4060 = vpack.c.b16 %v2640, %v2630
        %v4061 = vpack.c.b16 %v2641, %v2631
        %v4062 = vpack.c.b16 %v2642, %v2632
        %v4063 = vpack.c.b16 %v2643, %v2633
        %v4064 = vpack.c.b16 %v2644, %v2634
        %v4065 = vpack.c.b16 %v2655, %v2645
        %v4066 = vpack.c.b16 %v2656, %v2646
        %v4067 = vpack.c.b16 %v2657, %v2647
        %v4068 = vpack.c.b16 %v2658, %v2648
        %v4069 = vpack.c.b16 %v2659, %v2649
        %v4070 = vpack.c.b16 %v2660, %v2650
        %v4071 = vpack.c.b16 %v2661, %v2651
        %v4072 = vpack.c.b16 %v2662, %v2652
        %v4073 = vpack.c.b16 %v2663, %v2653
        %v4074 = vpack.c.b16 %v2664, %v2654
        %v4075 = vpack.c.b16 %v2675, %v2665
        %v4076 = vpack.c.b16 %v2676, %v2666
        %v4077 = vpack.c.b16 %v2677, %v2667
        %v4078 = vpack.c.b16 %v2678, %v2668
        %v4079 = vpack.c.b16 %v2679, %v2669
        %v4080 = vpack.c.b16 %v2680, %v2670
        %v4081 = vpack.c.b16 %v2681, %v2671
        %v4082 = vpack.c.b16 %v2682, %v2672
        %v4083 = vpack.c.b16 %v2683, %v2673
        %v4084 = vpack.c.b16 %v2684, %v2674
        %v4085 = vpack.c.b16 %v2695, %v2685
        %v4086 = vpack.c.b16 %v2696, %v2686
        %v4087 = vpack.c.b16 %v2697, %v2687
        %v4088 = vpack.c.b16 %v2698, %v2688
        %v4089 = vpack.c.b16 %v2699, %v2689
        %v4090 = vpack.c.b16 %v2700, %v2690
        %v4091 = vpack.c.b16 %v2701, %v2691
        %v4092 = vpack.c.b16 %v2702, %v2692
        %v4093 = vpack.c.b16 %v2703, %v2693
        %v4094 = vpack.c.b16 %v2704, %v2694
        %v4095 = vpack.c.b16 %v2715, %v2705
        %v4096 = vpack.c.b16 %v2716, %v2706
        %v4097 = vpack.c.b16 %v2717, %v2707
        %v4098 = vpack.c.b16 %v2718, %v2708
        %v4099 = vpack.c.b16 %v2719, %v2709
        %v4100 = vpack.c.b16 %v2720, %v2710
        %v4101 = vpack.c.b16 %v2721, %v2711
        %v4102 = vpack.c.b16 %v2722, %v2712
        %v4103 = vpack.c.b16 %v2723, %v2713
        %v4104 = vpack.c.b16 %v2724, %v2714
        %v4105 = vpack.c.b16 %v2735, %v2725
        %v4106 = vpack.c.b16 %v2736, %v2726
        %v4107 = vpack.c.b16 %v2737, %v2727
        %v4108 = vpack.c.b16 %v2738, %v2728
        %v4109 = vpack.c.b16 %v2739, %v2729
        %v4110 = vpack.c.b16 %v2740, %v2730
        %v4111 = vpack.c.b16 %v2741, %v2731
        %v4112 = vpack.c.b16 %v2742, %v2732
        %v4113 = vpack.c.b16 %v2743, %v2733
        %v4114 = vpack.c.b16 %v2744, %v2734
        %v4115 = vpack.c.b16 %v2755, %v2745
        %v4116 = vpack.c.b16 %v2756, %v2746
        %v4117 = vpack.c.b16 %v2757, %v2747
        %v4118 = vpack.c.b16 %v2758, %v2748
        %v4119 = vpack.c.b16 %v2759, %v2749
        %v4120 = vpack.c.b16 %v2760, %v2750
        %v4121 = vpack.c.b16 %v2761, %v2751
        %v4122 = vpack.c.b16 %v2762, %v2752
        %v4123 = vpack.c.b16 %v2763, %v2753
        %v4124 = vpack.c.b16 %v2764, %v2754
        %v4125 = vpack.c.b16 %v2775, %v2765
        %v4126 = vpack.c.b16 %v2776, %v2766
        %v4127 = vpack.c.b16 %v2777, %v2767
        %v4128 = vpack.c.b16 %v2778, %v2768
        %v4129 = vpack.c.b16 %v2779, %v2769
        %v4130 = vpack.c.b16 %v2780, %v2770
        %v4131 = vpack.c.b16 %v2781, %v2771
        %v4132 = vpack.c.b16 %v2782, %v2772
        %v4133 = vpack.c.b16 %v2783, %v2773
        %v4134 = vpack.c.b16 %v2784, %v2774
        %v4135 = vpack.c.b16 %v2795, %v2785
        %v4136 = vpack.c.b16 %v2796, %v2786
        %v4137 = vpack.c.b16 %v2797, %v2787
        %v4138 = vpack.c.b16 %v2798, %v2788
        %v4139 = vpack.c.b16 %v2799, %v2789
        %v4140 = vpack.c.b16 %v2800, %v2790
        %v4141 = vpack.c.b16 %v2801, %v2791
        %v4142 = vpack.c.b16 %v2802, %v2792
        %v4143 = vpack.c.b16 %v2803, %v2793
        %v4144 = vpack.c.b16 %v2804, %v2794
        %v4145 = vpack.c.b16 %v2815, %v2805
        %v4146 = vpack.c.b16 %v2816, %v2806
        %v4147 = vpack.c.b16 %v2817, %v2807
        %v4148 = vpack.c.b16 %v2818, %v2808
        %v4149 = vpack.c.b16 %v2819, %v2809
        %v4150 = vpack.c.b16 %v2820, %v2810
        %v4151 = vpack.c.b16 %v2821, %v2811
        %v4152 = vpack.c.b16 %v2822, %v2812
        %v4153 = vpack.c.b16 %v2823, %v2813
        %v4154 = vpack.c.b16 %v2824, %v2814
        %v4155 = vpack.c.b16 %v2835, %v2825
        %v4156 = vpack.c.b16 %v2836, %v2826
        %v4157 = vpack.c.b16 %v2837, %v2827
        %v4158 = vpack.c.b16 %v2838, %v2828
        %v4159 = vpack.c.b16 %v2839, %v2829
        %v4160 = vpack.c.b16 %v2840, %v2830
        %v4161 = vpack.c.b16 %v2841, %v2831
        %v4162 = vpack.c.b16 %v2842, %v2832
        %v4163 = vpack.c.b16 %v2843, %v2833
        %v4164 = vpack.c.b16 %v2844, %v2834
        %v4165 = vpack.c.b16 %v2855, %v2845
        %v4166 = vpack.c.b16 %v2856, %v2846
        %v4167 = vpack.c.b16 %v2857, %v2847
        %v4168 = vpack.c.b16 %v2858, %v2848
        %v4169 = vpack.c.b16 %v2859, %v2849
        %v4170 = vpack.c.b16 %v2860, %v2850
        %v4171 = vpack.c.b16 %v2861, %v2851
        %v4172 = vpack.c.b16 %v2862, %v2852
        %v4173 = vpack.c.b16 %v2863, %v2853
        %v4174 = vpack.c.b16 %v2864, %v2854
        %v4175 = vpack.c.b16 %v2875, %v2865
        %v4176 = vpack.c.b16 %v2876, %v2866
        %v4177 = vpack.c.b16 %v2877, %v2867
        %v4178 = vpack.c.b16 %v2878, %v2868
        %v4179 = vpack.c.b16 %v2879, %v2869
        %v4180 = vpack.c.b16 %v2880, %v2870
        %v4181 = vpack.c.b16 %v2881, %v2871
        %v4182 = vpack.c.b16 %v2882, %v2872
        %v4183 = vpack.c.b16 %v2883, %v2873
        %v4184 = vpack.c.b16 %v2884, %v2874
        %v4185 = vpack.c.b16 %v2895, %v2885
        %v4186 = vpack.c.b16 %v2896, %v2886
        %v4187 = vpack.c.b16 %v2897, %v2887
        %v4188 = vpack.c.b16 %v2898, %v2888
        %v4189 = vpack.c.b16 %v2899, %v2889
        %v4190 = vpack.c.b16 %v2900, %v2890
        %v4191 = vpack.c.b16 %v2901, %v2891
        %v4192 = vpack.c.b16 %v2902, %v2892
        %v4193 = vpack.c.b16 %v2903, %v2893
        %v4194 = vpack.c.b16 %v2904, %v2894
        %v4195 = vpack.c.b16 %v2915, %v2905
        %v4196 = vpack.c.b16 %v2916, %v2906
        %v4197 = vpack.c.b16 %v2917, %v2907
        %v4198 = vpack.c.b16 %v2918, %v2908
        %v4199 = vpack.c.b16 %v2919, %v2909
        %v4200 = vpack.c.b16 %v2920, %v2910
        %v4201 = vpack.c.b16 %v2921, %v2911
        %v4202 = vpack.c.b16 %v2922, %v2912
        %v4203 = vpack.c.b16 %v2923, %v2913
        %v4204 = vpack.c.b16 %v2924, %v2914
        %v4205 = vpack.c.b16 %v2935, %v2925
        %v4206 = vpack.c.b16 %v2936, %v2926
        %v4207 = vpack.c.b16 %v2937, %v2927
        %v4208 = vpack.c.b16 %v2938, %v2928
        %v4209 = vpack.c.b16 %v2939, %v2929
        %v4210 = vpack.c.b16 %v2940, %v2930
        %v4211 = vpack.c.b16 %v2941, %v2931
        %v4212 = vpack.c.b16 %v2942, %v2932
        %v4213 = vpack.c.b16 %v2943, %v2933
        %v4214 = vpack.c.b16 %v2944, %v2934
        %v4215 = vpack.c.b16 %v2955, %v2945
        %v4216 = vpack.c.b16 %v2956, %v2946
        %v4217 = vpack.c.b16 %v2957, %v2947
        %v4218 = vpack.c.b16 %v2958, %v2948
        %v4219 = vpack.c.b16 %v2959, %v2949
        %v4220 = vpack.c.b16 %v2960, %v2950
        %v4221 = vpack.c.b16 %v2961, %v2951
        %v4222 = vpack.c.b16 %v2962, %v2952
        %v4223 = vpack.c.b16 %v2963, %v2953
        %v4224 = vpack.c.b16 %v2964, %v2954
        %v4225 = vpack.c.b16 %v2975, %v2965
        %v4226 = vpack.c.b16 %v2976, %v2966
        %v4227 = vpack.c.b16 %v2977, %v2967
        %v4228 = vpack.c.b16 %v2978, %v2968
        %v4229 = vpack.c.b16 %v2979, %v2969
        %v4230 = vpack.c.b16 %v2980, %v2970
        %v4231 = vpack.c.b16 %v2981, %v2971
        %v4232 = vpack.c.b16 %v2982, %v2972
        %v4233 = vpack.c.b16 %v2983, %v2973
        %v4234 = vpack.c.b16 %v2984, %v2974
        %v4235 = vpack.c.b16 %v2995, %v2985
        %v4236 = vpack.c.b16 %v2996, %v2986
        %v4237 = vpack.c.b16 %v2997, %v2987
        %v4238 = vpack.c.b16 %v2998, %v2988
        %v4239 = vpack.c.b16 %v2999, %v2989
        %v4240 = vpack.c.b16 %v3000, %v2990
        %v4241 = vpack.c.b16 %v3001, %v2991
        %v4242 = vpack.c.b16 %v3002, %v2992
        %v4243 = vpack.c.b16 %v3003, %v2993
        %v4244 = vpack.c.b16 %v3004, %v2994
        %v4245 = vpack.c.b16 %v3015, %v3005
        %v4246 = vpack.c.b16 %v3016, %v3006
        %v4247 = vpack.c.b16 %v3017, %v3007
        %v4248 = vpack.c.b16 %v3018, %v3008
        %v4249 = vpack.c.b16 %v3019, %v3009
        %v4250 = vpack.c.b16 %v3020, %v3010
        %v4251 = vpack.c.b16 %v3021, %v3011
        %v4252 = vpack.c.b16 %v3022, %v3012
        %v4253 = vpack.c.b16 %v3023, %v3013
        %v4254 = vpack.c.b16 %v3024, %v3014
        %v4255 = vpack.c.b16 %v3035, %v3025
        %v4256 = vpack.c.b16 %v3036, %v3026
        %v4257 = vpack.c.b16 %v3037, %v3027
        %v4258 = vpack.c.b16 %v3038, %v3028
        %v4259 = vpack.c.b16 %v3039, %v3029
        %v4260 = vpack.c.b16 %v3040, %v3030
        %v4261 = vpack.c.b16 %v3041, %v3031
        %v4262 = vpack.c.b16 %v3042, %v3032
        %v4263 = vpack.c.b16 %v3043, %v3033
        %v4264 = vpack.c.b16 %v3044, %v3034
        %v4265 = vpack.c.b16 %v3055, %v3045
        %v4266 = vpack.c.b16 %v3056, %v3046
        %v4267 = vpack.c.b16 %v3057, %v3047
        %v4268 = vpack.c.b16 %v3058, %v3048
        %v4269 = vpack.c.b16 %v3059, %v3049
        %v4270 = vpack.c.b16 %v3060, %v3050
        %v4271 = vpack.c.b16 %v3061, %v3051
        %v4272 = vpack.c.b16 %v3062, %v3052
        %v4273 = vpack.c.b16 %v3063, %v3053
        %v4274 = vpack.c.b16 %v3064, %v3054
        %v4275 = vpack.c.b16 %v3075, %v3065
        %v4276 = vpack.c.b16 %v3076, %v3066
        %v4277 = vpack.c.b16 %v3077, %v3067
        %v4278 = vpack.c.b16 %v3078, %v3068
        %v4279 = vpack.c.b16 %v3079, %v3069
        %v4280 = vpack.c.b16 %v3080, %v3070
        %v4281 = vpack.c.b16 %v3081, %v3071
        %v4282 = vpack.c.b16 %v3082, %v3072
        %v4283 = vpack.c.b16 %v3083, %v3073
        %v4284 = vpack.c.b16 %v3084, %v3074
        %v4285 = vpack.c.b16 %v3095, %v3085
        %v4286 = vpack.c.b16 %v3096, %v3086
        %v4287 = vpack.c.b16 %v3097, %v3087
        %v4288 = vpack.c.b16 %v3098, %v3088
        %v4289 = vpack.c.b16 %v3099, %v3089
        %v4290 = vpack.c.b16 %v3100, %v3090
        %v4291 = vpack.c.b16 %v3101, %v3091
        %v4292 = vpack.c.b16 %v3102, %v3092
        %v4293 = vpack.c.b16 %v3103, %v3093
        %v4294 = vpack.c.b16 %v3104, %v3094
        %v4295 = vpack.c.b16 %v3115, %v3105
        %v4296 = vpack.c.b16 %v3116, %v3106
        %v4297 = vpack.c.b16 %v3117, %v3107
        %v4298 = vpack.c.b16 %v3118, %v3108
        %v4299 = vpack.c.b16 %v3119, %v3109
        %v4300 = vpack.c.b16 %v3120, %v3110
        %v4301 = vpack.c.b16 %v3121, %v3111
        %v4302 = vpack.c.b16 %v3122, %v3112
        %v4303 = vpack.c.b16 %v3123, %v3113
        %v4304 = vpack.c.b16 %v3124, %v3114
        %v4305 = vpack.c.b16 %v3135, %v3125
        %v4306 = vpack.c.b16 %v3136, %v3126
        %v4307 = vpack.c.b16 %v3137, %v3127
        %v4308 = vpack.c.b16 %v3138, %v3128
        %v4309 = vpack.c.b16 %v3139, %v3129
        %v4310 = vpack.c.b16 %v3140, %v3130
        %v4311 = vpack.c.b16 %v3141, %v3131
        %v4312 = vpack.c.b16 %v3142, %v3132
        %v4313 = vpack.c.b16 %v3143, %v3133
        %v4314 = vpack.c.b16 %v3144, %v3134
        %v4315 = vpack.c.b16 %v3155, %v3145
        %v4316 = vpack.c.b16 %v3156, %v3146
        %v4317 = vpack.c.b16 %v3157, %v3147
        %v4318 = vpack.c.b16 %v3158, %v3148
        %v4319 = vpack.c.b16 %v3159, %v3149
        %v4320 = vpack.c.b16 %v3160, %v3150
        %v4321 = vpack.c.b16 %v3161, %v3151
        %v4322 = vpack.c.b16 %v3162, %v3152
        %v4323 = vpack.c.b16 %v3163, %v3153
        %v4324 = vpack.c.b16 %v3164, %v3154
        %v4325 = vpack.c.b16 %v3175, %v3165
        %v4326 = vpack.c.b16 %v3176, %v3166
        %v4327 = vpack.c.b16 %v3177, %v3167
        %v4328 = vpack.c.b16 %v3178, %v3168
        %v4329 = vpack.c.b16 %v3179, %v3169
        %v4330 = vpack.c.b16 %v3180, %v3170
        %v4331 = vpack.c.b16 %v3181, %v3171
        %v4332 = vpack.c.b16 %v3182, %v3172
        %v4333 = vpack.c.b16 %v3183, %v3173
        %v4334 = vpack.c.b16 %v3184, %v3174
        %v4335 = vpack.c.b16 %v3195, %v3185
        %v4336 = vpack.c.b16 %v3196, %v3186
        %v4337 = vpack.c.b16 %v3197, %v3187
        %v4338 = vpack.c.b16 %v3198, %v3188
        %v4339 = vpack.c.b16 %v3199, %v3189
        %v4340 = vpack.c.b16 %v3200, %v3190
        %v4341 = vpack.c.b16 %v3201, %v3191
        %v4342 = vpack.c.b16 %v3202, %v3192
        %v4343 = vpack.c.b16 %v3203, %v3193
        %v4344 = vpack.c.b16 %v3204, %v3194
        %v4345 = vpack.c.b16 %v3215, %v3205
        %v4346 = vpack.c.b16 %v3216, %v3206
        %v4347 = vpack.c.b16 %v3217, %v3207
        %v4348 = vpack.c.b16 %v3218, %v3208
        %v4349 = vpack.c.b16 %v3219, %v3209
        %v4350 = vpack.c.b16 %v3220, %v3210
        %v4351 = vpack.c.b16 %v3221, %v3211
        %v4352 = vpack.c.b16 %v3222, %v3212
        %v4353 = vpack.c.b16 %v3223, %v3213
        %v4354 = vpack.c.b16 %v3224, %v3214
        %v4355 = vpack.c.b16 %v3235, %v3225
        %v4356 = vpack.c.b16 %v3236, %v3226
        %v4357 = vpack.c.b16 %v3237, %v3227
        %v4358 = vpack.c.b16 %v3238, %v3228
        %v4359 = vpack.c.b16 %v3239, %v3229
        %v4360 = vpack.c.b16 %v3240, %v3230
        %v4361 = vpack.c.b16 %v3241, %v3231
        %v4362 = vpack.c.b16 %v3242, %v3232
        %v4363 = vpack.c.b16 %v3243, %v3233
        %v4364 = vpack.c.b16 %v3244, %v3234
        %v4365 = vpack.c.b16 %v3255, %v3245
        %v4366 = vpack.c.b16 %v3256, %v3246
        %v4367 = vpack.c.b16 %v3257, %v3247
        %v4368 = vpack.c.b16 %v3258, %v3248
        %v4369 = vpack.c.b16 %v3259, %v3249
        %v4370 = vpack.c.b16 %v3260, %v3250
        %v4371 = vpack.c.b16 %v3261, %v3251
        %v4372 = vpack.c.b16 %v3262, %v3252
        %v4373 = vpack.c.b16 %v3263, %v3253
        %v4374 = vpack.c.b16 %v3264, %v3254
        %v4375 = vpack.c.b16 %v3275, %v3265
        %v4376 = vpack.c.b16 %v3276, %v3266
        %v4377 = vpack.c.b16 %v3277, %v3267
        %v4378 = vpack.c.b16 %v3278, %v3268
        %v4379 = vpack.c.b16 %v3279, %v3269
        %v4380 = vpack.c.b16 %v3280, %v3270
        %v4381 = vpack.c.b16 %v3281, %v3271
        %v4382 = vpack.c.b16 %v3282, %v3272
        %v4383 = vpack.c.b16 %v3283, %v3273
        %v4384 = vpack.c.b16 %v3284, %v3274
        %v4385 = vpack.c.b16 %v3295, %v3285
        %v4386 = vpack.c.b16 %v3296, %v3286
        %v4387 = vpack.c.b16 %v3297, %v3287
        %v4388 = vpack.c.b16 %v3298, %v3288
        %v4389 = vpack.c.b16 %v3299, %v3289
        %v4390 = vpack.c.b16 %v3300, %v3290
        %v4391 = vpack.c.b16 %v3301, %v3291
        %v4392 = vpack.c.b16 %v3302, %v3292
        %v4393 = vpack.c.b16 %v3303, %v3293
        %v4394 = vpack.c.b16 %v3304, %v3294
        %v4395 = vpack.c.b16 %v3315, %v3305
        %v4396 = vpack.c.b16 %v3316, %v3306
        %v4397 = vpack.c.b16 %v3317, %v3307
        %v4398 = vpack.c.b16 %v3318, %v3308
        %v4399 = vpack.c.b16 %v3319, %v3309
        %v4400 = vpack.c.b16 %v3320, %v3310
        %v4401 = vpack.c.b16 %v3321, %v3311
        %v4402 = vpack.c.b16 %v3322, %v3312
        %v4403 = vpack.c.b16 %v3323, %v3313
        %v4404 = vpack.c.b16 %v3324, %v3314
        %v4405 = vpack.c.b16 %v3335, %v3325
        %v4406 = vpack.c.b16 %v3336, %v3326
        %v4407 = vpack.c.b16 %v3337, %v3327
        %v4408 = vpack.c.b16 %v3338, %v3328
        %v4409 = vpack.c.b16 %v3339, %v3329
        %v4410 = vpack.c.b16 %v3340, %v3330
        %v4411 = vpack.c.b16 %v3341, %v3331
        %v4412 = vpack.c.b16 %v3342, %v3332
        %v4413 = vpack.c.b16 %v3343, %v3333
        %v4414 = vpack.c.b16 %v3344, %v3334
        %v4415 = vpack.c.b16 %v3355, %v3345
        %v4416 = vpack.c.b16 %v3356, %v3346
        %v4417 = vpack.c.b16 %v3357, %v3347
        %v4418 = vpack.c.b16 %v3358, %v3348
        %v4419 = vpack.c.b16 %v3359, %v3349
        %v4420 = vpack.c.b16 %v3360, %v3350
        %v4421 = vpack.c.b16 %v3361, %v3351
        %v4422 = vpack.c.b16 %v3362, %v3352
        %v4423 = vpack.c.b16 %v3363, %v3353
        %v4424 = vpack.c.b16 %v3364, %v3354
        %v4425 = vpack.c.b16 %v3375, %v3365
        %v4426 = vpack.c.b16 %v3376, %v3366
        %v4427 = vpack.c.b16 %v3377, %v3367
        %v4428 = vpack.c.b16 %v3378, %v3368
        %v4429 = vpack.c.b16 %v3379, %v3369
        %v4430 = vpack.c.b16 %v3380, %v3370
        %v4431 = vpack.c.b16 %v3381, %v3371
        %v4432 = vpack.c.b16 %v3382, %v3372
        %v4433 = vpack.c.b16 %v3383, %v3373
        %v4434 = vpack.c.b16 %v3384, %v3374
        %v4435 = vpack.c.b16 %v3395, %v3385
        %v4436 = vpack.c.b16 %v3396, %v3386
        %v4437 = vpack.c.b16 %v3397, %v3387
        %v4438 = vpack.c.b16 %v3398, %v3388
        %v4439 = vpack.c.b16 %v3399, %v3389
        %v4440 = vpack.c.b16 %v3400, %v3390
        %v4441 = vpack.c.b16 %v3401, %v3391
        %v4442 = vpack.c.b16 %v3402, %v3392
        %v4443 = vpack.c.b16 %v3403, %v3393
        %v4444 = vpack.c.b16 %v3404, %v3394
        %v4445 = vpack.c.b16 %v3415, %v3405
        %v4446 = vpack.c.b16 %v3416, %v3406
        %v4447 = vpack.c.b16 %v3417, %v3407
        %v4448 = vpack.c.b16 %v3418, %v3408
        %v4449 = vpack.c.b16 %v3419, %v3409
        %v4450 = vpack.c.b16 %v3420, %v3410
        %v4451 = vpack.c.b16 %v3421, %v3411
        %v4452 = vpack.c.b16 %v3422, %v3412
        %v4453 = vpack.c.b16 %v3423, %v3413
        %v4454 = vpack.c.b16 %v3424, %v3414
        %v4455 = vpack.c.b16 %v3435, %v3425
        %v4456 = vpack.c.b16 %v3436, %v3426
        %v4457 = vpack.c.b16 %v3437, %v3427
        %v4458 = vpack.c.b16 %v3438, %v3428
        %v4459 = vpack.c.b16 %v3439, %v3429
        %v4460 = vpack.c.b16 %v3440, %v3430
        %v4461 = vpack.c.b16 %v3441, %v3431
        %v4462 = vpack.c.b16 %v3442, %v3432
        %v4463 = vpack.c.b16 %v3443, %v3433
        %v4464 = vpack.c.b16 %v3444, %v3434
        %v4465 = vpack.c.b16 %v3455, %v3445
        %v4466 = vpack.c.b16 %v3456, %v3446
        %v4467 = vpack.c.b16 %v3457, %v3447
        %v4468 = vpack.c.b16 %v3458, %v3448
        %v4469 = vpack.c.b16 %v3459, %v3449
        %v4470 = vpack.c.b16 %v3460, %v3450
        %v4471 = vpack.c.b16 %v3461, %v3451
        %v4472 = vpack.c.b16 %v3462, %v3452
        %v4473 = vpack.c.b16 %v3463, %v3453
        %v4474 = vpack.c.b16 %v3464, %v3454
        %v4475 = vpack.c.b16 %v3475, %v3465
        %v4476 = vpack.c.b16 %v3476, %v3466
        %v4477 = vpack.c.b16 %v3477, %v3467
        %v4478 = vpack.c.b16 %v3478, %v3468
        %v4479 = vpack.c.b16 %v3479, %v3469
        %v4480 = vpack.c.b16 %v3480, %v3470
        %v4481 = vpack.c.b16 %v3481, %v3471
        %v4482 = vpack.c.b16 %v3482, %v3472
        %v4483 = vpack.c.b16 %v3483, %v3473
        %v4484 = vpack.c.b16 %v3484, %v3474
        %v4485 = vpack.c.b16 %v3495, %v3485
        %v4486 = vpack.c.b16 %v3496, %v3486
        %v4487 = vpack.c.b16 %v3497, %v3487
        %v4488 = vpack.c.b16 %v3498, %v3488
        %v4489 = vpack.c.b16 %v3499, %v3489
        %v4490 = vpack.c.b16 %v3500, %v3490
        %v4491 = vpack.c.b16 %v3501, %v3491
        %v4492 = vpack.c.b16 %v3502, %v3492
        %v4493 = vpack.c.b16 %v3503, %v3493
        %v4494 = vpack.c.b16 %v3504, %v3494
        %v4495 = vpack.c.b16 %v3515, %v3505
        %v4496 = vpack.c.b16 %v3516, %v3506
        %v4497 = vpack.c.b16 %v3517, %v3507
        %v4498 = vpack.c.b16 %v3518, %v3508
        %v4499 = vpack.c.b16 %v3519, %v3509
        %v4500 = vpack.c.b16 %v3520, %v3510
        %v4501 = vpack.c.b16 %v3521, %v3511
        %v4502 = vpack.c.b16 %v3522, %v3512
        %v4503 = vpack.c.b16 %v3523, %v3513
        %v4504 = vpack.c.b16 %v3524, %v3514
        %v4505 = vpack.c.b16 %v3535, %v3525
        %v4506 = vpack.c.b16 %v3536, %v3526
        %v4507 = vpack.c.b16 %v3537, %v3527
        %v4508 = vpack.c.b16 %v3538, %v3528
        %v4509 = vpack.c.b16 %v3539, %v3529
        %v4510 = vpack.c.b16 %v3540, %v3530
        %v4511 = vpack.c.b16 %v3541, %v3531
        %v4512 = vpack.c.b16 %v3542, %v3532
        %v4513 = vpack.c.b16 %v3543, %v3533
        %v4514 = vpack.c.b16 %v3544, %v3534
        %v4515 = vpack.c.b16 %v3555, %v3545
        %v4516 = vpack.c.b16 %v3556, %v3546
        %v4517 = vpack.c.b16 %v3557, %v3547
        %v4518 = vpack.c.b16 %v3558, %v3548
        %v4519 = vpack.c.b16 %v3559, %v3549
        %v4520 = vpack.c.b16 %v3560, %v3550
        %v4521 = vpack.c.b16 %v3561, %v3551
        %v4522 = vpack.c.b16 %v3562, %v3552
        %v4523 = vpack.c.b16 %v3563, %v3553
        %v4524 = vpack.c.b16 %v3564, %v3554
        %v4525 = vpack.c.b16 %v3575, %v3565
        %v4526 = vpack.c.b16 %v3576, %v3566
        %v4527 = vpack.c.b16 %v3577, %v3567
        %v4528 = vpack.c.b16 %v3578, %v3568
        %v4529 = vpack.c.b16 %v3579, %v3569
        %v4530 = vpack.c.b16 %v3580, %v3570
        %v4531 = vpack.c.b16 %v3581, %v3571
        %v4532 = vpack.c.b16 %v3582, %v3572
        %v4533 = vpack.c.b16 %v3583, %v3573
        %v4534 = vpack.c.b16 %v3584, %v3574
        %v4535 = vpack.c.b16 %v3595, %v3585
        %v4536 = vpack.c.b16 %v3596, %v3586
        %v4537 = vpack.c.b16 %v3597, %v3587
        %v4538 = vpack.c.b16 %v3598, %v3588
        %v4539 = vpack.c.b16 %v3599, %v3589
        %v4540 = vpack.c.b16 %v3600, %v3590
        %v4541 = vpack.c.b16 %v3601, %v3591
        %v4542 = vpack.c.b16 %v3602, %v3592
        %v4543 = vpack.c.b16 %v3603, %v3593
        %v4544 = vpack.c.b16 %v3604, %v3594
        %v4545 = vpack.c.b16 %v3615, %v3605
        %v4546 = vpack.c.b16 %v3616, %v3606
        %v4547 = vpack.c.b16 %v3617, %v3607
        %v4548 = vpack.c.b16 %v3618, %v3608
        %v4549 = vpack.c.b16 %v3619, %v3609
        %v4550 = vpack.c.b16 %v3620, %v3610
        %v4551 = vpack.c.b16 %v3621, %v3611
        %v4552 = vpack.c.b16 %v3622, %v3612
        %v4553 = vpack.c.b16 %v3623, %v3613
        %v4554 = vpack.c.b16 %v3624, %v3614
        %v4555 = vpack.c.b16 %v3635, %v3625
        %v4556 = vpack.c.b16 %v3636, %v3626
        %v4557 = vpack.c.b16 %v3637, %v3627
        %v4558 = vpack.c.b16 %v3638, %v3628
        %v4559 = vpack.c.b16 %v3639, %v3629
        %v4560 = vpack.c.b16 %v3640, %v3630
        %v4561 = vpack.c.b16 %v3641, %v3631
        %v4562 = vpack.c.b16 %v3642, %v3632
        %v4563 = vpack.c.b16 %v3643, %v3633
        %v4564 = vpack.c.b16 %v3644, %v3634
        %v4565 = vpack.c.b16 %v3655, %v3645
        %v4566 = vpack.c.b16 %v3656, %v3646
        %v4567 = vpack.c.b16 %v3657, %v3647
        %v4568 = vpack.c.b16 %v3658, %v3648
        %v4569 = vpack.c.b16 %v3659, %v3649
        %v4570 = vpack.c.b16 %v3660, %v3650
        %v4571 = vpack.c.b16 %v3661, %v3651
        %v4572 = vpack.c.b16 %v3662, %v3652
        %v4573 = vpack.c.b16 %v3663, %v3653
        %v4574 = vpack.c.b16 %v3664, %v3654
        %v4575 = vpack.c.b16 %v3675, %v3665
        %v4576 = vpack.c.b16 %v3676, %v3666
        %v4577 = vpack.c.b16 %v3677, %v3667
        %v4578 = vpack.c.b16 %v3678, %v3668
        %v4579 = vpack.c.b16 %v3679, %v3669
        %v4580 = vpack.c.b16 %v3680, %v3670
        %v4581 = vpack.c.b16 %v3681, %v3671
        %v4582 = vpack.c.b16 %v3682, %v3672
        %v4583 = vpack.c.b16 %v3683, %v3673
        %v4584 = vpack.c.b16 %v3684, %v3674
        %v4585 = vpack.c.b16 %v3695, %v3685
        %v4586 = vpack.c.b16 %v3696, %v3686
        %v4587 = vpack.c.b16 %v3697, %v3687
        %v4588 = vpack.c.b16 %v3698, %v3688
        %v4589 = vpack.c.b16 %v3699, %v3689
        %v4590 = vpack.c.b16 %v3700, %v3690
        %v4591 = vpack.c.b16 %v3701, %v3691
        %v4592 = vpack.c.b16 %v3702, %v3692
        %v4593 = vpack.c.b16 %v3703, %v3693
        %v4594 = vpack.c.b16 %v3704, %v3694
        %v4595 = vpack.c.b16 %v3715, %v3705
        %v4596 = vpack.c.b16 %v3716, %v3706
        %v4597 = vpack.c.b16 %v3717, %v3707
        %v4598 = vpack.c.b16 %v3718, %v3708
        %v4599 = vpack.c.b16 %v3719, %v3709
        %v4600 = vpack.c.b16 %v3720, %v3710
        %v4601 = vpack.c.b16 %v3721, %v3711
        %v4602 = vpack.c.b16 %v3722, %v3712
        %v4603 = vpack.c.b16 %v3723, %v3713
        %v4604 = vpack.c.b16 %v3724, %v3714
        %v4605 = vpack.c.b16 %v3735, %v3725
        %v4606 = vpack.c.b16 %v3736, %v3726
        %v4607 = vpack.c.b16 %v3737, %v3727
        %v4608 = vpack.c.b16 %v3738, %v3728
        %v4609 = vpack.c.b16 %v3739, %v3729
        %v4610 = vpack.c.b16 %v3740, %v3730
        %v4611 = vpack.c.b16 %v3741, %v3731
        %v4612 = vpack.c.b16 %v3742, %v3732
        %v4613 = vpack.c.b16 %v3743, %v3733
        %v4614 = vpack.c.b16 %v3744, %v3734
        %v4615 = vpack.c.b16 %v3755, %v3745
        %v4616 = vpack.c.b16 %v3756, %v3746
        %v4617 = vpack.c.b16 %v3757, %v3747
        %v4618 = vpack.c.b16 %v3758, %v3748
        %v4619 = vpack.c.b16 %v3759, %v3749
        %v4620 = vpack.c.b16 %v3760, %v3750
        %v4621 = vpack.c.b16 %v3761, %v3751
        %v4622 = vpack.c.b16 %v3762, %v3752
        %v4623 = vpack.c.b16 %v3763, %v3753
        %v4624 = vpack.c.b16 %v3764, %v3754
        %v4625 = vpack.c.b16 %v3775, %v3765
        %v4626 = vpack.c.b16 %v3776, %v3766
        %v4627 = vpack.c.b16 %v3777, %v3767
        %v4628 = vpack.c.b16 %v3778, %v3768
        %v4629 = vpack.c.b16 %v3779, %v3769
        %v4630 = vpack.c.b16 %v3780, %v3770
        %v4631 = vpack.c.b16 %v3781, %v3771
        %v4632 = vpack.c.b16 %v3782, %v3772
        %v4633 = vpack.c.b16 %v3783, %v3773
        %v4634 = vpack.c.b16 %v3784, %v3774
        %v4635 = vpack.c.b16 %v3795, %v3785
        %v4636 = vpack.c.b16 %v3796, %v3786
        %v4637 = vpack.c.b16 %v3797, %v3787
        %v4638 = vpack.c.b16 %v3798, %v3788
        %v4639 = vpack.c.b16 %v3799, %v3789
        %v4640 = vpack.c.b16 %v3800, %v3790
        %v4641 = vpack.c.b16 %v3801, %v3791
        %v4642 = vpack.c.b16 %v3802, %v3792
        %v4643 = vpack.c.b16 %v3803, %v3793
        %v4644 = vpack.c.b16 %v3804, %v3794
        %v4645 = vpack.c.b16 %v3815, %v3805
        %v4646 = vpack.c.b16 %v3816, %v3806
        %v4647 = vpack.c.b16 %v3817, %v3807
        %v4648 = vpack.c.b16 %v3818, %v3808
        %v4649 = vpack.c.b16 %v3819, %v3809
        %v4650 = vpack.c.b16 %v3820, %v3810
        %v4651 = vpack.c.b16 %v3821, %v3811
        %v4652 = vpack.c.b16 %v3822, %v3812
        %v4653 = vpack.c.b16 %v3823, %v3813
        %v4654 = vpack.c.b16 %v3824, %v3814
        %v4655 = vpack.c.b16 %v3835, %v3825
        %v4656 = vpack.c.b16 %v3836, %v3826
        %v4657 = vpack.c.b16 %v3837, %v3827
        %v4658 = vpack.c.b16 %v3838, %v3828
        %v4659 = vpack.c.b16 %v3839, %v3829
        %v4660 = vpack.c.b16 %v3840, %v3830
        %v4661 = vpack.c.b16 %v3841, %v3831
        %v4662 = vpack.c.b16 %v3842, %v3832
        %v4663 = vpack.c.b16 %v3843, %v3833
        %v4664 = vpack.c.b16 %v3844, %v3834
        %v4665 = vpack.c.b16 %v3855, %v3845
        %v4666 = vpack.c.b16 %v3856, %v3846
        %v4667 = vpack.c.b16 %v3857, %v3847
        %v4668 = vpack.c.b16 %v3858, %v3848
        %v4669 = vpack.c.b16 %v3859, %v3849
        %v4670 = vpack.c.b16 %v3860, %v3850
        %v4671 = vpack.c.b16 %v3861, %v3851
        %v4672 = vpack.c.b16 %v3862, %v3852
        %v4673 = vpack.c.b16 %v3863, %v3853
        %v4674 = vpack.c.b16 %v3864, %v3854
        %v4675 = vpack.c.b16 %v3875, %v3865
        %v4676 = vpack.c.b16 %v3876, %v3866
        %v4677 = vpack.c.b16 %v3877, %v3867
        %v4678 = vpack.c.b16 %v3878, %v3868
        %v4679 = vpack.c.b16 %v3879, %v3869
        %v4680 = vpack.c.b16 %v3880, %v3870
        %v4681 = vpack.c.b16 %v3881, %v3871
        %v4682 = vpack.c.b16 %v3882, %v3872
        %v4683 = vpack.c.b16 %v3883, %v3873
        %v4684 = vpack.c.b16 %v3884, %v3874
        %v4685 = vpack.c.b16 %v3895, %v3885
        %v4686 = vpack.c.b16 %v3896, %v3886
        %v4687 = vpack.c.b16 %v3897, %v3887
        %v4688 = vpack.c.b16 %v3898, %v3888
        %v4689 = vpack.c.b16 %v3899, %v3889
        %v4690 = vpack.c.b16 %v3900, %v3890
        %v4691 = vpack.c.b16 %v3901, %v3891
        %v4692 = vpack.c.b16 %v3902, %v3892
        %v4693 = vpack.c.b16 %v3903, %v3893
        %v4694 = vpack.c.b16 %v3904, %v3894
        %v4695 = vpack.c.b16 %v3915, %v3905
        %v4696 = vpack.c.b16 %v3916, %v3906
        %v4697 = vpack.c.b16 %v3917, %v3907
        %v4698 = vpack.c.b16 %v3918, %v3908
        %v4699 = vpack.c.b16 %v3919, %v3909
        %v4700 = vpack.c.b16 %v3920, %v3910
        %v4701 = vpack.c.b16 %v3921, %v3911
        %v4702 = vpack.c.b16 %v3922, %v3912
        %v4703 = vpack.c.b16 %v3923, %v3913
        %v4704 = vpack.c.b16 %v3924, %v3914
        %v4705 = vpack.c.b16 %v3935, %v3925
        %v4706 = vpack.c.b16 %v3936, %v3926
        %v4707 = vpack.c.b16 %v3937, %v3927
        %v4708 = vpack.c.b16 %v3938, %v3928
        %v4709 = vpack.c.b16 %v3939, %v3929
        %v4710 = vpack.c.b16 %v3940, %v3930
        %v4711 = vpack.c.b16 %v3941, %v3931
        %v4712 = vpack.c.b16 %v3942, %v3932
        %v4713 = vpack.c.b16 %v3943, %v3933
        %v4714 = vpack.c.b16 %v3944, %v3934
        %v4715 = vpack.c.b16 %v3955, %v3945
        %v4716 = vpack.c.b16 %v3956, %v3946
        %v4717 = vpack.c.b16 %v3957, %v3947
        %v4718 = vpack.c.b16 %v3958, %v3948
        %v4719 = vpack.c.b16 %v3959, %v3949
        %v4720 = vpack.c.b16 %v3960, %v3950
        %v4721 = vpack.c.b16 %v3961, %v3951
        %v4722 = vpack.c.b16 %v3962, %v3952
        %v4723 = vpack.c.b16 %v3963, %v3953
        %v4724 = vpack.c.b16 %v3964, %v3954
        %v4725 = vpack.c.b16 %v3975, %v3965
        %v4726 = vpack.c.b16 %v3976, %v3966
        %v4727 = vpack.c.b16 %v3977, %v3967
        %v4728 = vpack.c.b16 %v3978, %v3968
        %v4729 = vpack.c.b16 %v3979, %v3969
        %v4730 = vpack.c.b16 %v3980, %v3970
        %v4731 = vpack.c.b16 %v3981, %v3971
        %v4732 = vpack.c.b16 %v3982, %v3972
        %v4733 = vpack.c.b16 %v3983, %v3973
        %v4734 = vpack.c.b16 %v3984, %v3974
        %vm5485 = vcmask 392192
        %v5487 = vsel %vm5485, %v930, 0
        %5489 = vmatprep.subr.bf16.mxu0 %v4056
        %5490 = vmatpush1.bf16.msra.mxu0 %v4055
        %5491 = vmatprep.subr.bf16.mxu0 %v4046
        %5492 = vmatpush1.bf16.msra.mxu0 %v4045
        %5493 = vmatprep.subr.bf16.mxu0 %v4036
        %5494 = vmatpush1.bf16.msra.mxu0 %v4035
        %5495 = vmatprep.subr.bf16.mxu0 %v4026
        %5496 = vmatpush1.bf16.msra.mxu0 %v4025
        %5497 = vmatprep.subr.bf16.mxu0 %v4016
        %5498 = vmatpush1.bf16.msra.mxu0 %v4015
        %5499 = vmatprep.subr.bf16.mxu0 %v4006
        %5500 = vmatpush1.bf16.msra.mxu0 %v4005
        %5501 = vmatprep.subr.bf16.mxu0 %v3996
        %5502 = vmatpush1.bf16.msra.mxu0 %v3995
        %5503 = vmatprep.subr.bf16.mxu0 %v3986
        %5504 = vmatpush1.bf16.msra.mxu0 %v3985
        %5505 = vmatprep.subr.bf16.mxu0 %v4136
        %5506 = vmatpush2.bf16.msra.mxu0 %v4135
        %5507 = vmatprep.subr.bf16.mxu0 %v4126
        %5508 = vmatpush2.bf16.msra.mxu0 %v4125
        %5509 = vmatprep.subr.bf16.mxu0 %v4116
        %5510 = vmatpush2.bf16.msra.mxu0 %v4115
        %5511 = vmatprep.subr.bf16.mxu0 %v4106
        %5512 = vmatpush2.bf16.msra.mxu0 %v4105
        %5513 = vmatprep.subr.bf16.mxu0 %v4096
        %5514 = vmatpush2.bf16.msra.mxu0 %v4095
        %5515 = vmatprep.subr.bf16.mxu0 %v4086
        %5516 = vmatpush2.bf16.msra.mxu0 %v4085
        %5517 = vmatprep.subr.bf16.mxu0 %v4076
        %5518 = vmatpush2.bf16.msra.mxu0 %v4075
        %5519 = vmatprep.subr.bf16.mxu0 %v4066
        %5520 = vmatpush2.bf16.msra.mxu0 %v4065
        %5521 = vmatprep.mubr.bf16.mxu0 %v922
        %5522 = vmatmul.mubr.bf16.gmra.mxu0 %v921
        %v5523 = vpop.f32.mrf.mxu0
        %v5524 = vadd.f32 %v1688, %v5523
        %v5525 = vpop.f32.mrf.mxu0
        %v5526 = vadd.f32 %v1692, %v5525
        %v5527 = vpop.f32.mrf.mxu0
        %v5528 = vadd.f32 %v1688, %v5527
        %v5529 = vpop.f32.mrf.mxu0
        %v5530 = vadd.f32 %v1692, %v5529
        %5531 = vdwg.mxu0
        %5532 = vmatprep.subr.bf16.mxu0 %v4216
        %5533 = vmatpush1.bf16.msra.mxu0 %v4215
        %5534 = vmatprep.subr.bf16.mxu0 %v4206
        %5535 = vmatpush1.bf16.msra.mxu0 %v4205
        %5536 = vmatprep.subr.bf16.mxu0 %v4196
        %5537 = vmatpush1.bf16.msra.mxu0 %v4195
        %5538 = vmatprep.subr.bf16.mxu0 %v4186
        %5539 = vmatpush1.bf16.msra.mxu0 %v4185
        %5540 = vmatprep.subr.bf16.mxu0 %v4176
        %5541 = vmatpush1.bf16.msra.mxu0 %v4175
        %5542 = vmatprep.subr.bf16.mxu0 %v4166
        %5543 = vmatpush1.bf16.msra.mxu0 %v4165
        %5544 = vmatprep.subr.bf16.mxu0 %v4156
        %5545 = vmatpush1.bf16.msra.mxu0 %v4155
        %5546 = vmatprep.subr.bf16.mxu0 %v4146
        %5547 = vmatpush1.bf16.msra.mxu0 %v4145
        %5548 = vmatprep.subr.bf16.mxu0 %v4296
        %5549 = vmatpush2.bf16.msra.mxu0 %v4295
        %5550 = vmatprep.subr.bf16.mxu0 %v4286
        %5551 = vmatpush2.bf16.msra.mxu0 %v4285
        %5552 = vmatprep.subr.bf16.mxu0 %v4276
        %5553 = vmatpush2.bf16.msra.mxu0 %v4275
        %5554 = vmatprep.subr.bf16.mxu0 %v4266
        %5555 = vmatpush2.bf16.msra.mxu0 %v4265
        %5556 = vmatprep.subr.bf16.mxu0 %v4256
        %5557 = vmatpush2.bf16.msra.mxu0 %v4255
        %5558 = vmatprep.subr.bf16.mxu0 %v4246
        %5559 = vmatpush2.bf16.msra.mxu0 %v4245
        %5560 = vmatprep.subr.bf16.mxu0 %v4236
        %5561 = vmatpush2.bf16.msra.mxu0 %v4235
        %5562 = vmatprep.subr.bf16.mxu0 %v4226
        %5563 = vmatpush2.bf16.msra.mxu0 %v4225
        %5564 = vmatprep.mubr.bf16.mxu0 %v924
        %5565 = vmatmul.mubr.bf16.gmra.mxu0 %v923
        %v5566 = vpop.f32.mrf.mxu0
        %v5567 = vadd.f32 %v5524, %v5566
        %v5568 = vpop.f32.mrf.mxu0
        %v5569 = vadd.f32 %v5526, %v5568
        %v5570 = vpop.f32.mrf.mxu0
        %v5571 = vadd.f32 %v5528, %v5570
        %v5572 = vpop.f32.mrf.mxu0
        %v5573 = vadd.f32 %v5530, %v5572
        %5574 = vdwg.mxu0
        %5575 = vmatprep.subr.bf16.mxu0 %v4376
        %5576 = vmatpush1.bf16.msra.mxu0 %v4375
        %5577 = vmatprep.subr.bf16.mxu0 %v4366
        %5578 = vmatpush1.bf16.msra.mxu0 %v4365
        %5579 = vmatprep.subr.bf16.mxu0 %v4356
        %5580 = vmatpush1.bf16.msra.mxu0 %v4355
        %5581 = vmatprep.subr.bf16.mxu0 %v4346
        %5582 = vmatpush1.bf16.msra.mxu0 %v4345
        %5583 = vmatprep.subr.bf16.mxu0 %v4336
        %5584 = vmatpush1.bf16.msra.mxu0 %v4335
        %5585 = vmatprep.subr.bf16.mxu0 %v4326
        %5586 = vmatpush1.bf16.msra.mxu0 %v4325
        %5587 = vmatprep.subr.bf16.mxu0 %v4316
        %5588 = vmatpush1.bf16.msra.mxu0 %v4315
        %5589 = vmatprep.subr.bf16.mxu0 %v4306
        %5590 = vmatpush1.bf16.msra.mxu0 %v4305
        %5591 = vmatprep.subr.bf16.mxu0 %v4456
        %5592 = vmatpush2.bf16.msra.mxu0 %v4455
        %5593 = vmatprep.subr.bf16.mxu0 %v4446
        %5594 = vmatpush2.bf16.msra.mxu0 %v4445
        %5595 = vmatprep.subr.bf16.mxu0 %v4436
        %5596 = vmatpush2.bf16.msra.mxu0 %v4435
        %5597 = vmatprep.subr.bf16.mxu0 %v4426
        %5598 = vmatpush2.bf16.msra.mxu0 %v4425
        %5599 = vmatprep.subr.bf16.mxu0 %v4416
        %5600 = vmatpush2.bf16.msra.mxu0 %v4415
        %5601 = vmatprep.subr.bf16.mxu0 %v4406
        %5602 = vmatpush2.bf16.msra.mxu0 %v4405
        %5603 = vmatprep.subr.bf16.mxu0 %v4396
        %5604 = vmatpush2.bf16.msra.mxu0 %v4395
        %5605 = vmatprep.subr.bf16.mxu0 %v4386
        %5606 = vmatpush2.bf16.msra.mxu0 %v4385
        %5607 = vmatprep.mubr.bf16.mxu0 %v926
        %5608 = vmatmul.mubr.bf16.gmra.mxu0 %v925
        %v5609 = vpop.f32.mrf.mxu0
        %v5610 = vadd.f32 %v5567, %v5609
        %v5611 = vpop.f32.mrf.mxu0
        %v5612 = vadd.f32 %v5569, %v5611
        %v5613 = vpop.f32.mrf.mxu0
        %v5614 = vadd.f32 %v5571, %v5613
        %v5615 = vpop.f32.mrf.mxu0
        %v5616 = vadd.f32 %v5573, %v5615
        %5617 = vdwg.mxu0
        %5618 = vmatprep.subr.bf16.mxu0 %v4536
        %5619 = vmatpush1.bf16.msra.mxu0 %v4535
        %5620 = vmatprep.subr.bf16.mxu0 %v4526
        %5621 = vmatpush1.bf16.msra.mxu0 %v4525
        %5622 = vmatprep.subr.bf16.mxu0 %v4516
        %5623 = vmatpush1.bf16.msra.mxu0 %v4515
        %5624 = vmatprep.subr.bf16.mxu0 %v4506
        %5625 = vmatpush1.bf16.msra.mxu0 %v4505
        %5626 = vmatprep.subr.bf16.mxu0 %v4496
        %5627 = vmatpush1.bf16.msra.mxu0 %v4495
        %5628 = vmatprep.subr.bf16.mxu0 %v4486
        %5629 = vmatpush1.bf16.msra.mxu0 %v4485
        %5630 = vmatprep.subr.bf16.mxu0 %v4476
        %5631 = vmatpush1.bf16.msra.mxu0 %v4475
        %5632 = vmatprep.subr.bf16.mxu0 %v4466
        %5633 = vmatpush1.bf16.msra.mxu0 %v4465
        %5634 = vmatprep.subr.bf16.mxu0 %v4616
        %5635 = vmatpush2.bf16.msra.mxu0 %v4615
        %5636 = vmatprep.subr.bf16.mxu0 %v4606
        %5637 = vmatpush2.bf16.msra.mxu0 %v4605
        %5638 = vmatprep.subr.bf16.mxu0 %v4596
        %5639 = vmatpush2.bf16.msra.mxu0 %v4595
        %5640 = vmatprep.subr.bf16.mxu0 %v4586
        %5641 = vmatpush2.bf16.msra.mxu0 %v4585
        %5642 = vmatprep.subr.bf16.mxu0 %v4576
        %5643 = vmatpush2.bf16.msra.mxu0 %v4575
        %5644 = vmatprep.subr.bf16.mxu0 %v4566
        %5645 = vmatpush2.bf16.msra.mxu0 %v4565
        %5646 = vmatprep.subr.bf16.mxu0 %v4556
        %5647 = vmatpush2.bf16.msra.mxu0 %v4555
        %5648 = vmatprep.subr.bf16.mxu0 %v4546
        %5649 = vmatpush2.bf16.msra.mxu0 %v4545
        %5650 = vmatprep.mubr.bf16.mxu0 %v928
        %5651 = vmatmul.mubr.bf16.gmra.mxu0 %v927
        %v5652 = vpop.f32.mrf.mxu0
        %v5653 = vadd.f32 %v5610, %v5652
        %v5654 = vpop.f32.mrf.mxu0
        %v5655 = vadd.f32 %v5612, %v5654
        %v5656 = vpop.f32.mrf.mxu0
        %v5657 = vadd.f32 %v5614, %v5656
        %v5658 = vpop.f32.mrf.mxu0
        %v5659 = vadd.f32 %v5616, %v5658
        %5660 = vdwg.mxu0
        %5661 = vmatprep.subr.bf16.mxu0 %v4696
        %5662 = vmatpush1.bf16.msra.mxu0 %v4695
        %5663 = vmatprep.subr.bf16.mxu0 %v4686
        %5664 = vmatpush1.bf16.msra.mxu0 %v4685
        %5665 = vmatprep.subr.bf16.mxu0 %v4676
        %5666 = vmatpush1.bf16.msra.mxu0 %v4675
        %5667 = vmatprep.subr.bf16.mxu0 %v4666
        %5668 = vmatpush1.bf16.msra.mxu0 %v4665
        %5669 = vmatprep.subr.bf16.mxu0 %v4656
        %5670 = vmatpush1.bf16.msra.mxu0 %v4655
        %5671 = vmatprep.subr.bf16.mxu0 %v4646
        %5672 = vmatpush1.bf16.msra.mxu0 %v4645
        %5673 = vmatprep.subr.bf16.mxu0 %v4636
        %5674 = vmatpush1.bf16.msra.mxu0 %v4635
        %5675 = vmatprep.subr.bf16.mxu0 %v4626
        %5676 = vmatpush1.bf16.msra.mxu0 %v4625
        %5677 = vmatprep.subr.bf16.mxu0 0
        %5678 = vmatpush2.bf16.msra.mxu0 0
        %5679 = vmatprep.subr.bf16.mxu0 0
        %5680 = vmatpush2.bf16.msra.mxu0 0
        %5681 = vmatprep.subr.bf16.mxu0 0
        %5682 = vmatpush2.bf16.msra.mxu0 0
        %5683 = vmatprep.subr.bf16.mxu0 0
        %5684 = vmatpush2.bf16.msra.mxu0 0
        %5685 = vmatprep.subr.bf16.mxu0 0
        %5686 = vmatpush2.bf16.msra.mxu0 0
        %5687 = vmatprep.subr.bf16.mxu0 %v4726
        %5688 = vmatpush2.bf16.msra.mxu0 %v4725
        %5689 = vmatprep.subr.bf16.mxu0 %v4716
        %5690 = vmatpush2.bf16.msra.mxu0 %v4715
        %5691 = vmatprep.subr.bf16.mxu0 %v4706
        %5692 = vmatpush2.bf16.msra.mxu0 %v4705
        %5693 = vmatprep.mubr.bf16.mxu0 %v5487
        %5694 = vmatmul.mubr.bf16.gmra.mxu0 %v929
        %v5695 = vpop.f32.mrf.mxu0
        %v5696 = vadd.f32 %v5653, %v5695
        %v5697 = vpop.f32.mrf.mxu0
        %v5698 = vadd.f32 %v5655, %v5697
        %v5699 = vpop.f32.mrf.mxu0
        %v5700 = vadd.f32 %v5657, %v5699
        %v5701 = vpop.f32.mrf.mxu0
        %v5702 = vadd.f32 %v5659, %v5701
        %5703 = vdwg.mxu0
        %5704 = vmatprep.subr.bf16.mxu0 %v4058
        %5705 = vmatpush1.bf16.msra.mxu0 %v4057
        %5706 = vmatprep.subr.bf16.mxu0 %v4048
        %5707 = vmatpush1.bf16.msra.mxu0 %v4047
        %5708 = vmatprep.subr.bf16.mxu0 %v4038
        %5709 = vmatpush1.bf16.msra.mxu0 %v4037
        %5710 = vmatprep.subr.bf16.mxu0 %v4028
        %5711 = vmatpush1.bf16.msra.mxu0 %v4027
        %5712 = vmatprep.subr.bf16.mxu0 %v4018
        %5713 = vmatpush1.bf16.msra.mxu0 %v4017
        %5714 = vmatprep.subr.bf16.mxu0 %v4008
        %5715 = vmatpush1.bf16.msra.mxu0 %v4007
        %5716 = vmatprep.subr.bf16.mxu0 %v3998
        %5717 = vmatpush1.bf16.msra.mxu0 %v3997
        %5718 = vmatprep.subr.bf16.mxu0 %v3988
        %5719 = vmatpush1.bf16.msra.mxu0 %v3987
        %5720 = vmatprep.subr.bf16.mxu0 %v4138
        %5721 = vmatpush2.bf16.msra.mxu0 %v4137
        %5722 = vmatprep.subr.bf16.mxu0 %v4128
        %5723 = vmatpush2.bf16.msra.mxu0 %v4127
        %5724 = vmatprep.subr.bf16.mxu0 %v4118
        %5725 = vmatpush2.bf16.msra.mxu0 %v4117
        %5726 = vmatprep.subr.bf16.mxu0 %v4108
        %5727 = vmatpush2.bf16.msra.mxu0 %v4107
        %5728 = vmatprep.subr.bf16.mxu0 %v4098
        %5729 = vmatpush2.bf16.msra.mxu0 %v4097
        %5730 = vmatprep.subr.bf16.mxu0 %v4088
        %5731 = vmatpush2.bf16.msra.mxu0 %v4087
        %5732 = vmatprep.subr.bf16.mxu0 %v4078
        %5733 = vmatpush2.bf16.msra.mxu0 %v4077
        %5734 = vmatprep.subr.bf16.mxu0 %v4068
        %5735 = vmatpush2.bf16.msra.mxu0 %v4067
        %5736 = vmatprep.mubr.bf16.mxu0 %v922
        %5737 = vmatmul.mubr.bf16.gmra.mxu0 %v921
        %v5738 = vpop.f32.mrf.mxu0
        %v5739 = vadd.f32 %v1696, %v5738
        %v5740 = vpop.f32.mrf.mxu0
        %v5741 = vadd.f32 %v1700, %v5740
        %v5742 = vpop.f32.mrf.mxu0
        %v5743 = vadd.f32 %v1696, %v5742
        %v5744 = vpop.f32.mrf.mxu0
        %v5745 = vadd.f32 %v1700, %v5744
        %5746 = vdwg.mxu0
        %5747 = vmatprep.subr.bf16.mxu0 %v4218
        %5748 = vmatpush1.bf16.msra.mxu0 %v4217
        %5749 = vmatprep.subr.bf16.mxu0 %v4208
        %5750 = vmatpush1.bf16.msra.mxu0 %v4207
        %5751 = vmatprep.subr.bf16.mxu0 %v4198
        %5752 = vmatpush1.bf16.msra.mxu0 %v4197
        %5753 = vmatprep.subr.bf16.mxu0 %v4188
        %5754 = vmatpush1.bf16.msra.mxu0 %v4187
        %5755 = vmatprep.subr.bf16.mxu0 %v4178
        %5756 = vmatpush1.bf16.msra.mxu0 %v4177
        %5757 = vmatprep.subr.bf16.mxu0 %v4168
        %5758 = vmatpush1.bf16.msra.mxu0 %v4167
        %5759 = vmatprep.subr.bf16.mxu0 %v4158
        %5760 = vmatpush1.bf16.msra.mxu0 %v4157
        %5761 = vmatprep.subr.bf16.mxu0 %v4148
        %5762 = vmatpush1.bf16.msra.mxu0 %v4147
        %5763 = vmatprep.subr.bf16.mxu0 %v4298
        %5764 = vmatpush2.bf16.msra.mxu0 %v4297
        %5765 = vmatprep.subr.bf16.mxu0 %v4288
        %5766 = vmatpush2.bf16.msra.mxu0 %v4287
        %5767 = vmatprep.subr.bf16.mxu0 %v4278
        %5768 = vmatpush2.bf16.msra.mxu0 %v4277
        %5769 = vmatprep.subr.bf16.mxu0 %v4268
        %5770 = vmatpush2.bf16.msra.mxu0 %v4267
        %5771 = vmatprep.subr.bf16.mxu0 %v4258
        %5772 = vmatpush2.bf16.msra.mxu0 %v4257
        %5773 = vmatprep.subr.bf16.mxu0 %v4248
        %5774 = vmatpush2.bf16.msra.mxu0 %v4247
        %5775 = vmatprep.subr.bf16.mxu0 %v4238
        %5776 = vmatpush2.bf16.msra.mxu0 %v4237
        %5777 = vmatprep.subr.bf16.mxu0 %v4228
        %5778 = vmatpush2.bf16.msra.mxu0 %v4227
        %5779 = vmatprep.mubr.bf16.mxu0 %v924
        %5780 = vmatmul.mubr.bf16.gmra.mxu0 %v923
        %v5781 = vpop.f32.mrf.mxu0
        %v5782 = vadd.f32 %v5739, %v5781
        %v5783 = vpop.f32.mrf.mxu0
        %v5784 = vadd.f32 %v5741, %v5783
        %v5785 = vpop.f32.mrf.mxu0
        %v5786 = vadd.f32 %v5743, %v5785
        %v5787 = vpop.f32.mrf.mxu0
        %v5788 = vadd.f32 %v5745, %v5787
        %5789 = vdwg.mxu0
        %5790 = vmatprep.subr.bf16.mxu0 %v4378
        %5791 = vmatpush1.bf16.msra.mxu0 %v4377
        %5792 = vmatprep.subr.bf16.mxu0 %v4368
        %5793 = vmatpush1.bf16.msra.mxu0 %v4367
        %5794 = vmatprep.subr.bf16.mxu0 %v4358
        %5795 = vmatpush1.bf16.msra.mxu0 %v4357
        %5796 = vmatprep.subr.bf16.mxu0 %v4348
        %5797 = vmatpush1.bf16.msra.mxu0 %v4347
        %5798 = vmatprep.subr.bf16.mxu0 %v4338
        %5799 = vmatpush1.bf16.msra.mxu0 %v4337
        %5800 = vmatprep.subr.bf16.mxu0 %v4328
        %5801 = vmatpush1.bf16.msra.mxu0 %v4327
        %5802 = vmatprep.subr.bf16.mxu0 %v4318
        %5803 = vmatpush1.bf16.msra.mxu0 %v4317
        %5804 = vmatprep.subr.bf16.mxu0 %v4308
        %5805 = vmatpush1.bf16.msra.mxu0 %v4307
        %5806 = vmatprep.subr.bf16.mxu0 %v4458
        %5807 = vmatpush2.bf16.msra.mxu0 %v4457
        %5808 = vmatprep.subr.bf16.mxu0 %v4448
        %5809 = vmatpush2.bf16.msra.mxu0 %v4447
        %5810 = vmatprep.subr.bf16.mxu0 %v4438
        %5811 = vmatpush2.bf16.msra.mxu0 %v4437
        %5812 = vmatprep.subr.bf16.mxu0 %v4428
        %5813 = vmatpush2.bf16.msra.mxu0 %v4427
        %5814 = vmatprep.subr.bf16.mxu0 %v4418
        %5815 = vmatpush2.bf16.msra.mxu0 %v4417
        %5816 = vmatprep.subr.bf16.mxu0 %v4408
        %5817 = vmatpush2.bf16.msra.mxu0 %v4407
        %5818 = vmatprep.subr.bf16.mxu0 %v4398
        %5819 = vmatpush2.bf16.msra.mxu0 %v4397
        %5820 = vmatprep.subr.bf16.mxu0 %v4388
        %5821 = vmatpush2.bf16.msra.mxu0 %v4387
        %5822 = vmatprep.mubr.bf16.mxu0 %v926
        %5823 = vmatmul.mubr.bf16.gmra.mxu0 %v925
        %v5824 = vpop.f32.mrf.mxu0
        %v5825 = vadd.f32 %v5782, %v5824
        %v5826 = vpop.f32.mrf.mxu0
        %v5827 = vadd.f32 %v5784, %v5826
        %v5828 = vpop.f32.mrf.mxu0
        %v5829 = vadd.f32 %v5786, %v5828
        %v5830 = vpop.f32.mrf.mxu0
        %v5831 = vadd.f32 %v5788, %v5830
        %5832 = vdwg.mxu0
        %5833 = vmatprep.subr.bf16.mxu0 %v4538
        %5834 = vmatpush1.bf16.msra.mxu0 %v4537
        %5835 = vmatprep.subr.bf16.mxu0 %v4528
        %5836 = vmatpush1.bf16.msra.mxu0 %v4527
        %5837 = vmatprep.subr.bf16.mxu0 %v4518
        %5838 = vmatpush1.bf16.msra.mxu0 %v4517
        %5839 = vmatprep.subr.bf16.mxu0 %v4508
        %5840 = vmatpush1.bf16.msra.mxu0 %v4507
        %5841 = vmatprep.subr.bf16.mxu0 %v4498
        %5842 = vmatpush1.bf16.msra.mxu0 %v4497
        %5843 = vmatprep.subr.bf16.mxu0 %v4488
        %5844 = vmatpush1.bf16.msra.mxu0 %v4487
        %5845 = vmatprep.subr.bf16.mxu0 %v4478
        %5846 = vmatpush1.bf16.msra.mxu0 %v4477
        %5847 = vmatprep.subr.bf16.mxu0 %v4468
        %5848 = vmatpush1.bf16.msra.mxu0 %v4467
        %5849 = vmatprep.subr.bf16.mxu0 %v4618
        %5850 = vmatpush2.bf16.msra.mxu0 %v4617
        %5851 = vmatprep.subr.bf16.mxu0 %v4608
        %5852 = vmatpush2.bf16.msra.mxu0 %v4607
        %5853 = vmatprep.subr.bf16.mxu0 %v4598
        %5854 = vmatpush2.bf16.msra.mxu0 %v4597
        %5855 = vmatprep.subr.bf16.mxu0 %v4588
        %5856 = vmatpush2.bf16.msra.mxu0 %v4587
        %5857 = vmatprep.subr.bf16.mxu0 %v4578
        %5858 = vmatpush2.bf16.msra.mxu0 %v4577
        %5859 = vmatprep.subr.bf16.mxu0 %v4568
        %5860 = vmatpush2.bf16.msra.mxu0 %v4567
        %5861 = vmatprep.subr.bf16.mxu0 %v4558
        %5862 = vmatpush2.bf16.msra.mxu0 %v4557
        %5863 = vmatprep.subr.bf16.mxu0 %v4548
        %5864 = vmatpush2.bf16.msra.mxu0 %v4547
        %5865 = vmatprep.mubr.bf16.mxu0 %v928
        %5866 = vmatmul.mubr.bf16.gmra.mxu0 %v927
        %v5867 = vpop.f32.mrf.mxu0
        %v5868 = vadd.f32 %v5825, %v5867
        %v5869 = vpop.f32.mrf.mxu0
        %v5870 = vadd.f32 %v5827, %v5869
        %v5871 = vpop.f32.mrf.mxu0
        %v5872 = vadd.f32 %v5829, %v5871
        %v5873 = vpop.f32.mrf.mxu0
        %v5874 = vadd.f32 %v5831, %v5873
        %5875 = vdwg.mxu0
        %5876 = vmatprep.subr.bf16.mxu0 %v4698
        %5877 = vmatpush1.bf16.msra.mxu0 %v4697
        %5878 = vmatprep.subr.bf16.mxu0 %v4688
        %5879 = vmatpush1.bf16.msra.mxu0 %v4687
        %5880 = vmatprep.subr.bf16.mxu0 %v4678
        %5881 = vmatpush1.bf16.msra.mxu0 %v4677
        %5882 = vmatprep.subr.bf16.mxu0 %v4668
        %5883 = vmatpush1.bf16.msra.mxu0 %v4667
        %5884 = vmatprep.subr.bf16.mxu0 %v4658
        %5885 = vmatpush1.bf16.msra.mxu0 %v4657
        %5886 = vmatprep.subr.bf16.mxu0 %v4648
        %5887 = vmatpush1.bf16.msra.mxu0 %v4647
        %5888 = vmatprep.subr.bf16.mxu0 %v4638
        %5889 = vmatpush1.bf16.msra.mxu0 %v4637
        %5890 = vmatprep.subr.bf16.mxu0 %v4628
        %5891 = vmatpush1.bf16.msra.mxu0 %v4627
        %5892 = vmatprep.subr.bf16.mxu0 0
        %5893 = vmatpush2.bf16.msra.mxu0 0
        %5894 = vmatprep.subr.bf16.mxu0 0
        %5895 = vmatpush2.bf16.msra.mxu0 0
        %5896 = vmatprep.subr.bf16.mxu0 0
        %5897 = vmatpush2.bf16.msra.mxu0 0
        %5898 = vmatprep.subr.bf16.mxu0 0
        %5899 = vmatpush2.bf16.msra.mxu0 0
        %5900 = vmatprep.subr.bf16.mxu0 0
        %5901 = vmatpush2.bf16.msra.mxu0 0
        %5902 = vmatprep.subr.bf16.mxu0 %v4728
        %5903 = vmatpush2.bf16.msra.mxu0 %v4727
        %5904 = vmatprep.subr.bf16.mxu0 %v4718
        %5905 = vmatpush2.bf16.msra.mxu0 %v4717
        %5906 = vmatprep.subr.bf16.mxu0 %v4708
        %5907 = vmatpush2.bf16.msra.mxu0 %v4707
        %5908 = vmatprep.mubr.bf16.mxu0 %v5487
        %5909 = vmatmul.mubr.bf16.gmra.mxu0 %v929
        %v5910 = vpop.f32.mrf.mxu0
        %v5911 = vadd.f32 %v5868, %v5910
        %v5912 = vpop.f32.mrf.mxu0
        %v5913 = vadd.f32 %v5870, %v5912
        %v5914 = vpop.f32.mrf.mxu0
        %v5915 = vadd.f32 %v5872, %v5914
        %v5916 = vpop.f32.mrf.mxu0
        %v5917 = vadd.f32 %v5874, %v5916
        %5918 = vdwg.mxu0
        %5919 = vmatprep.subr.bf16.mxu0 %v4060
        %5920 = vmatpush1.bf16.msra.mxu0 %v4059
        %5921 = vmatprep.subr.bf16.mxu0 %v4050
        %5922 = vmatpush1.bf16.msra.mxu0 %v4049
        %5923 = vmatprep.subr.bf16.mxu0 %v4040
        %5924 = vmatpush1.bf16.msra.mxu0 %v4039
        %5925 = vmatprep.subr.bf16.mxu0 %v4030
        %5926 = vmatpush1.bf16.msra.mxu0 %v4029
        %5927 = vmatprep.subr.bf16.mxu0 %v4020
        %5928 = vmatpush1.bf16.msra.mxu0 %v4019
        %5929 = vmatprep.subr.bf16.mxu0 %v4010
        %5930 = vmatpush1.bf16.msra.mxu0 %v4009
        %5931 = vmatprep.subr.bf16.mxu0 %v4000
        %5932 = vmatpush1.bf16.msra.mxu0 %v3999
        %5933 = vmatprep.subr.bf16.mxu0 %v3990
        %5934 = vmatpush1.bf16.msra.mxu0 %v3989
        %5935 = vmatprep.subr.bf16.mxu0 %v4140
        %5936 = vmatpush2.bf16.msra.mxu0 %v4139
        %5937 = vmatprep.subr.bf16.mxu0 %v4130
        %5938 = vmatpush2.bf16.msra.mxu0 %v4129
        %5939 = vmatprep.subr.bf16.mxu0 %v4120
        %5940 = vmatpush2.bf16.msra.mxu0 %v4119
        %5941 = vmatprep.subr.bf16.mxu0 %v4110
        %5942 = vmatpush2.bf16.msra.mxu0 %v4109
        %5943 = vmatprep.subr.bf16.mxu0 %v4100
        %5944 = vmatpush2.bf16.msra.mxu0 %v4099
        %5945 = vmatprep.subr.bf16.mxu0 %v4090
        %5946 = vmatpush2.bf16.msra.mxu0 %v4089
        %5947 = vmatprep.subr.bf16.mxu0 %v4080
        %5948 = vmatpush2.bf16.msra.mxu0 %v4079
        %5949 = vmatprep.subr.bf16.mxu0 %v4070
        %5950 = vmatpush2.bf16.msra.mxu0 %v4069
        %5951 = vmatprep.mubr.bf16.mxu0 %v922
        %5952 = vmatmul.mubr.bf16.gmra.mxu0 %v921
        %v5953 = vpop.f32.mrf.mxu0
        %v5954 = vadd.f32 %v1704, %v5953
        %v5955 = vpop.f32.mrf.mxu0
        %v5956 = vadd.f32 %v1708, %v5955
        %v5957 = vpop.f32.mrf.mxu0
        %v5958 = vadd.f32 %v1704, %v5957
        %v5959 = vpop.f32.mrf.mxu0
        %v5960 = vadd.f32 %v1708, %v5959
        %5961 = vdwg.mxu0
        %5962 = vmatprep.subr.bf16.mxu0 %v4220
        %5963 = vmatpush1.bf16.msra.mxu0 %v4219
        %5964 = vmatprep.subr.bf16.mxu0 %v4210
        %5965 = vmatpush1.bf16.msra.mxu0 %v4209
        %5966 = vmatprep.subr.bf16.mxu0 %v4200
        %5967 = vmatpush1.bf16.msra.mxu0 %v4199
        %5968 = vmatprep.subr.bf16.mxu0 %v4190
        %5969 = vmatpush1.bf16.msra.mxu0 %v4189
        %5970 = vmatprep.subr.bf16.mxu0 %v4180
        %5971 = vmatpush1.bf16.msra.mxu0 %v4179
        %5972 = vmatprep.subr.bf16.mxu0 %v4170
        %5973 = vmatpush1.bf16.msra.mxu0 %v4169
        %5974 = vmatprep.subr.bf16.mxu0 %v4160
        %5975 = vmatpush1.bf16.msra.mxu0 %v4159
        %5976 = vmatprep.subr.bf16.mxu0 %v4150
        %5977 = vmatpush1.bf16.msra.mxu0 %v4149
        %5978 = vmatprep.subr.bf16.mxu0 %v4300
        %5979 = vmatpush2.bf16.msra.mxu0 %v4299
        %5980 = vmatprep.subr.bf16.mxu0 %v4290
        %5981 = vmatpush2.bf16.msra.mxu0 %v4289
        %5982 = vmatprep.subr.bf16.mxu0 %v4280
        %5983 = vmatpush2.bf16.msra.mxu0 %v4279
        %5984 = vmatprep.subr.bf16.mxu0 %v4270
        %5985 = vmatpush2.bf16.msra.mxu0 %v4269
        %5986 = vmatprep.subr.bf16.mxu0 %v4260
        %5987 = vmatpush2.bf16.msra.mxu0 %v4259
        %5988 = vmatprep.subr.bf16.mxu0 %v4250
        %5989 = vmatpush2.bf16.msra.mxu0 %v4249
        %5990 = vmatprep.subr.bf16.mxu0 %v4240
        %5991 = vmatpush2.bf16.msra.mxu0 %v4239
        %5992 = vmatprep.subr.bf16.mxu0 %v4230
        %5993 = vmatpush2.bf16.msra.mxu0 %v4229
        %5994 = vmatprep.mubr.bf16.mxu0 %v924
        %5995 = vmatmul.mubr.bf16.gmra.mxu0 %v923
        %v5996 = vpop.f32.mrf.mxu0
        %v5997 = vadd.f32 %v5954, %v5996
        %v5998 = vpop.f32.mrf.mxu0
        %v5999 = vadd.f32 %v5956, %v5998
        %v6000 = vpop.f32.mrf.mxu0
        %v6001 = vadd.f32 %v5958, %v6000
        %v6002 = vpop.f32.mrf.mxu0
        %v6003 = vadd.f32 %v5960, %v6002
        %6004 = vdwg.mxu0
        %6005 = vmatprep.subr.bf16.mxu0 %v4380
        %6006 = vmatpush1.bf16.msra.mxu0 %v4379
        %6007 = vmatprep.subr.bf16.mxu0 %v4370
        %6008 = vmatpush1.bf16.msra.mxu0 %v4369
        %6009 = vmatprep.subr.bf16.mxu0 %v4360
        %6010 = vmatpush1.bf16.msra.mxu0 %v4359
        %6011 = vmatprep.subr.bf16.mxu0 %v4350
        %6012 = vmatpush1.bf16.msra.mxu0 %v4349
        %6013 = vmatprep.subr.bf16.mxu0 %v4340
        %6014 = vmatpush1.bf16.msra.mxu0 %v4339
        %6015 = vmatprep.subr.bf16.mxu0 %v4330
        %6016 = vmatpush1.bf16.msra.mxu0 %v4329
        %6017 = vmatprep.subr.bf16.mxu0 %v4320
        %6018 = vmatpush1.bf16.msra.mxu0 %v4319
        %6019 = vmatprep.subr.bf16.mxu0 %v4310
        %6020 = vmatpush1.bf16.msra.mxu0 %v4309
        %6021 = vmatprep.subr.bf16.mxu0 %v4460
        %6022 = vmatpush2.bf16.msra.mxu0 %v4459
        %6023 = vmatprep.subr.bf16.mxu0 %v4450
        %6024 = vmatpush2.bf16.msra.mxu0 %v4449
        %6025 = vmatprep.subr.bf16.mxu0 %v4440
        %6026 = vmatpush2.bf16.msra.mxu0 %v4439
        %6027 = vmatprep.subr.bf16.mxu0 %v4430
        %6028 = vmatpush2.bf16.msra.mxu0 %v4429
        %6029 = vmatprep.subr.bf16.mxu0 %v4420
        %6030 = vmatpush2.bf16.msra.mxu0 %v4419
        %6031 = vmatprep.subr.bf16.mxu0 %v4410
        %6032 = vmatpush2.bf16.msra.mxu0 %v4409
        %6033 = vmatprep.subr.bf16.mxu0 %v4400
        %6034 = vmatpush2.bf16.msra.mxu0 %v4399
        %6035 = vmatprep.subr.bf16.mxu0 %v4390
        %6036 = vmatpush2.bf16.msra.mxu0 %v4389
        %6037 = vmatprep.mubr.bf16.mxu0 %v926
        %6038 = vmatmul.mubr.bf16.gmra.mxu0 %v925
        %v6039 = vpop.f32.mrf.mxu0
        %v6040 = vadd.f32 %v5997, %v6039
        %v6041 = vpop.f32.mrf.mxu0
        %v6042 = vadd.f32 %v5999, %v6041
        %v6043 = vpop.f32.mrf.mxu0
        %v6044 = vadd.f32 %v6001, %v6043
        %v6045 = vpop.f32.mrf.mxu0
        %v6046 = vadd.f32 %v6003, %v6045
        %6047 = vdwg.mxu0
        %6048 = vmatprep.subr.bf16.mxu0 %v4540
        %6049 = vmatpush1.bf16.msra.mxu0 %v4539
        %6050 = vmatprep.subr.bf16.mxu0 %v4530
        %6051 = vmatpush1.bf16.msra.mxu0 %v4529
        %6052 = vmatprep.subr.bf16.mxu0 %v4520
        %6053 = vmatpush1.bf16.msra.mxu0 %v4519
        %6054 = vmatprep.subr.bf16.mxu0 %v4510
        %6055 = vmatpush1.bf16.msra.mxu0 %v4509
        %6056 = vmatprep.subr.bf16.mxu0 %v4500
        %6057 = vmatpush1.bf16.msra.mxu0 %v4499
        %6058 = vmatprep.subr.bf16.mxu0 %v4490
        %6059 = vmatpush1.bf16.msra.mxu0 %v4489
        %6060 = vmatprep.subr.bf16.mxu0 %v4480
        %6061 = vmatpush1.bf16.msra.mxu0 %v4479
        %6062 = vmatprep.subr.bf16.mxu0 %v4470
        %6063 = vmatpush1.bf16.msra.mxu0 %v4469
        %6064 = vmatprep.subr.bf16.mxu0 %v4620
        %6065 = vmatpush2.bf16.msra.mxu0 %v4619
        %6066 = vmatprep.subr.bf16.mxu0 %v4610
        %6067 = vmatpush2.bf16.msra.mxu0 %v4609
        %6068 = vmatprep.subr.bf16.mxu0 %v4600
        %6069 = vmatpush2.bf16.msra.mxu0 %v4599
        %6070 = vmatprep.subr.bf16.mxu0 %v4590
        %6071 = vmatpush2.bf16.msra.mxu0 %v4589
        %6072 = vmatprep.subr.bf16.mxu0 %v4580
        %6073 = vmatpush2.bf16.msra.mxu0 %v4579
        %6074 = vmatprep.subr.bf16.mxu0 %v4570
        %6075 = vmatpush2.bf16.msra.mxu0 %v4569
        %6076 = vmatprep.subr.bf16.mxu0 %v4560
        %6077 = vmatpush2.bf16.msra.mxu0 %v4559
        %6078 = vmatprep.subr.bf16.mxu0 %v4550
        %6079 = vmatpush2.bf16.msra.mxu0 %v4549
        %6080 = vmatprep.mubr.bf16.mxu0 %v928
        %6081 = vmatmul.mubr.bf16.gmra.mxu0 %v927
        %v6082 = vpop.f32.mrf.mxu0
        %v6083 = vadd.f32 %v6040, %v6082
        %v6084 = vpop.f32.mrf.mxu0
        %v6085 = vadd.f32 %v6042, %v6084
        %v6086 = vpop.f32.mrf.mxu0
        %v6087 = vadd.f32 %v6044, %v6086
        %v6088 = vpop.f32.mrf.mxu0
        %v6089 = vadd.f32 %v6046, %v6088
        %6090 = vdwg.mxu0
        %6091 = vmatprep.subr.bf16.mxu0 %v4700
        %6092 = vmatpush1.bf16.msra.mxu0 %v4699
        %6093 = vmatprep.subr.bf16.mxu0 %v4690
        %6094 = vmatpush1.bf16.msra.mxu0 %v4689
        %6095 = vmatprep.subr.bf16.mxu0 %v4680
        %6096 = vmatpush1.bf16.msra.mxu0 %v4679
        %6097 = vmatprep.subr.bf16.mxu0 %v4670
        %6098 = vmatpush1.bf16.msra.mxu0 %v4669
        %6099 = vmatprep.subr.bf16.mxu0 %v4660
        %6100 = vmatpush1.bf16.msra.mxu0 %v4659
        %6101 = vmatprep.subr.bf16.mxu0 %v4650
        %6102 = vmatpush1.bf16.msra.mxu0 %v4649
        %6103 = vmatprep.subr.bf16.mxu0 %v4640
        %6104 = vmatpush1.bf16.msra.mxu0 %v4639
        %6105 = vmatprep.subr.bf16.mxu0 %v4630
        %6106 = vmatpush1.bf16.msra.mxu0 %v4629
        %6107 = vmatprep.subr.bf16.mxu0 0
        %6108 = vmatpush2.bf16.msra.mxu0 0
        %6109 = vmatprep.subr.bf16.mxu0 0
        %6110 = vmatpush2.bf16.msra.mxu0 0
        %6111 = vmatprep.subr.bf16.mxu0 0
        %6112 = vmatpush2.bf16.msra.mxu0 0
        %6113 = vmatprep.subr.bf16.mxu0 0
        %6114 = vmatpush2.bf16.msra.mxu0 0
        %6115 = vmatprep.subr.bf16.mxu0 0
        %6116 = vmatpush2.bf16.msra.mxu0 0
        %6117 = vmatprep.subr.bf16.mxu0 %v4730
        %6118 = vmatpush2.bf16.msra.mxu0 %v4729
        %6119 = vmatprep.subr.bf16.mxu0 %v4720
        %6120 = vmatpush2.bf16.msra.mxu0 %v4719
        %6121 = vmatprep.subr.bf16.mxu0 %v4710
        %6122 = vmatpush2.bf16.msra.mxu0 %v4709
        %6123 = vmatprep.mubr.bf16.mxu0 %v5487
        %6124 = vmatmul.mubr.bf16.gmra.mxu0 %v929
        %v6125 = vpop.f32.mrf.mxu0
        %v6126 = vadd.f32 %v6083, %v6125
        %v6127 = vpop.f32.mrf.mxu0
        %v6128 = vadd.f32 %v6085, %v6127
        %v6129 = vpop.f32.mrf.mxu0
        %v6130 = vadd.f32 %v6087, %v6129
        %v6131 = vpop.f32.mrf.mxu0
        %v6132 = vadd.f32 %v6089, %v6131
        %6133 = vdwg.mxu0
        %6134 = vmatprep.subr.bf16.mxu0 %v4062
        %6135 = vmatpush1.bf16.msra.mxu0 %v4061
        %6136 = vmatprep.subr.bf16.mxu0 %v4052
        %6137 = vmatpush1.bf16.msra.mxu0 %v4051
        %6138 = vmatprep.subr.bf16.mxu0 %v4042
        %6139 = vmatpush1.bf16.msra.mxu0 %v4041
        %6140 = vmatprep.subr.bf16.mxu0 %v4032
        %6141 = vmatpush1.bf16.msra.mxu0 %v4031
        %6142 = vmatprep.subr.bf16.mxu0 %v4022
        %6143 = vmatpush1.bf16.msra.mxu0 %v4021
        %6144 = vmatprep.subr.bf16.mxu0 %v4012
        %6145 = vmatpush1.bf16.msra.mxu0 %v4011
        %6146 = vmatprep.subr.bf16.mxu0 %v4002
        %6147 = vmatpush1.bf16.msra.mxu0 %v4001
        %6148 = vmatprep.subr.bf16.mxu0 %v3992
        %6149 = vmatpush1.bf16.msra.mxu0 %v3991
        %6150 = vmatprep.subr.bf16.mxu0 %v4142
        %6151 = vmatpush2.bf16.msra.mxu0 %v4141
        %6152 = vmatprep.subr.bf16.mxu0 %v4132
        %6153 = vmatpush2.bf16.msra.mxu0 %v4131
        %6154 = vmatprep.subr.bf16.mxu0 %v4122
        %6155 = vmatpush2.bf16.msra.mxu0 %v4121
        %6156 = vmatprep.subr.bf16.mxu0 %v4112
        %6157 = vmatpush2.bf16.msra.mxu0 %v4111
        %6158 = vmatprep.subr.bf16.mxu0 %v4102
        %6159 = vmatpush2.bf16.msra.mxu0 %v4101
        %6160 = vmatprep.subr.bf16.mxu0 %v4092
        %6161 = vmatpush2.bf16.msra.mxu0 %v4091
        %6162 = vmatprep.subr.bf16.mxu0 %v4082
        %6163 = vmatpush2.bf16.msra.mxu0 %v4081
        %6164 = vmatprep.subr.bf16.mxu0 %v4072
        %6165 = vmatpush2.bf16.msra.mxu0 %v4071
        %6166 = vmatprep.mubr.bf16.mxu0 %v922
        %6167 = vmatmul.mubr.bf16.gmra.mxu0 %v921
        %v6168 = vpop.f32.mrf.mxu0
        %v6169 = vadd.f32 %v1712, %v6168
        %v6170 = vpop.f32.mrf.mxu0
        %v6171 = vadd.f32 %v1716, %v6170
        %v6172 = vpop.f32.mrf.mxu0
        %v6173 = vadd.f32 %v1712, %v6172
        %v6174 = vpop.f32.mrf.mxu0
        %v6175 = vadd.f32 %v1716, %v6174
        %6176 = vdwg.mxu0
        %6177 = vmatprep.subr.bf16.mxu0 %v4222
        %6178 = vmatpush1.bf16.msra.mxu0 %v4221
        %6179 = vmatprep.subr.bf16.mxu0 %v4212
        %6180 = vmatpush1.bf16.msra.mxu0 %v4211
        %6181 = vmatprep.subr.bf16.mxu0 %v4202
        %6182 = vmatpush1.bf16.msra.mxu0 %v4201
        %6183 = vmatprep.subr.bf16.mxu0 %v4192
        %6184 = vmatpush1.bf16.msra.mxu0 %v4191
        %6185 = vmatprep.subr.bf16.mxu0 %v4182
        %6186 = vmatpush1.bf16.msra.mxu0 %v4181
        %6187 = vmatprep.subr.bf16.mxu0 %v4172
        %6188 = vmatpush1.bf16.msra.mxu0 %v4171
        %6189 = vmatprep.subr.bf16.mxu0 %v4162
        %6190 = vmatpush1.bf16.msra.mxu0 %v4161
        %6191 = vmatprep.subr.bf16.mxu0 %v4152
        %6192 = vmatpush1.bf16.msra.mxu0 %v4151
        %6193 = vmatprep.subr.bf16.mxu0 %v4302
        %6194 = vmatpush2.bf16.msra.mxu0 %v4301
        %6195 = vmatprep.subr.bf16.mxu0 %v4292
        %6196 = vmatpush2.bf16.msra.mxu0 %v4291
        %6197 = vmatprep.subr.bf16.mxu0 %v4282
        %6198 = vmatpush2.bf16.msra.mxu0 %v4281
        %6199 = vmatprep.subr.bf16.mxu0 %v4272
        %6200 = vmatpush2.bf16.msra.mxu0 %v4271
        %6201 = vmatprep.subr.bf16.mxu0 %v4262
        %6202 = vmatpush2.bf16.msra.mxu0 %v4261
        %6203 = vmatprep.subr.bf16.mxu0 %v4252
        %6204 = vmatpush2.bf16.msra.mxu0 %v4251
        %6205 = vmatprep.subr.bf16.mxu0 %v4242
        %6206 = vmatpush2.bf16.msra.mxu0 %v4241
        %6207 = vmatprep.subr.bf16.mxu0 %v4232
        %6208 = vmatpush2.bf16.msra.mxu0 %v4231
        %6209 = vmatprep.mubr.bf16.mxu0 %v924
        %6210 = vmatmul.mubr.bf16.gmra.mxu0 %v923
        %v6211 = vpop.f32.mrf.mxu0
        %v6212 = vadd.f32 %v6169, %v6211
        %v6213 = vpop.f32.mrf.mxu0
        %v6214 = vadd.f32 %v6171, %v6213
        %v6215 = vpop.f32.mrf.mxu0
        %v6216 = vadd.f32 %v6173, %v6215
        %v6217 = vpop.f32.mrf.mxu0
        %v6218 = vadd.f32 %v6175, %v6217
        %6219 = vdwg.mxu0
        %6220 = vmatprep.subr.bf16.mxu0 %v4382
        %6221 = vmatpush1.bf16.msra.mxu0 %v4381
        %6222 = vmatprep.subr.bf16.mxu0 %v4372
        %6223 = vmatpush1.bf16.msra.mxu0 %v4371
        %6224 = vmatprep.subr.bf16.mxu0 %v4362
        %6225 = vmatpush1.bf16.msra.mxu0 %v4361
        %6226 = vmatprep.subr.bf16.mxu0 %v4352
        %6227 = vmatpush1.bf16.msra.mxu0 %v4351
        %6228 = vmatprep.subr.bf16.mxu0 %v4342
        %6229 = vmatpush1.bf16.msra.mxu0 %v4341
        %6230 = vmatprep.subr.bf16.mxu0 %v4332
        %6231 = vmatpush1.bf16.msra.mxu0 %v4331
        %6232 = vmatprep.subr.bf16.mxu0 %v4322
        %6233 = vmatpush1.bf16.msra.mxu0 %v4321
        %6234 = vmatprep.subr.bf16.mxu0 %v4312
        %6235 = vmatpush1.bf16.msra.mxu0 %v4311
        %6236 = vmatprep.subr.bf16.mxu0 %v4462
        %6237 = vmatpush2.bf16.msra.mxu0 %v4461
        %6238 = vmatprep.subr.bf16.mxu0 %v4452
        %6239 = vmatpush2.bf16.msra.mxu0 %v4451
        %6240 = vmatprep.subr.bf16.mxu0 %v4442
        %6241 = vmatpush2.bf16.msra.mxu0 %v4441
        %6242 = vmatprep.subr.bf16.mxu0 %v4432
        %6243 = vmatpush2.bf16.msra.mxu0 %v4431
        %6244 = vmatprep.subr.bf16.mxu0 %v4422
        %6245 = vmatpush2.bf16.msra.mxu0 %v4421
        %6246 = vmatprep.subr.bf16.mxu0 %v4412
        %6247 = vmatpush2.bf16.msra.mxu0 %v4411
        %6248 = vmatprep.subr.bf16.mxu0 %v4402
        %6249 = vmatpush2.bf16.msra.mxu0 %v4401
        %6250 = vmatprep.subr.bf16.mxu0 %v4392
        %6251 = vmatpush2.bf16.msra.mxu0 %v4391
        %6252 = vmatprep.mubr.bf16.mxu0 %v926
        %6253 = vmatmul.mubr.bf16.gmra.mxu0 %v925
        %v6254 = vpop.f32.mrf.mxu0
        %v6255 = vadd.f32 %v6212, %v6254
        %v6256 = vpop.f32.mrf.mxu0
        %v6257 = vadd.f32 %v6214, %v6256
        %v6258 = vpop.f32.mrf.mxu0
        %v6259 = vadd.f32 %v6216, %v6258
        %v6260 = vpop.f32.mrf.mxu0
        %v6261 = vadd.f32 %v6218, %v6260
        %6262 = vdwg.mxu0
        %6263 = vmatprep.subr.bf16.mxu0 %v4542
        %6264 = vmatpush1.bf16.msra.mxu0 %v4541
        %6265 = vmatprep.subr.bf16.mxu0 %v4532
        %6266 = vmatpush1.bf16.msra.mxu0 %v4531
        %6267 = vmatprep.subr.bf16.mxu0 %v4522
        %6268 = vmatpush1.bf16.msra.mxu0 %v4521
        %6269 = vmatprep.subr.bf16.mxu0 %v4512
        %6270 = vmatpush1.bf16.msra.mxu0 %v4511
        %6271 = vmatprep.subr.bf16.mxu0 %v4502
        %6272 = vmatpush1.bf16.msra.mxu0 %v4501
        %6273 = vmatprep.subr.bf16.mxu0 %v4492
        %6274 = vmatpush1.bf16.msra.mxu0 %v4491
        %6275 = vmatprep.subr.bf16.mxu0 %v4482
        %6276 = vmatpush1.bf16.msra.mxu0 %v4481
        %6277 = vmatprep.subr.bf16.mxu0 %v4472
        %6278 = vmatpush1.bf16.msra.mxu0 %v4471
        %6279 = vmatprep.subr.bf16.mxu0 %v4622
        %6280 = vmatpush2.bf16.msra.mxu0 %v4621
        %6281 = vmatprep.subr.bf16.mxu0 %v4612
        %6282 = vmatpush2.bf16.msra.mxu0 %v4611
        %6283 = vmatprep.subr.bf16.mxu0 %v4602
        %6284 = vmatpush2.bf16.msra.mxu0 %v4601
        %6285 = vmatprep.subr.bf16.mxu0 %v4592
        %6286 = vmatpush2.bf16.msra.mxu0 %v4591
        %6287 = vmatprep.subr.bf16.mxu0 %v4582
        %6288 = vmatpush2.bf16.msra.mxu0 %v4581
        %6289 = vmatprep.subr.bf16.mxu0 %v4572
        %6290 = vmatpush2.bf16.msra.mxu0 %v4571
        %6291 = vmatprep.subr.bf16.mxu0 %v4562
        %6292 = vmatpush2.bf16.msra.mxu0 %v4561
        %6293 = vmatprep.subr.bf16.mxu0 %v4552
        %6294 = vmatpush2.bf16.msra.mxu0 %v4551
        %6295 = vmatprep.mubr.bf16.mxu0 %v928
        %6296 = vmatmul.mubr.bf16.gmra.mxu0 %v927
        %v6297 = vpop.f32.mrf.mxu0
        %v6298 = vadd.f32 %v6255, %v6297
        %v6299 = vpop.f32.mrf.mxu0
        %v6300 = vadd.f32 %v6257, %v6299
        %v6301 = vpop.f32.mrf.mxu0
        %v6302 = vadd.f32 %v6259, %v6301
        %v6303 = vpop.f32.mrf.mxu0
        %v6304 = vadd.f32 %v6261, %v6303
        %6305 = vdwg.mxu0
        %6306 = vmatprep.subr.bf16.mxu0 %v4702
        %6307 = vmatpush1.bf16.msra.mxu0 %v4701
        %6308 = vmatprep.subr.bf16.mxu0 %v4692
        %6309 = vmatpush1.bf16.msra.mxu0 %v4691
        %6310 = vmatprep.subr.bf16.mxu0 %v4682
        %6311 = vmatpush1.bf16.msra.mxu0 %v4681
        %6312 = vmatprep.subr.bf16.mxu0 %v4672
        %6313 = vmatpush1.bf16.msra.mxu0 %v4671
        %6314 = vmatprep.subr.bf16.mxu0 %v4662
        %6315 = vmatpush1.bf16.msra.mxu0 %v4661
        %6316 = vmatprep.subr.bf16.mxu0 %v4652
        %6317 = vmatpush1.bf16.msra.mxu0 %v4651
        %6318 = vmatprep.subr.bf16.mxu0 %v4642
        %6319 = vmatpush1.bf16.msra.mxu0 %v4641
        %6320 = vmatprep.subr.bf16.mxu0 %v4632
        %6321 = vmatpush1.bf16.msra.mxu0 %v4631
        %6322 = vmatprep.subr.bf16.mxu0 0
        %6323 = vmatpush2.bf16.msra.mxu0 0
        %6324 = vmatprep.subr.bf16.mxu0 0
        %6325 = vmatpush2.bf16.msra.mxu0 0
        %6326 = vmatprep.subr.bf16.mxu0 0
        %6327 = vmatpush2.bf16.msra.mxu0 0
        %6328 = vmatprep.subr.bf16.mxu0 0
        %6329 = vmatpush2.bf16.msra.mxu0 0
        %6330 = vmatprep.subr.bf16.mxu0 0
        %6331 = vmatpush2.bf16.msra.mxu0 0
        %6332 = vmatprep.subr.bf16.mxu0 %v4732
        %6333 = vmatpush2.bf16.msra.mxu0 %v4731
        %6334 = vmatprep.subr.bf16.mxu0 %v4722
        %6335 = vmatpush2.bf16.msra.mxu0 %v4721
        %6336 = vmatprep.subr.bf16.mxu0 %v4712
        %6337 = vmatpush2.bf16.msra.mxu0 %v4711
        %6338 = vmatprep.mubr.bf16.mxu0 %v5487
        %6339 = vmatmul.mubr.bf16.gmra.mxu0 %v929
        %v6340 = vpop.f32.mrf.mxu0
        %v6341 = vadd.f32 %v6298, %v6340
        %v6342 = vpop.f32.mrf.mxu0
        %v6343 = vadd.f32 %v6300, %v6342
        %v6344 = vpop.f32.mrf.mxu0
        %v6345 = vadd.f32 %v6302, %v6344
        %v6346 = vpop.f32.mrf.mxu0
        %v6347 = vadd.f32 %v6304, %v6346
        %6348 = vdwg.mxu0
        %6349 = vmatprep.subr.bf16.mxu0 %v4064
        %6350 = vmatpush1.bf16.msra.mxu0 %v4063
        %6351 = vmatprep.subr.bf16.mxu0 %v4054
        %6352 = vmatpush1.bf16.msra.mxu0 %v4053
        %6353 = vmatprep.subr.bf16.mxu0 %v4044
        %6354 = vmatpush1.bf16.msra.mxu0 %v4043
        %6355 = vmatprep.subr.bf16.mxu0 %v4034
        %6356 = vmatpush1.bf16.msra.mxu0 %v4033
        %6357 = vmatprep.subr.bf16.mxu0 %v4024
        %6358 = vmatpush1.bf16.msra.mxu0 %v4023
        %6359 = vmatprep.subr.bf16.mxu0 %v4014
        %6360 = vmatpush1.bf16.msra.mxu0 %v4013
        %6361 = vmatprep.subr.bf16.mxu0 %v4004
        %6362 = vmatpush1.bf16.msra.mxu0 %v4003
        %6363 = vmatprep.subr.bf16.mxu0 %v3994
        %6364 = vmatpush1.bf16.msra.mxu0 %v3993
        %6365 = vmatprep.subr.bf16.mxu0 %v4144
        %6366 = vmatpush2.bf16.msra.mxu0 %v4143
        %6367 = vmatprep.subr.bf16.mxu0 %v4134
        %6368 = vmatpush2.bf16.msra.mxu0 %v4133
        %6369 = vmatprep.subr.bf16.mxu0 %v4124
        %6370 = vmatpush2.bf16.msra.mxu0 %v4123
        %6371 = vmatprep.subr.bf16.mxu0 %v4114
        %6372 = vmatpush2.bf16.msra.mxu0 %v4113
        %6373 = vmatprep.subr.bf16.mxu0 %v4104
        %6374 = vmatpush2.bf16.msra.mxu0 %v4103
        %6375 = vmatprep.subr.bf16.mxu0 %v4094
        %6376 = vmatpush2.bf16.msra.mxu0 %v4093
        %6377 = vmatprep.subr.bf16.mxu0 %v4084
        %6378 = vmatpush2.bf16.msra.mxu0 %v4083
        %6379 = vmatprep.subr.bf16.mxu0 %v4074
        %6380 = vmatpush2.bf16.msra.mxu0 %v4073
        %6381 = vmatprep.mubr.bf16.mxu0 %v922
        %6382 = vmatmul.mubr.bf16.gmra.mxu0 %v921
        %v6383 = vpop.f32.mrf.mxu0
        %v6384 = vadd.f32 %v1720, %v6383
        %v6385 = vpop.f32.mrf.mxu0
        %v6386 = vadd.f32 %v1724, %v6385
        %v6387 = vpop.f32.mrf.mxu0
        %v6388 = vadd.f32 %v1720, %v6387
        %v6389 = vpop.f32.mrf.mxu0
        %v6390 = vadd.f32 %v1724, %v6389
        %6391 = vdwg.mxu0
        %6392 = vmatprep.subr.bf16.mxu0 %v4224
        %6393 = vmatpush1.bf16.msra.mxu0 %v4223
        %6394 = vmatprep.subr.bf16.mxu0 %v4214
        %6395 = vmatpush1.bf16.msra.mxu0 %v4213
        %6396 = vmatprep.subr.bf16.mxu0 %v4204
        %6397 = vmatpush1.bf16.msra.mxu0 %v4203
        %6398 = vmatprep.subr.bf16.mxu0 %v4194
        %6399 = vmatpush1.bf16.msra.mxu0 %v4193
        %6400 = vmatprep.subr.bf16.mxu0 %v4184
        %6401 = vmatpush1.bf16.msra.mxu0 %v4183
        %6402 = vmatprep.subr.bf16.mxu0 %v4174
        %6403 = vmatpush1.bf16.msra.mxu0 %v4173
        %6404 = vmatprep.subr.bf16.mxu0 %v4164
        %6405 = vmatpush1.bf16.msra.mxu0 %v4163
        %6406 = vmatprep.subr.bf16.mxu0 %v4154
        %6407 = vmatpush1.bf16.msra.mxu0 %v4153
        %6408 = vmatprep.subr.bf16.mxu0 %v4304
        %6409 = vmatpush2.bf16.msra.mxu0 %v4303
        %6410 = vmatprep.subr.bf16.mxu0 %v4294
        %6411 = vmatpush2.bf16.msra.mxu0 %v4293
        %6412 = vmatprep.subr.bf16.mxu0 %v4284
        %6413 = vmatpush2.bf16.msra.mxu0 %v4283
        %6414 = vmatprep.subr.bf16.mxu0 %v4274
        %6415 = vmatpush2.bf16.msra.mxu0 %v4273
        %6416 = vmatprep.subr.bf16.mxu0 %v4264
        %6417 = vmatpush2.bf16.msra.mxu0 %v4263
        %6418 = vmatprep.subr.bf16.mxu0 %v4254
        %6419 = vmatpush2.bf16.msra.mxu0 %v4253
        %6420 = vmatprep.subr.bf16.mxu0 %v4244
        %6421 = vmatpush2.bf16.msra.mxu0 %v4243
        %6422 = vmatprep.subr.bf16.mxu0 %v4234
        %6423 = vmatpush2.bf16.msra.mxu0 %v4233
        %6424 = vmatprep.mubr.bf16.mxu0 %v924
        %6425 = vmatmul.mubr.bf16.gmra.mxu0 %v923
        %v6426 = vpop.f32.mrf.mxu0
        %v6427 = vadd.f32 %v6384, %v6426
        %v6428 = vpop.f32.mrf.mxu0
        %v6429 = vadd.f32 %v6386, %v6428
        %v6430 = vpop.f32.mrf.mxu0
        %v6431 = vadd.f32 %v6388, %v6430
        %v6432 = vpop.f32.mrf.mxu0
        %v6433 = vadd.f32 %v6390, %v6432
        %6434 = vdwg.mxu0
        %6435 = vmatprep.subr.bf16.mxu0 %v4384
        %6436 = vmatpush1.bf16.msra.mxu0 %v4383
        %6437 = vmatprep.subr.bf16.mxu0 %v4374
        %6438 = vmatpush1.bf16.msra.mxu0 %v4373
        %6439 = vmatprep.subr.bf16.mxu0 %v4364
        %6440 = vmatpush1.bf16.msra.mxu0 %v4363
        %6441 = vmatprep.subr.bf16.mxu0 %v4354
        %6442 = vmatpush1.bf16.msra.mxu0 %v4353
        %6443 = vmatprep.subr.bf16.mxu0 %v4344
        %6444 = vmatpush1.bf16.msra.mxu0 %v4343
        %6445 = vmatprep.subr.bf16.mxu0 %v4334
        %6446 = vmatpush1.bf16.msra.mxu0 %v4333
        %6447 = vmatprep.subr.bf16.mxu0 %v4324
        %6448 = vmatpush1.bf16.msra.mxu0 %v4323
        %6449 = vmatprep.subr.bf16.mxu0 %v4314
        %6450 = vmatpush1.bf16.msra.mxu0 %v4313
        %6451 = vmatprep.subr.bf16.mxu0 %v4464
        %6452 = vmatpush2.bf16.msra.mxu0 %v4463
        %6453 = vmatprep.subr.bf16.mxu0 %v4454
        %6454 = vmatpush2.bf16.msra.mxu0 %v4453
        %6455 = vmatprep.subr.bf16.mxu0 %v4444
        %6456 = vmatpush2.bf16.msra.mxu0 %v4443
        %6457 = vmatprep.subr.bf16.mxu0 %v4434
        %6458 = vmatpush2.bf16.msra.mxu0 %v4433
        %6459 = vmatprep.subr.bf16.mxu0 %v4424
        %6460 = vmatpush2.bf16.msra.mxu0 %v4423
        %6461 = vmatprep.subr.bf16.mxu0 %v4414
        %6462 = vmatpush2.bf16.msra.mxu0 %v4413
        %6463 = vmatprep.subr.bf16.mxu0 %v4404
        %6464 = vmatpush2.bf16.msra.mxu0 %v4403
        %6465 = vmatprep.subr.bf16.mxu0 %v4394
        %6466 = vmatpush2.bf16.msra.mxu0 %v4393
        %6467 = vmatprep.mubr.bf16.mxu0 %v926
        %6468 = vmatmul.mubr.bf16.gmra.mxu0 %v925
        %v6469 = vpop.f32.mrf.mxu0
        %v6470 = vadd.f32 %v6427, %v6469
        %v6471 = vpop.f32.mrf.mxu0
        %v6472 = vadd.f32 %v6429, %v6471
        %v6473 = vpop.f32.mrf.mxu0
        %v6474 = vadd.f32 %v6431, %v6473
        %v6475 = vpop.f32.mrf.mxu0
        %v6476 = vadd.f32 %v6433, %v6475
        %6477 = vdwg.mxu0
        %6478 = vmatprep.subr.bf16.mxu0 %v4544
        %6479 = vmatpush1.bf16.msra.mxu0 %v4543
        %6480 = vmatprep.subr.bf16.mxu0 %v4534
        %6481 = vmatpush1.bf16.msra.mxu0 %v4533
        %6482 = vmatprep.subr.bf16.mxu0 %v4524
        %6483 = vmatpush1.bf16.msra.mxu0 %v4523
        %6484 = vmatprep.subr.bf16.mxu0 %v4514
        %6485 = vmatpush1.bf16.msra.mxu0 %v4513
        %6486 = vmatprep.subr.bf16.mxu0 %v4504
        %6487 = vmatpush1.bf16.msra.mxu0 %v4503
        %6488 = vmatprep.subr.bf16.mxu0 %v4494
        %6489 = vmatpush1.bf16.msra.mxu0 %v4493
        %6490 = vmatprep.subr.bf16.mxu0 %v4484
        %6491 = vmatpush1.bf16.msra.mxu0 %v4483
        %6492 = vmatprep.subr.bf16.mxu0 %v4474
        %6493 = vmatpush1.bf16.msra.mxu0 %v4473
        %6494 = vmatprep.subr.bf16.mxu0 %v4624
        %6495 = vmatpush2.bf16.msra.mxu0 %v4623
        %6496 = vmatprep.subr.bf16.mxu0 %v4614
        %6497 = vmatpush2.bf16.msra.mxu0 %v4613
        %6498 = vmatprep.subr.bf16.mxu0 %v4604
        %6499 = vmatpush2.bf16.msra.mxu0 %v4603
        %6500 = vmatprep.subr.bf16.mxu0 %v4594
        %6501 = vmatpush2.bf16.msra.mxu0 %v4593
        %6502 = vmatprep.subr.bf16.mxu0 %v4584
        %6503 = vmatpush2.bf16.msra.mxu0 %v4583
        %6504 = vmatprep.subr.bf16.mxu0 %v4574
        %6505 = vmatpush2.bf16.msra.mxu0 %v4573
        %6506 = vmatprep.subr.bf16.mxu0 %v4564
        %6507 = vmatpush2.bf16.msra.mxu0 %v4563
        %6508 = vmatprep.subr.bf16.mxu0 %v4554
        %6509 = vmatpush2.bf16.msra.mxu0 %v4553
        %6510 = vmatprep.mubr.bf16.mxu0 %v928
        %6511 = vmatmul.mubr.bf16.gmra.mxu0 %v927
        %v6512 = vpop.f32.mrf.mxu0
        %v6513 = vadd.f32 %v6470, %v6512
        %v6514 = vpop.f32.mrf.mxu0
        %v6515 = vadd.f32 %v6472, %v6514
        %v6516 = vpop.f32.mrf.mxu0
        %v6517 = vadd.f32 %v6474, %v6516
        %v6518 = vpop.f32.mrf.mxu0
        %v6519 = vadd.f32 %v6476, %v6518
        %6520 = vdwg.mxu0
        %6521 = vmatprep.subr.bf16.mxu0 %v4704
        %6522 = vmatpush1.bf16.msra.mxu0 %v4703
        %6523 = vmatprep.subr.bf16.mxu0 %v4694
        %6524 = vmatpush1.bf16.msra.mxu0 %v4693
        %6525 = vmatprep.subr.bf16.mxu0 %v4684
        %6526 = vmatpush1.bf16.msra.mxu0 %v4683
        %6527 = vmatprep.subr.bf16.mxu0 %v4674
        %6528 = vmatpush1.bf16.msra.mxu0 %v4673
        %6529 = vmatprep.subr.bf16.mxu0 %v4664
        %6530 = vmatpush1.bf16.msra.mxu0 %v4663
        %6531 = vmatprep.subr.bf16.mxu0 %v4654
        %6532 = vmatpush1.bf16.msra.mxu0 %v4653
        %6533 = vmatprep.subr.bf16.mxu0 %v4644
        %6534 = vmatpush1.bf16.msra.mxu0 %v4643
        %6535 = vmatprep.subr.bf16.mxu0 %v4634
        %6536 = vmatpush1.bf16.msra.mxu0 %v4633
        %6537 = vmatprep.subr.bf16.mxu0 0
        %6538 = vmatpush2.bf16.msra.mxu0 0
        %6539 = vmatprep.subr.bf16.mxu0 0
        %6540 = vmatpush2.bf16.msra.mxu0 0
        %6541 = vmatprep.subr.bf16.mxu0 0
        %6542 = vmatpush2.bf16.msra.mxu0 0
        %6543 = vmatprep.subr.bf16.mxu0 0
        %6544 = vmatpush2.bf16.msra.mxu0 0
        %6545 = vmatprep.subr.bf16.mxu0 0
        %6546 = vmatpush2.bf16.msra.mxu0 0
        %6547 = vmatprep.subr.bf16.mxu0 %v4734
        %6548 = vmatpush2.bf16.msra.mxu0 %v4733
        %6549 = vmatprep.subr.bf16.mxu0 %v4724
        %6550 = vmatpush2.bf16.msra.mxu0 %v4723
        %6551 = vmatprep.subr.bf16.mxu0 %v4714
        %6552 = vmatpush2.bf16.msra.mxu0 %v4713
        %6553 = vmatprep.mubr.bf16.mxu0 %v5487
        %6554 = vmatmul.mubr.bf16.gmra.mxu0 %v929
        %v6555 = vpop.f32.mrf.mxu0
        %v6556 = vadd.f32 %v6513, %v6555
        %v6557 = vpop.f32.mrf.mxu0
        %v6558 = vadd.f32 %v6515, %v6557
        %v6559 = vpop.f32.mrf.mxu0
        %v6560 = vadd.f32 %v6517, %v6559
        %v6561 = vpop.f32.mrf.mxu0
        %v6562 = vadd.f32 %v6519, %v6561
        %6563 = vdwg.mxu0
        %v6564 = vxor.u32 %v5696, 2147483648
        %v6565 = vxor.u32 %v5698, 2147483648
        %v6566 = vxor.u32 %v5911, 2147483648
        %v6567 = vxor.u32 %v5913, 2147483648
        %v6568 = vxor.u32 %v6126, 2147483648
        %v6569 = vxor.u32 %v6128, 2147483648
        %v6570 = vxor.u32 %v6341, 2147483648
        %v6571 = vxor.u32 %v6343, 2147483648
        %v6572 = vxor.u32 %v6556, 2147483648
        %v6573 = vxor.u32 %v6558, 2147483648
        %v6574 = vxor.u32 %v5700, 2147483648
        %v6575 = vxor.u32 %v5702, 2147483648
        %v6576 = vxor.u32 %v5915, 2147483648
        %v6577 = vxor.u32 %v5917, 2147483648
        %v6578 = vxor.u32 %v6130, 2147483648
        %v6579 = vxor.u32 %v6132, 2147483648
        %v6580 = vxor.u32 %v6345, 2147483648
        %v6581 = vxor.u32 %v6347, 2147483648
        %v6582 = vxor.u32 %v6560, 2147483648
        %v6583 = vxor.u32 %v6562, 2147483648
        %v6584 = vmul.f32 %v6564, 1.442695
        %v6585 = vpow.pop %v6584
        %v6586 = vmul.f32 %v6565, 1.442695
        %v6587 = vpow.pop %v6586
        %v6588 = vmul.f32 %v6566, 1.442695
        %v6589 = vpow.pop %v6588
        %v6590 = vmul.f32 %v6567, 1.442695
        %v6591 = vpow.pop %v6590
        %v6592 = vmul.f32 %v6568, 1.442695
        %v6593 = vpow.pop %v6592
        %v6594 = vmul.f32 %v6569, 1.442695
        %v6595 = vpow.pop %v6594
        %v6596 = vmul.f32 %v6570, 1.442695
        %v6597 = vpow.pop %v6596
        %v6598 = vmul.f32 %v6571, 1.442695
        %v6599 = vpow.pop %v6598
        %v6600 = vmul.f32 %v6572, 1.442695
        %v6601 = vpow.pop %v6600
        %v6602 = vmul.f32 %v6573, 1.442695
        %v6603 = vpow.pop %v6602
        %v6604 = vmul.f32 %v6574, 1.442695
        %v6605 = vpow.pop %v6604
        %v6606 = vmul.f32 %v6575, 1.442695
        %v6607 = vpow.pop %v6606
        %v6608 = vmul.f32 %v6576, 1.442695
        %v6609 = vpow.pop %v6608
        %v6610 = vmul.f32 %v6577, 1.442695
        %v6611 = vpow.pop %v6610
        %v6612 = vmul.f32 %v6578, 1.442695
        %v6613 = vpow.pop %v6612
        %v6614 = vmul.f32 %v6579, 1.442695
        %v6615 = vpow.pop %v6614
        %v6616 = vmul.f32 %v6580, 1.442695
        %v6617 = vpow.pop %v6616
        %v6618 = vmul.f32 %v6581, 1.442695
        %v6619 = vpow.pop %v6618
        %v6620 = vmul.f32 %v6582, 1.442695
        %v6621 = vpow.pop %v6620
        %v6622 = vmul.f32 %v6583, 1.442695
        %v6623 = vpow.pop %v6622
        %v6624 = vadd.f32 %v6585, 1.0
        %v6625 = vadd.f32 %v6587, 1.0
        %v6626 = vadd.f32 %v6589, 1.0
        %v6627 = vadd.f32 %v6591, 1.0
        %v6628 = vadd.f32 %v6593, 1.0
        %v6629 = vadd.f32 %v6595, 1.0
        %v6630 = vadd.f32 %v6597, 1.0
        %v6631 = vadd.f32 %v6599, 1.0
        %v6632 = vadd.f32 %v6601, 1.0
        %v6633 = vadd.f32 %v6603, 1.0
        %v6634 = vadd.f32 %v6605, 1.0
        %v6635 = vadd.f32 %v6607, 1.0
        %v6636 = vadd.f32 %v6609, 1.0
        %v6637 = vadd.f32 %v6611, 1.0
        %v6638 = vadd.f32 %v6613, 1.0
        %v6639 = vadd.f32 %v6615, 1.0
        %v6640 = vadd.f32 %v6617, 1.0
        %v6641 = vadd.f32 %v6619, 1.0
        %v6642 = vadd.f32 %v6621, 1.0
        %v6643 = vadd.f32 %v6623, 1.0
        %v6644 = vrcp.pop %v6624
        %v6645 = vmul.f32 1.0, %v6644
        %v6646 = vrcp.pop %v6625
        %v6647 = vmul.f32 1.0, %v6646
        %v6648 = vrcp.pop %v6626
        %v6649 = vmul.f32 1.0, %v6648
        %v6650 = vrcp.pop %v6627
        %v6651 = vmul.f32 1.0, %v6650
        %v6652 = vrcp.pop %v6628
        %v6653 = vmul.f32 1.0, %v6652
        %v6654 = vrcp.pop %v6629
        %v6655 = vmul.f32 1.0, %v6654
        %v6656 = vrcp.pop %v6630
        %v6657 = vmul.f32 1.0, %v6656
        %v6658 = vrcp.pop %v6631
        %v6659 = vmul.f32 1.0, %v6658
        %v6660 = vrcp.pop %v6632
        %v6661 = vmul.f32 1.0, %v6660
        %v6662 = vrcp.pop %v6633
        %v6663 = vmul.f32 1.0, %v6662
        %v6664 = vrcp.pop %v6634
        %v6665 = vmul.f32 1.0, %v6664
        %v6666 = vrcp.pop %v6635
        %v6667 = vmul.f32 1.0, %v6666
        %v6668 = vrcp.pop %v6636
        %v6669 = vmul.f32 1.0, %v6668
        %v6670 = vrcp.pop %v6637
        %v6671 = vmul.f32 1.0, %v6670
        %v6672 = vrcp.pop %v6638
        %v6673 = vmul.f32 1.0, %v6672
        %v6674 = vrcp.pop %v6639
        %v6675 = vmul.f32 1.0, %v6674
        %v6676 = vrcp.pop %v6640
        %v6677 = vmul.f32 1.0, %v6676
        %v6678 = vrcp.pop %v6641
        %v6679 = vmul.f32 1.0, %v6678
        %v6680 = vrcp.pop %v6642
        %v6681 = vmul.f32 1.0, %v6680
        %v6682 = vrcp.pop %v6643
        %v6683 = vmul.f32 1.0, %v6682
        %v6684 = vmul.f32 %v5696, %v6645
        %v6685 = vmul.f32 %v5698, %v6647
        %v6686 = vmul.f32 %v5911, %v6649
        %v6687 = vmul.f32 %v5913, %v6651
        %v6688 = vmul.f32 %v6126, %v6653
        %v6689 = vmul.f32 %v6128, %v6655
        %v6690 = vmul.f32 %v6341, %v6657
        %v6691 = vmul.f32 %v6343, %v6659
        %v6692 = vmul.f32 %v6556, %v6661
        %v6693 = vmul.f32 %v6558, %v6663
        %v6694 = vmul.f32 %v5700, %v6665
        %v6695 = vmul.f32 %v5702, %v6667
        %v6696 = vmul.f32 %v5915, %v6669
        %v6697 = vmul.f32 %v5917, %v6671
        %v6698 = vmul.f32 %v6130, %v6673
        %v6699 = vmul.f32 %v6132, %v6675
        %v6700 = vmul.f32 %v6345, %v6677
        %v6701 = vmul.f32 %v6347, %v6679
        %v6702 = vmul.f32 %v6560, %v6681
        %v6703 = vmul.f32 %v6562, %v6683
        %v6704 = vpack.c.bf16 %v6694, %v6684
        %v6705 = vpack.c.bf16 %v6695, %v6685
        %v6706 = vpack.c.bf16 %v6696, %v6686
        %v6707 = vpack.c.bf16 %v6697, %v6687
        %v6708 = vpack.c.bf16 %v6698, %v6688
        %v6709 = vpack.c.bf16 %v6699, %v6689
        %v6710 = vpack.c.bf16 %v6700, %v6690
        %v6711 = vpack.c.bf16 %v6701, %v6691
        %v6712 = vpack.c.bf16 %v6702, %v6692
        %v6713 = vpack.c.bf16 %v6703, %v6693
        %v6714 = vld [vmem:[#allocation11] sm:$0xf]
        %v6715 = vld [vmem:[#allocation11 + $0x4] sm:$0xf]
        %v6716 = vld [vmem:[#allocation11 + $0x8] sm:$0xf]
        %v6717 = vld [vmem:[#allocation11 + $0xc] sm:$0xf]
        %v6718 = vld [vmem:[#allocation11 + $0x10] sm:$0xf]
        %v6719 = vld [vmem:[#allocation11 + $0x14] sm:$0xf]
        %v6720 = vld [vmem:[#allocation11 + $0x18] sm:$0xf]
        %v6721 = vld [vmem:[#allocation11 + $0x1c] sm:$0xf]
        %v6722 = vld [vmem:[#allocation11 + $0x20] sm:$0xf]
        %v6723 = vld [vmem:[#allocation11 + $0x24] sm:$0xf]
        %v6724 = vld [vmem:[#allocation11 + $0x28] sm:$0xf]
        %v6725 = vld [vmem:[#allocation11 + $0x2c] sm:$0xf]
        %v6726 = vld [vmem:[#allocation11 + $0x30] sm:$0xf]
        %v6727 = vld [vmem:[#allocation11 + $0x34] sm:$0xf]
        %v6728 = vld [vmem:[#allocation11 + $0x38] sm:$0xf]
        %v6729 = vld [vmem:[#allocation11 + $0x3c] sm:$0xf]
        %v6730 = vld [vmem:[#allocation11 + $0x40] sm:$0xf]
        %v6731 = vld [vmem:[#allocation11 + $0x44] sm:$0xf]
        %v6732 = vld [vmem:[#allocation11 + $0x48] sm:$0xf]
        %v6733 = vld [vmem:[#allocation11 + $0x4c] sm:$0xf]
        %v6734 = vld [vmem:[#allocation11 + $0x50] sm:$0xf]
        %v6735 = vld [vmem:[#allocation11 + $0x54] sm:$0xf]
        %v6736 = vld [vmem:[#allocation11 + $0x58] sm:$0xf]
        %v6737 = vld [vmem:[#allocation11 + $0x5c] sm:$0xf]
        %v6738 = vld [vmem:[#allocation11 + $0x60] sm:$0xf]
        %v6739 = vld [vmem:[#allocation11 + $0x64] sm:$0xf]
        %v6740 = vld [vmem:[#allocation11 + $0x68] sm:$0xf]
        %v6741 = vld [vmem:[#allocation11 + $0x6c] sm:$0xf]
        %v6742 = vld [vmem:[#allocation11 + $0x70] sm:$0xf]
        %v6743 = vld [vmem:[#allocation11 + $0x74] sm:$0xf]
        %v6744 = vld [vmem:[#allocation11 + $0x78] sm:$0xf]
        %v6745 = vld [vmem:[#allocation11 + $0x7c] sm:$0xf]
        %v6746 = vld [vmem:[#allocation11 + $0x80] sm:$0xf]
        %v6747 = vld [vmem:[#allocation11 + $0x84] sm:$0xf]
        %v6748 = vld [vmem:[#allocation11 + $0x88] sm:$0xf]
        %v6749 = vld [vmem:[#allocation11 + $0x8c] sm:$0xf]
        %v6750 = vld [vmem:[#allocation11 + $0x90] sm:$0xf]
        %v6751 = vld [vmem:[#allocation11 + $0x94] sm:$0xf]
        %v6752 = vld [vmem:[#allocation11 + $0x98] sm:$0xf]
        %v6753 = vld [vmem:[#allocation11 + $0x9c] sm:$0xf]
        %v6754 = vld [vmem:[#allocation11 + $0xa0] sm:$0xf]
        %v6755 = vld [vmem:[#allocation11 + $0xa4] sm:$0xf]
        %v6756 = vld [vmem:[#allocation11 + $0xa8] sm:$0xf]
        %v6757 = vld [vmem:[#allocation11 + $0xac] sm:$0xf]
        %v6758 = vld [vmem:[#allocation11 + $0xb0] sm:$0xf]
        %v6759 = vld [vmem:[#allocation11 + $0xb4] sm:$0xf]
        %v6760 = vld [vmem:[#allocation11 + $0xb8] sm:$0xf]
        %v6761 = vld [vmem:[#allocation11 + $0xbc] sm:$0xf]
        %v6762 = vld [vmem:[#allocation11 + $0xc0] sm:$0xf]
        %v6763 = vld [vmem:[#allocation11 + $0xc4] sm:$0xf]
        %v6764 = vld [vmem:[#allocation11 + $0xc8] sm:$0xf]
        %v6765 = vld [vmem:[#allocation11 + $0xcc] sm:$0xf]
        %v6766 = vld [vmem:[#allocation11 + $0xd0] sm:$0xf]
        %v6767 = vld [vmem:[#allocation11 + $0xd4] sm:$0xf]
        %v6768 = vld [vmem:[#allocation11 + $0xd8] sm:$0xf]
        %v6769 = vld [vmem:[#allocation11 + $0xdc] sm:$0xf]
        %v6770 = vld [vmem:[#allocation11 + $0xe0] sm:$0xf]
        %v6771 = vld [vmem:[#allocation11 + $0xe4] sm:$0xf]
        %v6772 = vld [vmem:[#allocation11 + $0xe8] sm:$0xf]
        %v6773 = vld [vmem:[#allocation11 + $0xec] sm:$0xf]
        %v6774 = vld [vmem:[#allocation11 + $0xf0] sm:$0xf]
        %v6775 = vld [vmem:[#allocation11 + $0xf4] sm:$0xf]
        %v6776 = vld [vmem:[#allocation11 + $0xf8] sm:$0xf]
        %v6777 = vld [vmem:[#allocation11 + $0xfc] sm:$0xf]
        %v6778 = vld [vmem:[#allocation11 + $0x100] sm:$0xf]
        %v6779 = vld [vmem:[#allocation11 + $0x104] sm:$0xf]
        %v6780 = vld [vmem:[#allocation11 + $0x108] sm:$0xf]
        %v6781 = vld [vmem:[#allocation11 + $0x10c] sm:$0xf]
        %v6782 = vld [vmem:[#allocation11 + $0x110] sm:$0xf]
        %v6783 = vld [vmem:[#allocation11 + $0x114] sm:$0xf]
        %v6784 = vld [vmem:[#allocation11 + $0x118] sm:$0xf]
        %v6785 = vld [vmem:[#allocation11 + $0x11c] sm:$0xf]
        %v6786 = vld [vmem:[#allocation11 + $0x120] sm:$0xf]
        %v6787 = vld [vmem:[#allocation11 + $0x124] sm:$0xf]
        %v6788 = vld [vmem:[#allocation11 + $0x128] sm:$0xf]
        %v6789 = vld [vmem:[#allocation11 + $0x12c] sm:$0xf]
        %v6790 = vld [vmem:[#allocation11 + $0x130] sm:$0xf]
        %v6791 = vld [vmem:[#allocation11 + $0x134] sm:$0xf]
        %v6792 = vld [vmem:[#allocation11 + $0x138] sm:$0xf]
        %v6793 = vld [vmem:[#allocation11 + $0x13c] sm:$0xf]
        %v6794 = vld [vmem:[#allocation11 + $0x140] sm:$0xf]
        %v6795 = vld [vmem:[#allocation11 + $0x144] sm:$0xf]
        %v6796 = vld [vmem:[#allocation11 + $0x148] sm:$0xf]
        %v6797 = vld [vmem:[#allocation11 + $0x14c] sm:$0xf]
        %v6798 = vld [vmem:[#allocation11 + $0x150] sm:$0xf]
        %v6799 = vld [vmem:[#allocation11 + $0x154] sm:$0xf]
        %v6800 = vld [vmem:[#allocation11 + $0x158] sm:$0xf]
        %v6801 = vld [vmem:[#allocation11 + $0x15c] sm:$0xf]
        %v6802 = vld [vmem:[#allocation11 + $0x160] sm:$0xf]
        %v6803 = vld [vmem:[#allocation11 + $0x164] sm:$0xf]
        %v6804 = vld [vmem:[#allocation11 + $0x168] sm:$0xf]
        %v6805 = vld [vmem:[#allocation11 + $0x16c] sm:$0xf]
        %v6806 = vld [vmem:[#allocation11 + $0x170] sm:$0xf]
        %v6807 = vld [vmem:[#allocation11 + $0x174] sm:$0xf]
        %v6808 = vld [vmem:[#allocation11 + $0x178] sm:$0xf]
        %v6809 = vld [vmem:[#allocation11 + $0x17c] sm:$0xf]
        %v6810 = vld [vmem:[#allocation11 + $0x180] sm:$0xf]
        %v6811 = vld [vmem:[#allocation11 + $0x184] sm:$0xf]
        %v6812 = vld [vmem:[#allocation11 + $0x188] sm:$0xf]
        %v6813 = vld [vmem:[#allocation11 + $0x18c] sm:$0xf]
        %v6814 = vld [vmem:[#allocation11 + $0x190] sm:$0xf]
        %v6815 = vld [vmem:[#allocation11 + $0x194] sm:$0xf]
        %v6816 = vld [vmem:[#allocation11 + $0x198] sm:$0xf]
        %v6817 = vld [vmem:[#allocation11 + $0x19c] sm:$0xf]
        %v6818 = vld [vmem:[#allocation11 + $0x1a0] sm:$0xf]
        %v6819 = vld [vmem:[#allocation11 + $0x1a4] sm:$0xf]
        %v6820 = vld [vmem:[#allocation11 + $0x1a8] sm:$0xf]
        %v6821 = vld [vmem:[#allocation11 + $0x1ac] sm:$0xf]
        %v6822 = vld [vmem:[#allocation11 + $0x1b0] sm:$0xf]
        %v6823 = vld [vmem:[#allocation11 + $0x1b4] sm:$0xf]
        %v6824 = vld [vmem:[#allocation11 + $0x1b8] sm:$0xf]
        %v6825 = vld [vmem:[#allocation11 + $0x1bc] sm:$0xf]
        %v6826 = vld [vmem:[#allocation11 + $0x1c0] sm:$0xf]
        %v6827 = vld [vmem:[#allocation11 + $0x1c4] sm:$0xf]
        %v6828 = vld [vmem:[#allocation11 + $0x1c8] sm:$0xf]
        %v6829 = vld [vmem:[#allocation11 + $0x1cc] sm:$0xf]
        %v6830 = vld [vmem:[#allocation11 + $0x1d0] sm:$0xf]
        %v6831 = vld [vmem:[#allocation11 + $0x1d4] sm:$0xf]
        %v6832 = vld [vmem:[#allocation11 + $0x1d8] sm:$0xf]
        %v6833 = vld [vmem:[#allocation11 + $0x1dc] sm:$0xf]
        %v6834 = vld [vmem:[#allocation11 + $0x1e0] sm:$0xf]
        %v6835 = vld [vmem:[#allocation11 + $0x1e4] sm:$0xf]
        %v6836 = vld [vmem:[#allocation11 + $0x1e8] sm:$0xf]
        %v6837 = vld [vmem:[#allocation11 + $0x1ec] sm:$0xf]
        %v6838 = vld [vmem:[#allocation11 + $0x1f0] sm:$0xf]
        %v6839 = vld [vmem:[#allocation11 + $0x1f4] sm:$0xf]
        %v6840 = vld [vmem:[#allocation11 + $0x1f8] sm:$0xf]
        %v6841 = vld [vmem:[#allocation11 + $0x1fc] sm:$0xf]
        %v6842 = vld [vmem:[#allocation11 + $0x200] sm:$0xf]
        %v6843 = vld [vmem:[#allocation11 + $0x204] sm:$0xf]
        %v6844 = vld [vmem:[#allocation11 + $0x208] sm:$0xf]
        %v6845 = vld [vmem:[#allocation11 + $0x20c] sm:$0xf]
        %v6846 = vld [vmem:[#allocation11 + $0x210] sm:$0xf]
        %v6847 = vld [vmem:[#allocation11 + $0x214] sm:$0xf]
        %v6848 = vld [vmem:[#allocation11 + $0x218] sm:$0xf]
        %v6849 = vld [vmem:[#allocation11 + $0x21c] sm:$0xf]
        %v6850 = vld [vmem:[#allocation11 + $0x220] sm:$0xf]
        %v6851 = vld [vmem:[#allocation11 + $0x224] sm:$0xf]
        %v6852 = vld [vmem:[#allocation11 + $0x228] sm:$0xf]
        %v6853 = vld [vmem:[#allocation11 + $0x22c] sm:$0xf]
        %v6854 = vld [vmem:[#allocation11 + $0x230] sm:$0xf]
        %v6855 = vld [vmem:[#allocation11 + $0x234] sm:$0xf]
        %v6856 = vld [vmem:[#allocation11 + $0x238] sm:$0xf]
        %v6857 = vld [vmem:[#allocation11 + $0x23c] sm:$0xf]
        %v6858 = vld [vmem:[#allocation11 + $0x240] sm:$0xf]
        %v6859 = vld [vmem:[#allocation11 + $0x244] sm:$0xf]
        %v6860 = vld [vmem:[#allocation11 + $0x248] sm:$0xf]
        %v6861 = vld [vmem:[#allocation11 + $0x24c] sm:$0xf]
        %v6862 = vld [vmem:[#allocation11 + $0x250] sm:$0xf]
        %v6863 = vld [vmem:[#allocation11 + $0x254] sm:$0xf]
        %v6864 = vld [vmem:[#allocation13] sm:$0x1]
        %v6866 = vlaneseq
        %v6867 = vshrl.u32 %v6866, 7
        %v6868 = vsub.s32 0, %v6867
        %v6869 = vrot.slane %v6864, %v6868
        %v7021 = vunpack.c.l.b16 %v6714
        %v7022 = vunpack.c.l.b16 %v6715
        %v7023 = vunpack.c.l.b16 %v6716
        %v7024 = vunpack.c.l.b16 %v6717
        %v7025 = vunpack.c.l.b16 %v6718
        %v7026 = vunpack.c.l.b16 %v6719
        %v7027 = vunpack.c.l.b16 %v6720
        %v7028 = vunpack.c.l.b16 %v6721
        %v7029 = vunpack.c.l.b16 %v6722
        %v7030 = vunpack.c.l.b16 %v6723
        %v7031 = vunpack.c.l.b16 %v6724
        %v7032 = vunpack.c.l.b16 %v6725
        %v7033 = vunpack.c.l.b16 %v6726
        %v7034 = vunpack.c.l.b16 %v6727
        %v7035 = vunpack.c.l.b16 %v6728
        %v7036 = vunpack.c.l.b16 %v6729
        %v7037 = vunpack.c.l.b16 %v6730
        %v7038 = vunpack.c.l.b16 %v6731
        %v7039 = vunpack.c.l.b16 %v6732
        %v7040 = vunpack.c.l.b16 %v6733
        %v7041 = vunpack.c.l.b16 %v6734
        %v7042 = vunpack.c.l.b16 %v6735
        %v7043 = vunpack.c.l.b16 %v6736
        %v7044 = vunpack.c.l.b16 %v6737
        %v7045 = vunpack.c.l.b16 %v6738
        %v7046 = vunpack.c.l.b16 %v6739
        %v7047 = vunpack.c.l.b16 %v6740
        %v7048 = vunpack.c.l.b16 %v6741
        %v7049 = vunpack.c.l.b16 %v6742
        %v7050 = vunpack.c.l.b16 %v6743
        %v7051 = vunpack.c.l.b16 %v6744
        %v7052 = vunpack.c.l.b16 %v6745
        %v7053 = vunpack.c.l.b16 %v6746
        %v7054 = vunpack.c.l.b16 %v6747
        %v7055 = vunpack.c.l.b16 %v6748
        %v7056 = vunpack.c.l.b16 %v6749
        %v7057 = vunpack.c.l.b16 %v6750
        %v7058 = vunpack.c.l.b16 %v6751
        %v7059 = vunpack.c.l.b16 %v6752
        %v7060 = vunpack.c.l.b16 %v6753
        %v7061 = vunpack.c.l.b16 %v6754
        %v7062 = vunpack.c.l.b16 %v6755
        %v7063 = vunpack.c.l.b16 %v6756
        %v7064 = vunpack.c.l.b16 %v6757
        %v7065 = vunpack.c.l.b16 %v6758
        %v7066 = vunpack.c.l.b16 %v6759
        %v7067 = vunpack.c.l.b16 %v6760
        %v7068 = vunpack.c.l.b16 %v6761
        %v7069 = vunpack.c.l.b16 %v6762
        %v7070 = vunpack.c.l.b16 %v6763
        %v7071 = vunpack.c.l.b16 %v6764
        %v7072 = vunpack.c.l.b16 %v6765
        %v7073 = vunpack.c.l.b16 %v6766
        %v7074 = vunpack.c.l.b16 %v6767
        %v7075 = vunpack.c.l.b16 %v6768
        %v7076 = vunpack.c.l.b16 %v6769
        %v7077 = vunpack.c.l.b16 %v6770
        %v7078 = vunpack.c.l.b16 %v6771
        %v7079 = vunpack.c.l.b16 %v6772
        %v7080 = vunpack.c.l.b16 %v6773
        %v7081 = vunpack.c.l.b16 %v6774
        %v7082 = vunpack.c.l.b16 %v6775
        %v7083 = vunpack.c.l.b16 %v6776
        %v7084 = vunpack.c.l.b16 %v6777
        %v7085 = vunpack.c.l.b16 %v6778
        %v7086 = vunpack.c.l.b16 %v6779
        %v7087 = vunpack.c.l.b16 %v6780
        %v7088 = vunpack.c.l.b16 %v6781
        %v7089 = vunpack.c.l.b16 %v6782
        %v7090 = vunpack.c.l.b16 %v6783
        %v7091 = vunpack.c.l.b16 %v6784
        %v7092 = vunpack.c.l.b16 %v6785
        %v7093 = vunpack.c.l.b16 %v6786
        %v7094 = vunpack.c.l.b16 %v6787
        %v7095 = vunpack.c.l.b16 %v6788
        %v7096 = vunpack.c.l.b16 %v6789
        %v7097 = vunpack.c.l.b16 %v6790
        %v7098 = vunpack.c.l.b16 %v6791
        %v7099 = vunpack.c.l.b16 %v6792
        %v7100 = vunpack.c.l.b16 %v6793
        %v7101 = vunpack.c.l.b16 %v6794
        %v7102 = vunpack.c.l.b16 %v6795
        %v7103 = vunpack.c.l.b16 %v6796
        %v7104 = vunpack.c.l.b16 %v6797
        %v7105 = vunpack.c.l.b16 %v6798
        %v7106 = vunpack.c.l.b16 %v6799
        %v7107 = vunpack.c.l.b16 %v6800
        %v7108 = vunpack.c.l.b16 %v6801
        %v7109 = vunpack.c.l.b16 %v6802
        %v7110 = vunpack.c.l.b16 %v6803
        %v7111 = vunpack.c.l.b16 %v6804
        %v7112 = vunpack.c.l.b16 %v6805
        %v7113 = vunpack.c.l.b16 %v6806
        %v7114 = vunpack.c.l.b16 %v6807
        %v7115 = vunpack.c.l.b16 %v6808
        %v7116 = vunpack.c.l.b16 %v6809
        %v7117 = vunpack.c.l.b16 %v6810
        %v7118 = vunpack.c.l.b16 %v6811
        %v7119 = vunpack.c.l.b16 %v6812
        %v7120 = vunpack.c.l.b16 %v6813
        %v7121 = vunpack.c.l.b16 %v6814
        %v7122 = vunpack.c.l.b16 %v6815
        %v7123 = vunpack.c.l.b16 %v6816
        %v7124 = vunpack.c.l.b16 %v6817
        %v7125 = vunpack.c.l.b16 %v6818
        %v7126 = vunpack.c.l.b16 %v6819
        %v7127 = vunpack.c.l.b16 %v6820
        %v7128 = vunpack.c.l.b16 %v6821
        %v7129 = vunpack.c.l.b16 %v6822
        %v7130 = vunpack.c.l.b16 %v6823
        %v7131 = vunpack.c.l.b16 %v6824
        %v7132 = vunpack.c.l.b16 %v6825
        %v7133 = vunpack.c.l.b16 %v6826
        %v7134 = vunpack.c.l.b16 %v6827
        %v7135 = vunpack.c.l.b16 %v6828
        %v7136 = vunpack.c.l.b16 %v6829
        %v7137 = vunpack.c.l.b16 %v6830
        %v7138 = vunpack.c.l.b16 %v6831
        %v7139 = vunpack.c.l.b16 %v6832
        %v7140 = vunpack.c.l.b16 %v6833
        %v7141 = vunpack.c.l.b16 %v6834
        %v7142 = vunpack.c.l.b16 %v6835
        %v7143 = vunpack.c.l.b16 %v6836
        %v7144 = vunpack.c.l.b16 %v6837
        %v7145 = vunpack.c.l.b16 %v6838
        %v7146 = vunpack.c.l.b16 %v6839
        %v7147 = vunpack.c.l.b16 %v6840
        %v7148 = vunpack.c.l.b16 %v6841
        %v7149 = vunpack.c.l.b16 %v6842
        %v7150 = vunpack.c.l.b16 %v6843
        %v7151 = vunpack.c.l.b16 %v6844
        %v7152 = vunpack.c.l.b16 %v6845
        %v7153 = vunpack.c.l.b16 %v6846
        %v7154 = vunpack.c.l.b16 %v6847
        %v7155 = vunpack.c.l.b16 %v6848
        %v7156 = vunpack.c.l.b16 %v6849
        %v7157 = vunpack.c.l.b16 %v6850
        %v7158 = vunpack.c.l.b16 %v6851
        %v7159 = vunpack.c.l.b16 %v6852
        %v7160 = vunpack.c.l.b16 %v6853
        %v7161 = vunpack.c.l.b16 %v6854
        %v7162 = vunpack.c.l.b16 %v6855
        %v7163 = vunpack.c.l.b16 %v6856
        %v7164 = vunpack.c.l.b16 %v6857
        %v7165 = vunpack.c.l.b16 %v6858
        %v7166 = vunpack.c.l.b16 %v6859
        %v7167 = vunpack.c.l.b16 %v6860
        %v7168 = vunpack.c.l.b16 %v6861
        %v7169 = vunpack.c.l.b16 %v6862
        %v7170 = vunpack.c.l.b16 %v6863
        %v7171 = vpack.c.b16 %v7022, %v7021
        %v7172 = vpack.c.b16 %v7024, %v7023
        %v7173 = vpack.c.b16 %v7026, %v7025
        %v7174 = vpack.c.b16 %v7028, %v7027
        %v7175 = vpack.c.b16 %v7030, %v7029
        %v7176 = vpack.c.b16 %v7032, %v7031
        %v7177 = vpack.c.b16 %v7034, %v7033
        %v7178 = vpack.c.b16 %v7036, %v7035
        %v7179 = vpack.c.b16 %v7038, %v7037
        %v7180 = vpack.c.b16 %v7040, %v7039
        %v7181 = vpack.c.b16 %v7042, %v7041
        %v7182 = vpack.c.b16 %v7044, %v7043
        %v7183 = vpack.c.b16 %v7046, %v7045
        %v7184 = vpack.c.b16 %v7048, %v7047
        %v7185 = vpack.c.b16 %v7050, %v7049
        %v7186 = vpack.c.b16 %v7052, %v7051
        %v7187 = vpack.c.b16 %v7054, %v7053
        %v7188 = vpack.c.b16 %v7056, %v7055
        %v7189 = vpack.c.b16 %v7058, %v7057
        %v7190 = vpack.c.b16 %v7060, %v7059
        %v7191 = vpack.c.b16 %v7062, %v7061
        %v7192 = vpack.c.b16 %v7064, %v7063
        %v7193 = vpack.c.b16 %v7066, %v7065
        %v7194 = vpack.c.b16 %v7068, %v7067
        %v7195 = vpack.c.b16 %v7070, %v7069
        %v7196 = vpack.c.b16 %v7072, %v7071
        %v7197 = vpack.c.b16 %v7074, %v7073
        %v7198 = vpack.c.b16 %v7076, %v7075
        %v7199 = vpack.c.b16 %v7078, %v7077
        %v7200 = vpack.c.b16 %v7080, %v7079
        %v7201 = vpack.c.b16 %v7082, %v7081
        %v7202 = vpack.c.b16 %v7084, %v7083
        %v7203 = vpack.c.b16 %v7086, %v7085
        %v7204 = vpack.c.b16 %v7088, %v7087
        %v7205 = vpack.c.b16 %v7090, %v7089
        %v7206 = vpack.c.b16 %v7092, %v7091
        %v7207 = vpack.c.b16 %v7094, %v7093
        %v7208 = vpack.c.b16 %v7096, %v7095
        %v7209 = vpack.c.b16 %v7098, %v7097
        %v7210 = vpack.c.b16 %v7100, %v7099
        %v7211 = vpack.c.b16 %v7102, %v7101
        %v7212 = vpack.c.b16 %v7104, %v7103
        %v7213 = vpack.c.b16 %v7106, %v7105
        %v7214 = vpack.c.b16 %v7108, %v7107
        %v7215 = vpack.c.b16 %v7110, %v7109
        %v7216 = vpack.c.b16 %v7112, %v7111
        %v7217 = vpack.c.b16 %v7114, %v7113
        %v7218 = vpack.c.b16 %v7116, %v7115
        %v7219 = vpack.c.b16 %v7118, %v7117
        %v7220 = vpack.c.b16 %v7120, %v7119
        %v7221 = vpack.c.b16 %v7122, %v7121
        %v7222 = vpack.c.b16 %v7124, %v7123
        %v7223 = vpack.c.b16 %v7126, %v7125
        %v7224 = vpack.c.b16 %v7128, %v7127
        %v7225 = vpack.c.b16 %v7130, %v7129
        %v7226 = vpack.c.b16 %v7132, %v7131
        %v7227 = vpack.c.b16 %v7134, %v7133
        %v7228 = vpack.c.b16 %v7136, %v7135
        %v7229 = vpack.c.b16 %v7138, %v7137
        %v7230 = vpack.c.b16 %v7140, %v7139
        %v7231 = vpack.c.b16 %v7142, %v7141
        %v7232 = vpack.c.b16 %v7144, %v7143
        %v7233 = vpack.c.b16 %v7146, %v7145
        %v7234 = vpack.c.b16 %v7148, %v7147
        %v7235 = vpack.c.b16 %v7150, %v7149
        %v7236 = vpack.c.b16 %v7152, %v7151
        %v7237 = vpack.c.b16 %v7154, %v7153
        %v7238 = vpack.c.b16 %v7156, %v7155
        %v7239 = vpack.c.b16 %v7158, %v7157
        %v7240 = vpack.c.b16 %v7160, %v7159
        %v7241 = vpack.c.b16 %v7162, %v7161
        %v7242 = vpack.c.b16 %v7164, %v7163
        %v7243 = vpack.c.b16 %v7166, %v7165
        %v7244 = vpack.c.b16 %v7168, %v7167
        %v7245 = vpack.c.b16 %v7170, %v7169
        %v7322 = vsel %vm5485, %v6713, 0
        %7324 = vmatprep.subr.bf16.mxu0 0
        %7325 = vmatpush1.bf16.msra.mxu0 %v7178
        %7326 = vmatprep.subr.bf16.mxu0 0
        %7327 = vmatpush1.bf16.msra.mxu0 %v7177
        %7328 = vmatprep.subr.bf16.mxu0 0
        %7329 = vmatpush1.bf16.msra.mxu0 %v7176
        %7330 = vmatprep.subr.bf16.mxu0 0
        %7331 = vmatpush1.bf16.msra.mxu0 %v7175
        %7332 = vmatprep.subr.bf16.mxu0 0
        %7333 = vmatpush1.bf16.msra.mxu0 %v7174
        %7334 = vmatprep.subr.bf16.mxu0 0
        %7335 = vmatpush1.bf16.msra.mxu0 %v7173
        %7336 = vmatprep.subr.bf16.mxu0 0
        %7337 = vmatpush1.bf16.msra.mxu0 %v7172
        %7338 = vmatprep.subr.bf16.mxu0 0
        %7339 = vmatpush1.bf16.msra.mxu0 %v7171
        %7340 = vmatprep.subr.bf16.mxu0 0
        %7341 = vmatpush2.bf16.msra.mxu0 %v7186
        %7342 = vmatprep.subr.bf16.mxu0 0
        %7343 = vmatpush2.bf16.msra.mxu0 %v7185
        %7344 = vmatprep.subr.bf16.mxu0 0
        %7345 = vmatpush2.bf16.msra.mxu0 %v7184
        %7346 = vmatprep.subr.bf16.mxu0 0
        %7347 = vmatpush2.bf16.msra.mxu0 %v7183
        %7348 = vmatprep.subr.bf16.mxu0 0
        %7349 = vmatpush2.bf16.msra.mxu0 %v7182
        %7350 = vmatprep.subr.bf16.mxu0 0
        %7351 = vmatpush2.bf16.msra.mxu0 %v7181
        %7352 = vmatprep.subr.bf16.mxu0 0
        %7353 = vmatpush2.bf16.msra.mxu0 %v7180
        %7354 = vmatprep.subr.bf16.mxu0 0
        %7355 = vmatpush2.bf16.msra.mxu0 %v7179
        %7356 = vmatprep.mubr.bf16.mxu0 %v6705
        %7357 = vmatmul.mubr.bf16.gmra.mxu0 %v6704
        %v7358 = vpop.f32.mrf.mxu0
        %v7359 = vadd.f32 %v6869, %v7358
        %v7360 = vpop.f32.mrf.mxu0
        %v7361 = vpop.f32.mrf.mxu0
        %v7362 = vadd.f32 %v6869, %v7361
        %v7363 = vpop.f32.mrf.mxu0
        %7364 = vdwg.mxu0
        %7365 = vmatprep.subr.bf16.mxu0 0
        %7366 = vmatpush1.bf16.msra.mxu0 %v7194
        %7367 = vmatprep.subr.bf16.mxu0 0
        %7368 = vmatpush1.bf16.msra.mxu0 %v7193
        %7369 = vmatprep.subr.bf16.mxu0 0
        %7370 = vmatpush1.bf16.msra.mxu0 %v7192
        %7371 = vmatprep.subr.bf16.mxu0 0
        %7372 = vmatpush1.bf16.msra.mxu0 %v7191
        %7373 = vmatprep.subr.bf16.mxu0 0
        %7374 = vmatpush1.bf16.msra.mxu0 %v7190
        %7375 = vmatprep.subr.bf16.mxu0 0
        %7376 = vmatpush1.bf16.msra.mxu0 %v7189
        %7377 = vmatprep.subr.bf16.mxu0 0
        %7378 = vmatpush1.bf16.msra.mxu0 %v7188
        %7379 = vmatprep.subr.bf16.mxu0 0
        %7380 = vmatpush1.bf16.msra.mxu0 %v7187
        %7381 = vmatprep.subr.bf16.mxu0 0
        %7382 = vmatpush2.bf16.msra.mxu0 %v7202
        %7383 = vmatprep.subr.bf16.mxu0 0
        %7384 = vmatpush2.bf16.msra.mxu0 %v7201
        %7385 = vmatprep.subr.bf16.mxu0 0
        %7386 = vmatpush2.bf16.msra.mxu0 %v7200
        %7387 = vmatprep.subr.bf16.mxu0 0
        %7388 = vmatpush2.bf16.msra.mxu0 %v7199
        %7389 = vmatprep.subr.bf16.mxu0 0
        %7390 = vmatpush2.bf16.msra.mxu0 %v7198
        %7391 = vmatprep.subr.bf16.mxu0 0
        %7392 = vmatpush2.bf16.msra.mxu0 %v7197
        %7393 = vmatprep.subr.bf16.mxu0 0
        %7394 = vmatpush2.bf16.msra.mxu0 %v7196
        %7395 = vmatprep.subr.bf16.mxu0 0
        %7396 = vmatpush2.bf16.msra.mxu0 %v7195
        %7397 = vmatprep.mubr.bf16.mxu0 %v6707
        %7398 = vmatmul.mubr.bf16.gmra.mxu0 %v6706
        %v7399 = vpop.f32.mrf.mxu0
        %v7400 = vadd.f32 %v7359, %v7399
        %v7401 = vpop.f32.mrf.mxu0
        %v7402 = vpop.f32.mrf.mxu0
        %v7403 = vadd.f32 %v7362, %v7402
        %v7404 = vpop.f32.mrf.mxu0
        %7405 = vdwg.mxu0
        %7406 = vmatprep.subr.bf16.mxu0 0
        %7407 = vmatpush1.bf16.msra.mxu0 %v7210
        %7408 = vmatprep.subr.bf16.mxu0 0
        %7409 = vmatpush1.bf16.msra.mxu0 %v7209
        %7410 = vmatprep.subr.bf16.mxu0 0
        %7411 = vmatpush1.bf16.msra.mxu0 %v7208
        %7412 = vmatprep.subr.bf16.mxu0 0
        %7413 = vmatpush1.bf16.msra.mxu0 %v7207
        %7414 = vmatprep.subr.bf16.mxu0 0
        %7415 = vmatpush1.bf16.msra.mxu0 %v7206
        %7416 = vmatprep.subr.bf16.mxu0 0
        %7417 = vmatpush1.bf16.msra.mxu0 %v7205
        %7418 = vmatprep.subr.bf16.mxu0 0
        %7419 = vmatpush1.bf16.msra.mxu0 %v7204
        %7420 = vmatprep.subr.bf16.mxu0 0
        %7421 = vmatpush1.bf16.msra.mxu0 %v7203
        %7422 = vmatprep.subr.bf16.mxu0 0
        %7423 = vmatpush2.bf16.msra.mxu0 %v7218
        %7424 = vmatprep.subr.bf16.mxu0 0
        %7425 = vmatpush2.bf16.msra.mxu0 %v7217
        %7426 = vmatprep.subr.bf16.mxu0 0
        %7427 = vmatpush2.bf16.msra.mxu0 %v7216
        %7428 = vmatprep.subr.bf16.mxu0 0
        %7429 = vmatpush2.bf16.msra.mxu0 %v7215
        %7430 = vmatprep.subr.bf16.mxu0 0
        %7431 = vmatpush2.bf16.msra.mxu0 %v7214
        %7432 = vmatprep.subr.bf16.mxu0 0
        %7433 = vmatpush2.bf16.msra.mxu0 %v7213
        %7434 = vmatprep.subr.bf16.mxu0 0
        %7435 = vmatpush2.bf16.msra.mxu0 %v7212
        %7436 = vmatprep.subr.bf16.mxu0 0
        %7437 = vmatpush2.bf16.msra.mxu0 %v7211
        %7438 = vmatprep.mubr.bf16.mxu0 %v6709
        %7439 = vmatmul.mubr.bf16.gmra.mxu0 %v6708
        %v7440 = vpop.f32.mrf.mxu0
        %v7441 = vadd.f32 %v7400, %v7440
        %v7442 = vpop.f32.mrf.mxu0
        %v7443 = vpop.f32.mrf.mxu0
        %v7444 = vadd.f32 %v7403, %v7443
        %v7445 = vpop.f32.mrf.mxu0
        %7446 = vdwg.mxu0
        %7447 = vmatprep.subr.bf16.mxu0 0
        %7448 = vmatpush1.bf16.msra.mxu0 %v7226
        %7449 = vmatprep.subr.bf16.mxu0 0
        %7450 = vmatpush1.bf16.msra.mxu0 %v7225
        %7451 = vmatprep.subr.bf16.mxu0 0
        %7452 = vmatpush1.bf16.msra.mxu0 %v7224
        %7453 = vmatprep.subr.bf16.mxu0 0
        %7454 = vmatpush1.bf16.msra.mxu0 %v7223
        %7455 = vmatprep.subr.bf16.mxu0 0
        %7456 = vmatpush1.bf16.msra.mxu0 %v7222
        %7457 = vmatprep.subr.bf16.mxu0 0
        %7458 = vmatpush1.bf16.msra.mxu0 %v7221
        %7459 = vmatprep.subr.bf16.mxu0 0
        %7460 = vmatpush1.bf16.msra.mxu0 %v7220
        %7461 = vmatprep.subr.bf16.mxu0 0
        %7462 = vmatpush1.bf16.msra.mxu0 %v7219
        %7463 = vmatprep.subr.bf16.mxu0 0
        %7464 = vmatpush2.bf16.msra.mxu0 %v7234
        %7465 = vmatprep.subr.bf16.mxu0 0
        %7466 = vmatpush2.bf16.msra.mxu0 %v7233
        %7467 = vmatprep.subr.bf16.mxu0 0
        %7468 = vmatpush2.bf16.msra.mxu0 %v7232
        %7469 = vmatprep.subr.bf16.mxu0 0
        %7470 = vmatpush2.bf16.msra.mxu0 %v7231
        %7471 = vmatprep.subr.bf16.mxu0 0
        %7472 = vmatpush2.bf16.msra.mxu0 %v7230
        %7473 = vmatprep.subr.bf16.mxu0 0
        %7474 = vmatpush2.bf16.msra.mxu0 %v7229
        %7475 = vmatprep.subr.bf16.mxu0 0
        %7476 = vmatpush2.bf16.msra.mxu0 %v7228
        %7477 = vmatprep.subr.bf16.mxu0 0
        %7478 = vmatpush2.bf16.msra.mxu0 %v7227
        %7479 = vmatprep.mubr.bf16.mxu0 %v6711
        %7480 = vmatmul.mubr.bf16.gmra.mxu0 %v6710
        %v7481 = vpop.f32.mrf.mxu0
        %v7482 = vadd.f32 %v7441, %v7481
        %v7483 = vpop.f32.mrf.mxu0
        %v7484 = vpop.f32.mrf.mxu0
        %v7485 = vadd.f32 %v7444, %v7484
        %v7486 = vpop.f32.mrf.mxu0
        %7487 = vdwg.mxu0
        %7488 = vmatprep.subr.bf16.mxu0 0
        %7489 = vmatpush1.bf16.msra.mxu0 %v7242
        %7490 = vmatprep.subr.bf16.mxu0 0
        %7491 = vmatpush1.bf16.msra.mxu0 %v7241
        %7492 = vmatprep.subr.bf16.mxu0 0
        %7493 = vmatpush1.bf16.msra.mxu0 %v7240
        %7494 = vmatprep.subr.bf16.mxu0 0
        %7495 = vmatpush1.bf16.msra.mxu0 %v7239
        %7496 = vmatprep.subr.bf16.mxu0 0
        %7497 = vmatpush1.bf16.msra.mxu0 %v7238
        %7498 = vmatprep.subr.bf16.mxu0 0
        %7499 = vmatpush1.bf16.msra.mxu0 %v7237
        %7500 = vmatprep.subr.bf16.mxu0 0
        %7501 = vmatpush1.bf16.msra.mxu0 %v7236
        %7502 = vmatprep.subr.bf16.mxu0 0
        %7503 = vmatpush1.bf16.msra.mxu0 %v7235
        %7504 = vmatprep.subr.bf16.mxu0 0
        %7505 = vmatpush2.bf16.msra.mxu0 0
        %7506 = vmatprep.subr.bf16.mxu0 0
        %7507 = vmatpush2.bf16.msra.mxu0 0
        %7508 = vmatprep.subr.bf16.mxu0 0
        %7509 = vmatpush2.bf16.msra.mxu0 0
        %7510 = vmatprep.subr.bf16.mxu0 0
        %7511 = vmatpush2.bf16.msra.mxu0 0
        %7512 = vmatprep.subr.bf16.mxu0 0
        %7513 = vmatpush2.bf16.msra.mxu0 0
        %7514 = vmatprep.subr.bf16.mxu0 0
        %7515 = vmatpush2.bf16.msra.mxu0 %v7245
        %7516 = vmatprep.subr.bf16.mxu0 0
        %7517 = vmatpush2.bf16.msra.mxu0 %v7244
        %7518 = vmatprep.subr.bf16.mxu0 0
        %7519 = vmatpush2.bf16.msra.mxu0 %v7243
        %7520 = vmatprep.mubr.bf16.mxu0 %v7322
        %7521 = vmatmul.mubr.bf16.gmra.mxu0 %v6712
        %v7522 = vpop.f32.mrf.mxu0
        %v7523 = vadd.f32 %v7482, %v7522
        %v7524 = vpop.f32.mrf.mxu0
        %v7525 = vpop.f32.mrf.mxu0
        %v7526 = vadd.f32 %v7485, %v7525
        %v7527 = vpop.f32.mrf.mxu0
        %7528 = vdwg.mxu0
        %7529 = vmax.xlane.f32.xlu0 %v7523
        %v7530 = vpop.xlane.xlu0 %7529
        %7531 = vmax.xlane.f32.xlu0 %v7526
        %v7532 = vpop.xlane.xlu0 %7531
        %v7533 = vsub.f32 %v7523, %v7530
        %v7534 = vsub.f32 %v7526, %v7532
        %v7535 = vmul.f32 %v7533, 1.442695
        %v7536 = vpow.pop %v7535
        %v7537 = vmul.f32 %v7534, 1.442695
        %v7538 = vpow.pop %v7537
        %7539 = vadd.xlane.f32.xlu0 %v7536
        %v7540 = vpop.xlane.xlu0 %7539
        %7541 = vadd.xlane.f32.xlu0 %v7538
        %v7542 = vpop.xlane.xlu0 %7541
        %v7543 = vlog2.pop %v7540
        %v7544 = vmul.f32 %v7543, 0.6931472
        %v7545 = vlog2.pop %v7542
        %v7546 = vmul.f32 %v7545, 0.6931472
        %v7547 = vsub.f32 %v7533, %v7544
        %v7548 = vsub.f32 %v7534, %v7546
        %vm7549 = vcmask 334848
        %7550 = vst.msk [vmem:[%s377] sm:$0xff] %vm7549, %v7547
        %7551 = vst.msk [vmem:[%s377 + $0x8] sm:$0xff] %vm7549, %v7548
        %s7552 = sand.u32 %s187, 1
        %s7553 = scalar_lea.sflag [#allocation4], %s7552
        %s7554 = sand.u32 %s187, 1
        %s7555 = smul.addr %s7554, 16
        %s7556 = scalar_lea.vmem [#allocation14], %s7555
        // Predicated region
        $region77: #{tpu_custom_call.1} parent=47 // pred_check
          %p7557 = pneg %p197
        $region78: #{tpu_custom_call.1} parent=47 // pred_check_branch
          %7559 = sbr.rel (%p7557) target = $region80
        $region79: #{tpu_custom_call.1} parent=47 // pred_region
          %s7560 = smul.u32 2, %s27
          %s7562 = ssub.s32 256, 256
          %7563 = vsyncadd %s7553, %s7562
          %s7564 = smul.addr %s7560, 128
          %s7565 = scalar_lea.hbm %s7, %s7564
          %s7566 = sshll.u32 %s7556, 4
          %s7567 = int_to_ptr.vmem [resolvable:$true] %s7566
          %7572 = dma.vmem_to_hbm [thread:$0]  %s7567, 256, %s7565, %s7553, 128, 128, 8
        $region80: #{tpu_custom_call.1} parent=47 // pred_fallthru
          _
      $region48: #{tpu_custom_call.1} parent=5 // pred_fallthru
        _
      %p7573 = scmp.le.s32.totalorder 2, %s22
      // Predicated region
      $region81: #{tpu_custom_call.1} parent=5 // pred_check
        %p7574 = pneg %p7573
      $region82: #{tpu_custom_call.1} parent=5 // pred_check_branch
        %7576 = sbr.rel (%p7574) target = $region84
      $region83: #{tpu_custom_call.1} parent=5 // pred_region
        %s7577 = ssub.s32 %s22, 2
        // Predicated region
        $region85: #{tpu_custom_call.1} parent=83 // pred_check
          %p7578 = pneg %p203
        $region86: #{tpu_custom_call.1} parent=83 // pred_check_branch
          %7580 = sbr.rel (%p7578) target = $region88
        $region87: #{tpu_custom_call.1} parent=83 // pred_region
          %s7581 = sand.u32 %s188, 1
          %s7582 = scalar_lea.sflag [#allocation4], %s7581
          %s7583 = sand.u32 %s188, 1
          %s7584 = smul.addr %s7583, 16
          %s7585 = scalar_lea.vmem [#allocation14], %s7584
          %7586 = dma.done %s7582, 256
        $region88: #{tpu_custom_call.1} parent=83 // pred_fallthru
          _
      $region84: #{tpu_custom_call.1} parent=5 // pred_fallthru
        _
    $region6: #{tpu_custom_call.1} parent=1 // loop_footer
      %s26 = sadd.s32 1, %s22
    $region7: #{tpu_custom_call.1} parent=1 // loop_footer_branch
      %21 = sbr.rel target = $region3
    $region8: #{tpu_custom_call.1} parent=1 // loop_exit
      _
    %7587 = vsyncpa [#allocation3], 1
    %s7588 = scalar_lea.sflag [#allocation3], 1
    %7589 = vsyncpa %s7588, 1
    %7590 = vsyncpa [#allocation6], 1
    %7591 = vsyncpa [#allocation9], 1
    %7592 = vsyncpa [#allocation12], 1
    %7593 = vsyncpa [#allocation4], 1
    %s7594 = scalar_lea.sflag [#allocation4], 1
    %7595 = vsyncpa %s7594, 1

</llo_original>
